<compile_context>
chip_gen: v7x
topology: tpu7x:2x2x1
jax: 0.10.0
libtpu: 0.0.40
codegen_flags: <defaults>
</compile_context>

<pallas_src>
import functools

import jax
import jax.numpy as jnp
from jax.experimental import pallas as pl
from jax.experimental.pallas import tpu as pltpu

_LANE = 128


# ----------------------------------------------------------------------------
# Plain-JAX glue: SSD / RefineDet style matching (refine_match, use_mbd1=False)
# ----------------------------------------------------------------------------
def _point_form(priors):
    # (cx, cy, w, h) -> (x1, y1, x2, y2)
    return jnp.concatenate(
        [priors[:, :2] - priors[:, 2:] / 2.0, priors[:, :2] + priors[:, 2:] / 2.0],
        axis=1,
    )


def _jaccard(box_a, box_b):
    # box_a: (T, 4) corner form, box_b: (P, 4) corner form -> (T, P) IoU
    max_xy = jnp.minimum(box_a[:, None, 2:], box_b[None, :, 2:])
    min_xy = jnp.maximum(box_a[:, None, :2], box_b[None, :, :2])
    inter = jnp.prod(jnp.clip(max_xy - min_xy, 0.0, None), axis=-1)
    area_a = ((box_a[:, 2] - box_a[:, 0]) * (box_a[:, 3] - box_a[:, 1]))[:, None]
    area_b = ((box_b[:, 2] - box_b[:, 0]) * (box_b[:, 3] - box_b[:, 1]))[None, :]
    return inter / (area_a + area_b - inter)


def _encode(matched, priors, variances):
    # matched: (P, 4) corner-form GT; priors: (P, 4) center form -> (P, 4)
    g_cxcy = (matched[:, :2] + matched[:, 2:]) / 2.0 - priors[:, :2]
    g_cxcy = g_cxcy / (variances[0] * priors[:, 2:])
    g_wh = (matched[:, 2:] - matched[:, :2]) / priors[:, 2:]
    g_wh = jnp.log(g_wh) / variances[1]
    return jnp.concatenate([g_cxcy, g_wh], axis=1)


def _refine_match(threshold, truths, priors, variances, labels):
    num_truths = truths.shape[0]
    num_priors = priors.shape[0]
    overlaps = _jaccard(truths, _point_form(priors))            # (T, P)
    best_prior_idx = jnp.argmax(overlaps, axis=1)                # (T,)
    best_truth_overlap = jnp.max(overlaps, axis=0)               # (P,)
    best_truth_idx = jnp.argmax(overlaps, axis=0).astype(jnp.int32)

    # Every GT keeps its best prior. Duplicate best priors resolve deterministically
    # to the largest truth index (same as torch's ascending-j loop, last write wins).
    forced = jnp.zeros((num_priors,), dtype=bool).at[best_prior_idx].set(True)
    winner = (jnp.full((num_priors,), -1, dtype=jnp.int32)
              .at[best_prior_idx].max(jnp.arange(num_truths, dtype=jnp.int32)))
    best_truth_idx = jnp.where(forced, winner, best_truth_idx)
    best_truth_overlap = jnp.where(forced, 2.0, best_truth_overlap)

    matched = truths[best_truth_idx]                             # (P, 4)
    conf = labels[best_truth_idx].astype(jnp.int32) + 1          # (P,)
    conf = jnp.where(best_truth_overlap < threshold, 0, conf)    # background
    loc = _encode(matched, priors, variances)                    # (P, 4) native layout
    return loc, conf


# ----------------------------------------------------------------------------
# Pallas kernel: per-prior cross entropy + per-tile smooth-L1 partial sums.
# Native layout: priors on sublanes, classes/coords on lanes -> no relayout
# of the big prediction tensors anywhere in the wrapper.
# ----------------------------------------------------------------------------
def _ce_smoothl1_kernel(loc_p_ref, loc_t_ref, conf_ref, conf_t_ref,
                        ce_ref, lossl_ref):
    conf_t = conf_t_ref[...]                            # (1, TP, 1) int32
    pos = conf_t > 0                                    # (1, TP, 1)

    # ---- smooth-L1 over positive priors -> per-tile partial sum ----
    diff = loc_p_ref[...].astype(jnp.float32) - loc_t_ref[...].astype(jnp.float32)
    ad = jnp.abs(diff)
    sl1 = jnp.where(ad < 1.0, 0.5 * diff * diff, ad - 0.5)      # (1, TP, 4)
    part = jnp.sum(jnp.where(pos, sl1, 0.0))                    # scalar

    # ---- per-prior cross entropy: log_sum_exp(conf) - conf[target] ----
    conf = conf_ref[...].astype(jnp.float32)            # (1, TP, C)
    cmax = jnp.max(conf, axis=-1, keepdims=True)        # (1, TP, 1)
    lse = jnp.log(jnp.sum(jnp.exp(conf - cmax), axis=-1, keepdims=True)) + cmax
    cls_iota = jax.lax.broadcasted_iota(jnp.int32, conf.shape, 2)
    gathered = jnp.sum(jnp.where(cls_iota == conf_t, conf, 0.0),
                       axis=-1, keepdims=True)          # (1, TP, 1)
    ce_ref[...] = lse - gathered                        # (1, TP, 1)

    lossl_ref[...] = jnp.full((1, 1, 1, _LANE), part, dtype=jnp.float32)


def _pick_prior_tile(num_priors, num_classes, vmem_block_budget=6 * 1024 * 1024):
    # Double-buffered per-prior VMEM footprint (f32): loc_p(4)+loc_t(4)+conf(C)+conf_t(1)+ce(1)
    bytes_per_prior = 2 * 4 * (4 + 4 + num_classes + 1 + 1)
    cap = max(128, vmem_block_budget // bytes_per_prior)
    cands = [c for c in (8192, 4096, 2048, 1024, 512, 256, 128) if c <= cap]
    if not cands:
        cands = [128]
    for c in cands:                       # largest tile that divides P exactly
        if num_priors % c == 0:
            return c
    for c in cands:                       # else largest tile with <=12.5% padding
        if ((-num_priors) % c) * 8 <= num_priors:
            return c
    return cands[-1]


def _ce_smoothl1_pallas(loc_p, loc_t, conf, conf_t3):
    B, P, C = conf.shape
    tp = _pick_prior_tile(P, C)
    p_pad = -(-P // tp) * tp
    if p_pad != P:
        # TODO(synk): padding materializes copies; align prior count upstream to avoid it.
        pad = ((0, 0), (0, p_pad - P), (0, 0))
        loc_p = jnp.pad(loc_p, pad)
        loc_t = jnp.pad(loc_t, pad)
        conf = jnp.pad(conf, pad)
        conf_t3 = jnp.pad(conf_t3, pad)
    n_tiles = p_pad // tp
    grid = (B, n_tiles)

    in_bytes = (2 * B * p_pad * 4 * 4 + B * p_pad * C * 4 + B * p_pad * 4)
    out_bytes = 4 * (B * p_pad + B * n_tiles * _LANE)
    cost = pl.CostEstimate(flops=B * p_pad * (16 + 6 * C),
                           transcendentals=B * p_pad * (C + 1),
                           bytes_accessed=in_bytes + out_bytes)

    ce3, lossl = pl.pallas_call(
        _ce_smoothl1_kernel,
        grid=grid,
        in_specs=[
            pl.BlockSpec((1, tp, 4), lambda b, p: (b, p, 0)),   # loc_data (B,P,4)
            pl.BlockSpec((1, tp, 4), lambda b, p: (b, p, 0)),   # loc_t    (B,P,4)
            pl.BlockSpec((1, tp, C), lambda b, p: (b, p, 0)),   # conf     (B,P,C)
            pl.BlockSpec((1, tp, 1), lambda b, p: (b, p, 0)),   # conf_t   (B,P,1)
        ],
        out_specs=(
            pl.BlockSpec((1, tp, 1), lambda b, p: (b, p, 0)),            # ce
            pl.BlockSpec((1, 1, 1, _LANE), lambda b, p: (b, p, 0, 0)),   # loss_l partial
        ),
        out_shape=(
            jax.ShapeDtypeStruct((B, p_pad, 1), jnp.float32),
            jax.ShapeDtypeStruct((B, n_tiles, 1, _LANE), jnp.float32),
        ),
        compiler_params=pltpu.CompilerParams(
            dimension_semantics=("parallel", "parallel"),
            vmem_limit_bytes=24 * 1024 * 1024,
        ),
        cost_estimate=cost,
    )(loc_p, loc_t, conf, conf_t3)

    ce = ce3[:, :P, 0]                                   # (B, P)
    loss_l_img = jnp.sum(lossl[:, :, 0, 0], axis=1)      # (B,)
    return ce, loss_l_img


def _ce_smoothl1_ref(loc_p, loc_t, conf, conf_t3):
    # Pure-jnp mirror of the kernel math, for validation.
    pos = conf_t3 > 0
    diff = loc_p.astype(jnp.float32) - loc_t.astype(jnp.float32)
    ad = jnp.abs(diff)
    sl1 = jnp.where(ad < 1.0, 0.5 * diff * diff, ad - 0.5)
    loss_l_img = jnp.sum(jnp.where(pos, sl1, 0.0), axis=(1, 2))
    conf = conf.astype(jnp.float32)
    cmax = jnp.max(conf, axis=-1, keepdims=True)
    lse = jnp.log(jnp.sum(jnp.exp(conf - cmax), axis=-1, keepdims=True)) + cmax
    cls = jnp.arange(conf.shape[-1], dtype=jnp.int32)[None, None, :]
    gathered = jnp.sum(jnp.where(cls == conf_t3, conf, 0.0), axis=-1, keepdims=True)
    ce = (lse - gathered)[:, :, 0]
    return ce, loss_l_img


# ----------------------------------------------------------------------------
# Wrapper reproducing DAGNet_MultiBox_Loss.forward (use_mbd1=False path)
# ----------------------------------------------------------------------------
def dagnet_multibox_loss(predictions, targets, *, num_classes, overlap_thresh,
                         negpos_ratio, variance, use_mbd1=False, use_pallas=True):
    mbd1_loc, mbd1_conf, mbd2_loc, mbd2_conf, priors = predictions
    if use_mbd1:
        # TODO(synk): use_mbd1=True branch (ARM-decoded matching + theta filtering
        # of positives) is not implemented; only the default use_mbd1=False path is.
        raise NotImplementedError("use_mbd1=True path not implemented")
    loc_data, conf_data = mbd1_loc, mbd1_conf
    num, num_priors, _ = loc_data.shape
    priors = priors[:num_priors, :]
    var = jnp.asarray(variance, dtype=jnp.float32)

    def match_one(t):
        truths = t[:, :-1]
        labels = t[:, -1]
        if num_classes == 2:
            labels = (labels >= 0).astype(labels.dtype)
        return _refine_match(overlap_thresh, truths, priors, var, labels)

    # TODO(synk): assumes every image carries exactly T valid GT boxes (no padding);
    # padded/zero-area boxes would silently propagate NaN through _jaccard/_encode.
    loc_t, conf_t = jax.vmap(match_one)(targets)       # (B, P, 4) f32, (B, P) i32
    conf_t3 = conf_t[:, :, None].astype(jnp.int32)     # (B, P, 1) -- free reshape
    # TODO(synk): conf_t could be int16/int8 to shave a few % of HBM traffic.

    if use_pallas:
        ce, loss_l_img = _ce_smoothl1_pallas(loc_data, loc_t, conf_data, conf_t3)
    else:
        ce, loss_l_img = _ce_smoothl1_ref(loc_data, loc_t, conf_data, conf_t3)

    # ---- hard negative mining: single descending value sort + prefix sum ----
    # sum over (pos | neg) of CE  ==  sum_pos CE + sum of the num_neg largest
    # values of lc (CE with positives zeroed) -- tie-invariant, identical to
    # torch's double-argsort rank selection.
    pos = conf_t > 0                                    # (B, P)
    num_pos = jnp.sum(pos.astype(jnp.int32), axis=1, keepdims=True)      # (B, 1)
    num_neg = jnp.minimum(negpos_ratio * num_pos, num_priors - 1)        # (B, 1)

    lc = jnp.where(pos, 0.0, ce)                        # (B, P)
    lc_sorted = -jnp.sort(-lc, axis=1)                  # descending values
    csum = jnp.cumsum(lc_sorted, axis=1)                # (B, P)
    gather_idx = jnp.clip(num_neg - 1, 0, num_priors - 1)
    neg_sum = jnp.take_along_axis(csum, gather_idx, axis=1)              # (B, 1)
    neg_sum = jnp.where(num_neg > 0, neg_sum, 0.0)

    pos_sum = jnp.sum(jnp.where(pos, ce, 0.0), axis=1, keepdims=True)    # (B, 1)
    loss_c = jnp.sum(pos_sum + neg_sum)
    loss_l = jnp.sum(loss_l_img)

    # Guard the degenerate no-positive case (torch would produce inf/nan).
    n = jnp.maximum(jnp.sum(num_pos).astype(jnp.float32), 1.0)
    return loss_l / n, loss_c / n


# ----------------------------------------------------------------------------
# Example run with deterministic synthetic inputs.
# ----------------------------------------------------------------------------
if __name__ == "__main__":
    key = jax.random.PRNGKey(0)
    k1, k2, k3, k4, k5, k6, k7, k8 = jax.random.split(key, 8)

    B, P, C, T = 2, 1024, 4, 4      # batch, priors, classes, gt boxes per image

    mbd1_loc = 0.1 * jax.random.normal(k1, (B, P, 4), dtype=jnp.float32)
    mbd1_conf = jax.random.normal(k2, (B, P, C), dtype=jnp.float32)
    mbd2_loc = 0.1 * jax.random.normal(k3, (B, P, 4), dtype=jnp.float32)
    mbd2_conf = jax.random.normal(k4, (B, P, C), dtype=jnp.float32)

    cxcy = jax.random.uniform(k5, (P, 2), minval=0.05, maxval=0.95)
    wh = jax.random.uniform(k6, (P, 2), minval=0.10, maxval=0.35)
    priors = jnp.concatenate([cxcy, wh], axis=1).astype(jnp.float32)

    xy1 = jax.random.uniform(k7, (B, T, 2), minval=0.0, maxval=0.6)
    sz = jax.random.uniform(k8, (B, T, 2), minval=0.15, maxval=0.35)
    xy2 = jnp.clip(xy1 + sz, 0.0, 1.0)
    labels = (jax.random.randint(jax.random.PRNGKey(42), (B, T, 1), 0, C - 1)
              .astype(jnp.float32))
    targets = jnp.concatenate([xy1, xy2, labels], axis=-1).astype(jnp.float32)

    predictions = (mbd1_loc, mbd1_conf, mbd2_loc, mbd2_conf, priors)

    loss_fn = functools.partial(dagnet_multibox_loss, num_classes=C,
                                overlap_thresh=0.5, negpos_ratio=3,
                                variance=(0.1, 0.2))

    loss_l, loss_c = jax.jit(loss_fn)(predictions, targets)
    jax.block_until_ready((loss_l, loss_c))

    # Pure-JAX reference (same forward, kernel math replaced by jnp).
    ref_l, ref_c = jax.jit(functools.partial(loss_fn, use_pallas=False))(
        predictions, targets)
    jax.block_until_ready((ref_l, ref_c))

    if not (bool(jnp.allclose(loss_l, ref_l, rtol=1e-3, atol=1e-3))
            and bool(jnp.allclose(loss_c, ref_c, rtol=1e-3, atol=1e-3))):
        raise AssertionError(
            f"mismatch: pallas=({float(loss_l)}, {float(loss_c)}) "
            f"ref=({float(ref_l)}, {float(ref_c)})")
    print("KERNEL_OK")
</pallas_src>

<mosaic_0001>
module attributes {stable_mosaic.version = 11 : i64} {
  func.func @_ce_smoothl1_kernel(%arg0: i32, %arg1: i32, %arg2: memref<1x1024x4xf32, #tpu.memory_space<vmem>>, %arg3: memref<1x1024x4xf32, #tpu.memory_space<vmem>>, %arg4: memref<1x1024x4xf32, #tpu.memory_space<vmem>>, %arg5: memref<1x1024x1xi32, #tpu.memory_space<vmem>>, %arg6: memref<1x1024x1xf32, #tpu.memory_space<vmem>>, %arg7: memref<1x1x1x128xf32, #tpu.memory_space<vmem>>) attributes {dimension_semantics = [#tpu.dimension_semantics<parallel>, #tpu.dimension_semantics<parallel>], iteration_bounds = array<i64: 2, 1>, scalar_prefetch = 0 : i64, scratch_operands = 0 : i64, tpu.core_type = #tpu.core_type<tc>, window_params = [{transform_indices = @transform_0, window_bounds = array<i64: 1, 1024, 4>}, {transform_indices = @transform_1, window_bounds = array<i64: 1, 1024, 4>}, {transform_indices = @transform_2, window_bounds = array<i64: 1, 1024, 4>}, {transform_indices = @transform_3, window_bounds = array<i64: 1, 1024, 1>}, {transform_indices = @transform_4, window_bounds = array<i64: 1, 1024, 1>}, {transform_indices = @transform_5, window_bounds = array<i64: 1, 1, 1, 128>}]} {
    %c0 = arith.constant 0 : index
    %c0_0 = arith.constant 0 : index
    %c0_1 = arith.constant 0 : index
    %0 = vector.load %arg5[%c0, %c0_0, %c0_1] : memref<1x1024x1xi32, #tpu.memory_space<vmem>>, vector<1x1024x1xi32>
    %c0_i32 = arith.constant 0 : i32
    %1 = vector.broadcast %c0_i32 : i32 to vector<1x1024x1xi32>
    %2 = arith.cmpi sgt, %0, %1 : vector<1x1024x1xi32>
    %c0_2 = arith.constant 0 : index
    %c0_3 = arith.constant 0 : index
    %c0_4 = arith.constant 0 : index
    %3 = vector.load %arg2[%c0_2, %c0_3, %c0_4] : memref<1x1024x4xf32, #tpu.memory_space<vmem>>, vector<1x1024x4xf32>
    %c0_5 = arith.constant 0 : index
    %c0_6 = arith.constant 0 : index
    %c0_7 = arith.constant 0 : index
    %4 = vector.load %arg3[%c0_5, %c0_6, %c0_7] : memref<1x1024x4xf32, #tpu.memory_space<vmem>>, vector<1x1024x4xf32>
    %5 = arith.subf %3, %4 : vector<1x1024x4xf32>
    %6 = math.absf %5 : vector<1x1024x4xf32>
    %cst = arith.constant 1.000000e+00 : f32
    %7 = vector.broadcast %cst : f32 to vector<1x1024x4xf32>
    %8 = arith.cmpf olt, %6, %7 : vector<1x1024x4xf32>
    %cst_8 = arith.constant 5.000000e-01 : f32
    %9 = vector.broadcast %cst_8 : f32 to vector<1x1024x4xf32>
    %10 = arith.mulf %9, %5 : vector<1x1024x4xf32>
    %11 = arith.mulf %10, %5 : vector<1x1024x4xf32>
    %cst_9 = arith.constant 5.000000e-01 : f32
    %12 = vector.broadcast %cst_9 : f32 to vector<1x1024x4xf32>
    %13 = arith.subf %6, %12 : vector<1x1024x4xf32>
    %14 = arith.select %8, %11, %13 : vector<1x1024x4xi1>, vector<1x1024x4xf32>
    %cst_10 = arith.constant 0.000000e+00 : f32
    %15 = vector.shape_cast %2 : vector<1x1024x1xi1> to vector<1x1024x1xi1>
    %16 = vector.broadcast %15 : vector<1x1024x1xi1> to vector<1x1024x4xi1>
    %17 = vector.broadcast %cst_10 : f32 to vector<1x1024x4xf32>
    %18 = arith.select %16, %14, %17 : vector<1x1024x4xi1>, vector<1x1024x4xf32>
    %19 = vector.shape_cast %18 : vector<1x1024x4xf32> to vector<1x1x1024x4xf32>
    %cst_11 = arith.constant dense<0.000000e+00> : vector<1xf32>
    %20 = vector.multi_reduction <add>, %19, %cst_11 [1, 2, 3] : vector<1x1x1024x4xf32> to vector<1xf32>
    %21 = vector.shape_cast %20 : vector<1xf32> to vector<1x1x1x1xf32>
    %22 = vector.extract %21[0, 0, 0, 0] : f32 from vector<1x1x1x1xf32>
    %c0_12 = arith.constant 0 : index
    %c0_13 = arith.constant 0 : index
    %c0_14 = arith.constant 0 : index
    %23 = vector.load %arg4[%c0_12, %c0_13, %c0_14] : memref<1x1024x4xf32, #tpu.memory_space<vmem>>, vector<1x1024x4xf32>
    %cst_15 = arith.constant dense<0xFF800000> : vector<1x1024xf32>
    %24 = vector.multi_reduction <maximumf>, %23, %cst_15 [2] : vector<1x1024x4xf32> to vector<1x1024xf32>
    %25 = vector.shape_cast %24 : vector<1x1024xf32> to vector<1x1024x1xf32>
    %26 = vector.broadcast %25 : vector<1x1024x1xf32> to vector<1x1024x4xf32>
    %27 = arith.subf %23, %26 : vector<1x1024x4xf32>
    %28 = math.exp %27 : vector<1x1024x4xf32>
    %cst_16 = arith.constant dense<0.000000e+00> : vector<1x1024xf32>
    %29 = vector.multi_reduction <add>, %28, %cst_16 [2] : vector<1x1024x4xf32> to vector<1x1024xf32>
    %30 = vector.shape_cast %29 : vector<1x1024xf32> to vector<1x1024x1xf32>
    %31 = math.log %30 : vector<1x1024x1xf32>
    %32 = arith.addf %31, %25 : vector<1x1024x1xf32>
    %33 = tpu.iota {dimensions = array<i32: 2>} : vector<1x1024x4xi32>
    %34 = vector.broadcast %0 : vector<1x1024x1xi32> to vector<1x1024x4xi32>
    %35 = arith.cmpi eq, %33, %34 : vector<1x1024x4xi32>
    %cst_17 = arith.constant 0.000000e+00 : f32
    %36 = vector.broadcast %cst_17 : f32 to vector<1x1024x4xf32>
    %37 = arith.select %35, %23, %36 : vector<1x1024x4xi1>, vector<1x1024x4xf32>
    %cst_18 = arith.constant dense<0.000000e+00> : vector<1x1024xf32>
    %38 = vector.multi_reduction <add>, %37, %cst_18 [2] : vector<1x1024x4xf32> to vector<1x1024xf32>
    %39 = vector.shape_cast %38 : vector<1x1024xf32> to vector<1x1024x1xf32>
    %40 = arith.subf %32, %39 : vector<1x1024x1xf32>
    %c0_19 = arith.constant 0 : index
    %c0_20 = arith.constant 0 : index
    %c0_21 = arith.constant 0 : index
    %41 = vector.load %arg6[%c0_19, %c0_20, %c0_21] : memref<1x1024x1xf32, #tpu.memory_space<vmem>>, vector<1x1024x1xf32>
    tpu.vector_store %arg6[%c0_19, %c0_20, %c0_21], %40 {strides = array<i32>} : memref<1x1024x1xf32, #tpu.memory_space<vmem>>, vector<1x1024x1xf32>,
    %42 = vector.broadcast %22 : f32 to vector<1x1x1x128xf32>
    %c0_22 = arith.constant 0 : index
    %c0_23 = arith.constant 0 : index
    %c0_24 = arith.constant 0 : index
    %c0_25 = arith.constant 0 : index
    %43 = vector.load %arg7[%c0_22, %c0_23, %c0_24, %c0_25] : memref<1x1x1x128xf32, #tpu.memory_space<vmem>>, vector<1x1x1x128xf32>
    tpu.vector_store %arg7[%c0_22, %c0_23, %c0_24, %c0_25], %42 {strides = array<i32>} : memref<1x1x1x128xf32, #tpu.memory_space<vmem>>, vector<1x1x1x128xf32>,
    return
  }
  func.func @transform_0(%arg0: i32, %arg1: i32) -> (i32, i32, i32) {
    %c0_i32 = arith.constant 0 : i32
    %c0_i32_0 = arith.constant 0 : i32
    return %arg0, %arg1, %c0_i32 : i32, i32, i32
  }
  func.func @transform_1(%arg0: i32, %arg1: i32) -> (i32, i32, i32) {
    %c0_i32 = arith.constant 0 : i32
    %c0_i32_0 = arith.constant 0 : i32
    return %arg0, %arg1, %c0_i32 : i32, i32, i32
  }
  func.func @transform_2(%arg0: i32, %arg1: i32) -> (i32, i32, i32) {
    %c0_i32 = arith.constant 0 : i32
    %c0_i32_0 = arith.constant 0 : i32
    return %arg0, %arg1, %c0_i32 : i32, i32, i32
  }
  func.func @transform_3(%arg0: i32, %arg1: i32) -> (i32, i32, i32) {
    %c0_i32 = arith.constant 0 : i32
    %c0_i32_0 = arith.constant 0 : i32
    return %arg0, %arg1, %c0_i32 : i32, i32, i32
  }
  func.func @transform_4(%arg0: i32, %arg1: i32) -> (i32, i32, i32) {
    %c0_i32 = arith.constant 0 : i32
    %c0_i32_0 = arith.constant 0 : i32
    return %arg0, %arg1, %c0_i32 : i32, i32, i32
  }
  func.func @transform_5(%arg0: i32, %arg1: i32) -> (i32, i32, i32, i32) {
    %c0_i32 = arith.constant 0 : i32
    %c0_i32_0 = arith.constant 0 : i32
    %c0_i32_1 = arith.constant 0 : i32
    return %arg0, %arg1, %c0_i32, %c0_i32_0 : i32, i32, i32, i32
  }
}

</mosaic_0001>

<llo_original>
// kernel: dagnet_multibox_loss.1
$region0: #{dagnet_multibox_loss.1}
  #allocation0 [shape = 'u32[]', space=smem, size = 0x4, offset = 0x4, fixed_abs, tag = 'smem constant byte address 0x4 - core index']
  #allocation1 [shape = 'u32[144,128]{1,0:T(1,128)}', space=vmem, size = 0x12000, scoped, tag = 'internal scratch']
  %s0 = inlined_call_operand.vmem [shape: f32[2,1024,4], index: 0, kind: input, shape index: {}]
  %s1 = inlined_call_operand.vmem [shape: f32[2,1024,4], index: 1, kind: input, shape index: {}]
  %s2 = inlined_call_operand.vmem [shape: f32[2,1024,4], index: 2, kind: input, shape index: {}]
  %s3 = inlined_call_operand.vmem [shape: s32[2,1024,1], index: 3, kind: input, shape index: {}]
  %s4 = inlined_call_operand.vmem [shape: f32[2,1024,1], index: 4, kind: output, shape index: {0}]
  %s5 = inlined_call_operand.vmem [shape: f32[2,1,1,128], index: 5, kind: output, shape index: {1}]
  %6 = xla_tuple %s4, %s5
  %s7 = sld [smem:[#allocation0]]
  $region57: #{dagnet_multibox_loss.1} parent=0
    _
  %s9 = ssub.s32 1, %s7
  %s10 = scalar_select 0, %s9, %s7
  loop: start=0, step=1, limit=4
  $region2: #{dagnet_multibox_loss.1} parent=0 // loop_pre_header
    _
  $region3: #{dagnet_multibox_loss.1} parent=0 // loop_header
    %s12 = sphi 0, %s16
    %p13 = scmp.ge.s32.totalorder %s12, 4
    %s19 = sphi 0, %s31
    %s20 = sphi 0, %s27
    %s21 = sphi 0, %s19
    %s22 = sphi 0, %s20
    %s23 = sphi 0, %s21
    %s24 = sphi 0, %s22
    %s36 = sphi 0, %s38
    %s39 = sphi 0, %s36
    %s40 = sphi 0, %s39
    %s56 = sphi 0, %s40
    %s64 = sphi 0, %s66
    %s67 = sphi 0, %s64
    %s68 = sphi 0, %s67
    %s84 = sphi 0, %s68
    %s92 = sphi 0, %s94
    %s95 = sphi 0, %s92
    %s96 = sphi 0, %s95
    %s112 = sphi 0, %s96
    %s120 = sphi 0, %s122
    %s123 = sphi 0, %s120
    %s124 = sphi 0, %s123
    %s140 = sphi 0, %s124
    %s148 = sphi 0, %s150
    %s151 = sphi 0, %s148
    %s152 = sphi 0, %s151
    %s168 = sphi 0, %s152
    %s176 = sphi 0, %s178
    %s179 = sphi 0, %s176
    %s180 = sphi 0, %s179
    %s196 = sphi 0, %s180
  $region4: #{dagnet_multibox_loss.1} parent=0 // loop_header_branch
    %15 = sbr.rel (%p13) target = $region8
  $region5: #{dagnet_multibox_loss.1} parent=0 // loop_body
    %s17 = ssub.s32 %s12, 1
    %s18 = ssub.s32 %s12, 2
    %s25 = sadd.s32 1, %s20
    %p26 = scmp.ge.s32.totalorder %s25, 1
    %s27 = scalar_select %p26, 0, %s25
    %s28 = sadd.s32 1, %s19
    %s29 = scalar_select %p26, %s28, %s19
    %p30 = scmp.ge.s32.totalorder %s29, 2
    %s31 = scalar_select %p30, 0, %s29
    %s32 = ssub.s32 %s19, %s31
    %s33 = ssub.s32 %s20, %s27
    %s34 = sor.u32 %s32, %s33
    %p35 = scmp.eq.s32.totalorder %s34, 0
    %s37 = sadd.s32 %s36, 1
    %s38 = scalar_select %p35, %s36, %s37
    %p41 = pneg %p35
    %p42 = scmp.eq.s32.totalorder %s12, 1
    %p43 = por %p41, %p42
    %p44 = scmp.ne.s32.totalorder %s36, %s39
    %p45 = scmp.eq.s32.totalorder %s12, 0
    %p46 = por %p44, %p45
    %p47 = scmp.ne.s32.totalorder %s36, %s39
    %p48 = scmp.eq.s32.totalorder %s17, 1
    %p49 = por %p47, %p48
    %p50 = scmp.ne.s32.totalorder %s39, %s40
    %p51 = scmp.eq.s32.totalorder %s17, 0
    %p52 = por %p50, %p51
    %p53 = scmp.ne.s32.totalorder %s39, %s40
    %p54 = scmp.eq.s32.totalorder %s18, 1
    %p55 = por %p53, %p54
    %p57 = scmp.ne.s32.totalorder %s40, %s56
    %p58 = scmp.eq.s32.totalorder %s18, 0
    %p59 = por %p57, %p58
    %s60 = ssub.s32 %s19, %s31
    %s61 = ssub.s32 %s20, %s27
    %s62 = sor.u32 %s60, %s61
    %p63 = scmp.eq.s32.totalorder %s62, 0
    %s65 = sadd.s32 %s64, 1
    %s66 = scalar_select %p63, %s64, %s65
    %p69 = pneg %p63
    %p70 = scmp.eq.s32.totalorder %s12, 1
    %p71 = por %p69, %p70
    %p72 = scmp.ne.s32.totalorder %s64, %s67
    %p73 = scmp.eq.s32.totalorder %s12, 0
    %p74 = por %p72, %p73
    %p75 = scmp.ne.s32.totalorder %s64, %s67
    %p76 = scmp.eq.s32.totalorder %s17, 1
    %p77 = por %p75, %p76
    %p78 = scmp.ne.s32.totalorder %s67, %s68
    %p79 = scmp.eq.s32.totalorder %s17, 0
    %p80 = por %p78, %p79
    %p81 = scmp.ne.s32.totalorder %s67, %s68
    %p82 = scmp.eq.s32.totalorder %s18, 1
    %p83 = por %p81, %p82
    %p85 = scmp.ne.s32.totalorder %s68, %s84
    %p86 = scmp.eq.s32.totalorder %s18, 0
    %p87 = por %p85, %p86
    %s88 = ssub.s32 %s19, %s31
    %s89 = ssub.s32 %s20, %s27
    %s90 = sor.u32 %s88, %s89
    %p91 = scmp.eq.s32.totalorder %s90, 0
    %s93 = sadd.s32 %s92, 1
    %s94 = scalar_select %p91, %s92, %s93
    %p97 = pneg %p91
    %p98 = scmp.eq.s32.totalorder %s12, 1
    %p99 = por %p97, %p98
    %p100 = scmp.ne.s32.totalorder %s92, %s95
    %p101 = scmp.eq.s32.totalorder %s12, 0
    %p102 = por %p100, %p101
    %p103 = scmp.ne.s32.totalorder %s92, %s95
    %p104 = scmp.eq.s32.totalorder %s17, 1
    %p105 = por %p103, %p104
    %p106 = scmp.ne.s32.totalorder %s95, %s96
    %p107 = scmp.eq.s32.totalorder %s17, 0
    %p108 = por %p106, %p107
    %p109 = scmp.ne.s32.totalorder %s95, %s96
    %p110 = scmp.eq.s32.totalorder %s18, 1
    %p111 = por %p109, %p110
    %p113 = scmp.ne.s32.totalorder %s96, %s112
    %p114 = scmp.eq.s32.totalorder %s18, 0
    %p115 = por %p113, %p114
    %s116 = ssub.s32 %s19, %s31
    %s117 = ssub.s32 %s20, %s27
    %s118 = sor.u32 %s116, %s117
    %p119 = scmp.eq.s32.totalorder %s118, 0
    %s121 = sadd.s32 %s120, 1
    %s122 = scalar_select %p119, %s120, %s121
    %p125 = pneg %p119
    %p126 = scmp.eq.s32.totalorder %s12, 1
    %p127 = por %p125, %p126
    %p128 = scmp.ne.s32.totalorder %s120, %s123
    %p129 = scmp.eq.s32.totalorder %s12, 0
    %p130 = por %p128, %p129
    %p131 = scmp.ne.s32.totalorder %s120, %s123
    %p132 = scmp.eq.s32.totalorder %s17, 1
    %p133 = por %p131, %p132
    %p134 = scmp.ne.s32.totalorder %s123, %s124
    %p135 = scmp.eq.s32.totalorder %s17, 0
    %p136 = por %p134, %p135
    %p137 = scmp.ne.s32.totalorder %s123, %s124
    %p138 = scmp.eq.s32.totalorder %s18, 1
    %p139 = por %p137, %p138
    %p141 = scmp.ne.s32.totalorder %s124, %s140
    %p142 = scmp.eq.s32.totalorder %s18, 0
    %p143 = por %p141, %p142
    %s144 = ssub.s32 %s19, %s31
    %s145 = ssub.s32 %s20, %s27
    %s146 = sor.u32 %s144, %s145
    %p147 = scmp.eq.s32.totalorder %s146, 0
    %s149 = sadd.s32 %s148, 1
    %s150 = scalar_select %p147, %s148, %s149
    %p153 = pneg %p147
    %p154 = scmp.eq.s32.totalorder %s12, 1
    %p155 = por %p153, %p154
    %p156 = scmp.ne.s32.totalorder %s148, %s151
    %p157 = scmp.eq.s32.totalorder %s12, 0
    %p158 = por %p156, %p157
    %p159 = scmp.ne.s32.totalorder %s148, %s151
    %p160 = scmp.eq.s32.totalorder %s17, 1
    %p161 = por %p159, %p160
    %p162 = scmp.ne.s32.totalorder %s151, %s152
    %p163 = scmp.eq.s32.totalorder %s17, 0
    %p164 = por %p162, %p163
    %p165 = scmp.ne.s32.totalorder %s151, %s152
    %p166 = scmp.eq.s32.totalorder %s18, 1
    %p167 = por %p165, %p166
    %p169 = scmp.ne.s32.totalorder %s152, %s168
    %p170 = scmp.eq.s32.totalorder %s18, 0
    %p171 = por %p169, %p170
    %s172 = ssub.s32 %s19, %s31
    %s173 = ssub.s32 %s20, %s27
    %s174 = sor.u32 %s172, %s173
    %p175 = scmp.eq.s32.totalorder %s174, 0
    %s177 = sadd.s32 %s176, 1
    %s178 = scalar_select %p175, %s176, %s177
    %p181 = pneg %p175
    %p182 = scmp.eq.s32.totalorder %s12, 1
    %p183 = por %p181, %p182
    %p184 = scmp.ne.s32.totalorder %s176, %s179
    %p185 = scmp.eq.s32.totalorder %s12, 0
    %p186 = por %p184, %p185
    %p187 = scmp.ne.s32.totalorder %s176, %s179
    %p188 = scmp.eq.s32.totalorder %s17, 1
    %p189 = por %p187, %p188
    %p190 = scmp.ne.s32.totalorder %s179, %s180
    %p191 = scmp.eq.s32.totalorder %s17, 0
    %p192 = por %p190, %p191
    %p193 = scmp.ne.s32.totalorder %s179, %s180
    %p194 = scmp.eq.s32.totalorder %s18, 1
    %p195 = por %p193, %p194
    %p197 = scmp.ne.s32.totalorder %s180, %s196
    %p198 = scmp.eq.s32.totalorder %s18, 0
    %p199 = por %p197, %p198
    %p200 = scmp.le.s32.totalorder 1, %s12
    %p201 = scmp.lt.s32.totalorder %s12, 3
    %p202 = pnand %p200, %p201
    %p203 = pneg %p202
    // Predicated region
    $region9: #{dagnet_multibox_loss.1} parent=5 // pred_check
      _
    $region10: #{dagnet_multibox_loss.1} parent=5 // pred_check_branch
      %205 = sbr.rel (%p202) target = $region12
    $region11: #{dagnet_multibox_loss.1} parent=5 // pred_region
      %s206 = ssub.s32 %s12, 1
    $region12: #{dagnet_multibox_loss.1} parent=5 // pred_fallthru
      _
    %p207 = scmp.lt.s32.totalorder %s12, 2
    // Predicated region
    $region13: #{dagnet_multibox_loss.1} parent=5 // pred_check
      %p208 = pneg %p207
    $region14: #{dagnet_multibox_loss.1} parent=5 // pred_check_branch
      %210 = sbr.rel (%p208) target = $region16
    $region15: #{dagnet_multibox_loss.1} parent=5 // pred_region
      // Predicated region
      $region17: #{dagnet_multibox_loss.1} parent=15 // pred_check
        %p211 = pneg %p46
      $region18: #{dagnet_multibox_loss.1} parent=15 // pred_check_branch
        %213 = sbr.rel (%p211) target = $region20
      $region19: #{dagnet_multibox_loss.1} parent=15 // pred_region
        %s214 = smul.u32 128, %s20
        %p215 = scmp.lt.s32.totalorder %s19, 1
        %s216 = scalar_select %p215, %s19, 1
        %p217 = scmp.lt.s32.totalorder %s214, 127
        %s218 = scalar_select %p217, %s214, 127
        %s219 = smul.addr %s216, 128
        %s220 = sadd.s32 %s218, %s219
        %s221 = smul.addr %s220, 8
        %s222 = scalar_lea.vmem %s0, %s221
        %s223 = smul.u32 128, %s20
      $region20: #{dagnet_multibox_loss.1} parent=15 // pred_fallthru
        _
      // Predicated region
      $region21: #{dagnet_multibox_loss.1} parent=15 // pred_check
        %p224 = pneg %p74
      $region22: #{dagnet_multibox_loss.1} parent=15 // pred_check_branch
        %226 = sbr.rel (%p224) target = $region24
      $region23: #{dagnet_multibox_loss.1} parent=15 // pred_region
        %s227 = smul.u32 128, %s20
        %p228 = scmp.lt.s32.totalorder %s19, 1
        %s229 = scalar_select %p228, %s19, 1
        %p230 = scmp.lt.s32.totalorder %s227, 127
        %s231 = scalar_select %p230, %s227, 127
        %s232 = smul.addr %s229, 128
        %s233 = sadd.s32 %s231, %s232
        %s234 = smul.addr %s233, 8
        %s235 = scalar_lea.vmem %s1, %s234
        %s236 = smul.u32 128, %s20
      $region24: #{dagnet_multibox_loss.1} parent=15 // pred_fallthru
        _
      // Predicated region
      $region25: #{dagnet_multibox_loss.1} parent=15 // pred_check
        %p237 = pneg %p102
      $region26: #{dagnet_multibox_loss.1} parent=15 // pred_check_branch
        %239 = sbr.rel (%p237) target = $region28
      $region27: #{dagnet_multibox_loss.1} parent=15 // pred_region
        %s240 = smul.u32 128, %s20
        %p241 = scmp.lt.s32.totalorder %s19, 1
        %s242 = scalar_select %p241, %s19, 1
        %p243 = scmp.lt.s32.totalorder %s240, 127
        %s244 = scalar_select %p243, %s240, 127
        %s245 = smul.addr %s242, 128
        %s246 = sadd.s32 %s244, %s245
        %s247 = smul.addr %s246, 8
        %s248 = scalar_lea.vmem %s2, %s247
        %s249 = smul.u32 128, %s20
      $region28: #{dagnet_multibox_loss.1} parent=15 // pred_fallthru
        _
      // Predicated region
      $region29: #{dagnet_multibox_loss.1} parent=15 // pred_check
        %p250 = pneg %p130
      $region30: #{dagnet_multibox_loss.1} parent=15 // pred_check_branch
        %252 = sbr.rel (%p250) target = $region32
      $region31: #{dagnet_multibox_loss.1} parent=15 // pred_region
        %s253 = smul.u32 128, %s20
        %p254 = scmp.lt.s32.totalorder %s19, 1
        %s255 = scalar_select %p254, %s19, 1
        %p256 = scmp.lt.s32.totalorder %s253, 127
        %s257 = scalar_select %p256, %s253, 127
        %s258 = smul.addr %s255, 128
        %s259 = sadd.s32 %s257, %s258
        %s260 = smul.addr %s259, 8
        %s261 = scalar_lea.vmem %s3, %s260
        %s262 = smul.u32 128, %s20
      $region32: #{dagnet_multibox_loss.1} parent=15 // pred_fallthru
        _
    $region16: #{dagnet_multibox_loss.1} parent=5 // pred_fallthru
      _
    %p263 = scmp.le.s32.totalorder 1, %s12
    %p264 = scmp.lt.s32.totalorder %s12, 3
    %p265 = pnand %p263, %p264
    %p266 = pneg %p265
    // Predicated region
    $region33: #{dagnet_multibox_loss.1} parent=5 // pred_check
      _
    $region34: #{dagnet_multibox_loss.1} parent=5 // pred_check_branch
      %268 = sbr.rel (%p265) target = $region36
    $region35: #{dagnet_multibox_loss.1} parent=5 // pred_region
      %s269 = ssub.s32 %s12, 1
      %s270 = smul.u32 128, %s22
      %p271 = scmp.lt.s32.totalorder %s21, 1
      %s272 = scalar_select %p271, %s21, 1
      %p273 = scmp.lt.s32.totalorder %s270, 127
      %s274 = scalar_select %p273, %s270, 127
      %s275 = smul.addr %s272, 128
      %s276 = sadd.s32 %s274, %s275
      %s277 = smul.addr %s276, 8
      %s278 = scalar_lea.vmem %s0, %s277
      %p279 = pneg %p52
      %p280 = pneg %p49
      %s281 = smul.u32 128, %s22
      %p282 = scmp.lt.s32.totalorder %s21, 1
      %s283 = scalar_select %p282, %s21, 1
      %p284 = scmp.lt.s32.totalorder %s281, 127
      %s285 = scalar_select %p284, %s281, 127
      %s286 = smul.addr %s283, 128
      %s287 = sadd.s32 %s285, %s286
      %s288 = smul.addr %s287, 8
      %s289 = scalar_lea.vmem %s1, %s288
      %p290 = pneg %p80
      %p291 = pneg %p77
      %s292 = smul.u32 128, %s22
      %p293 = scmp.lt.s32.totalorder %s21, 1
      %s294 = scalar_select %p293, %s21, 1
      %p295 = scmp.lt.s32.totalorder %s292, 127
      %s296 = scalar_select %p295, %s292, 127
      %s297 = smul.addr %s294, 128
      %s298 = sadd.s32 %s296, %s297
      %s299 = smul.addr %s298, 8
      %s300 = scalar_lea.vmem %s2, %s299
      %p301 = pneg %p108
      %p302 = pneg %p105
      %s303 = smul.u32 128, %s22
      %p304 = scmp.lt.s32.totalorder %s21, 1
      %s305 = scalar_select %p304, %s21, 1
      %p306 = scmp.lt.s32.totalorder %s303, 127
      %s307 = scalar_select %p306, %s303, 127
      %s308 = smul.addr %s305, 128
      %s309 = sadd.s32 %s307, %s308
      %s310 = smul.addr %s309, 8
      %s311 = scalar_lea.vmem %s3, %s310
      %p312 = pneg %p136
      %p313 = pneg %p133
      %p314 = pneg %p164
      %p315 = pneg %p161
      %s316 = smul.u32 128, %s22
      %p317 = scmp.lt.s32.totalorder %s21, 1
      %s318 = scalar_select %p317, %s21, 1
      %p319 = scmp.lt.s32.totalorder %s316, 127
      %s320 = scalar_select %p319, %s316, 127
      %s321 = smul.addr %s318, 128
      %s322 = sadd.s32 %s320, %s321
      %s323 = smul.addr %s322, 8
      %s324 = scalar_lea.vmem %s4, %s323
      %p325 = pneg %p192
      %p326 = pneg %p189
      %p327 = scmp.lt.s32.totalorder %s21, 1
      %s328 = scalar_select %p327, %s21, 1
      %p329 = scmp.lt.s32.totalorder %s22, 0
      %s330 = scalar_select %p329, %s22, 0
      %s331 = sadd.s32 %s330, %s328
      %s332 = scalar_lea.vmem %s5, %s331
      %s333 = smul.u32 128, %s22
      %p334 = scmp.lt.s32.totalorder %s21, 1
      %s335 = scalar_select %p334, %s21, 1
      %p336 = scmp.lt.s32.totalorder %s333, 127
      %s337 = scalar_select %p336, %s333, 127
      %s338 = smul.addr %s335, 128
      %s339 = sadd.s32 %s337, %s338
      %s340 = smul.addr %s339, 8
      %s341 = scalar_lea.vmem %s0, %s340
      %s342 = smul.u32 128, %s22
      %s343 = smul.u32 128, %s22
      %p344 = scmp.lt.s32.totalorder %s21, 1
      %s345 = scalar_select %p344, %s21, 1
      %p346 = scmp.lt.s32.totalorder %s343, 127
      %s347 = scalar_select %p346, %s343, 127
      %s348 = smul.addr %s345, 128
      %s349 = sadd.s32 %s347, %s348
      %s350 = smul.addr %s349, 8
      %s351 = scalar_lea.vmem %s1, %s350
      %s352 = smul.u32 128, %s22
      %s353 = smul.u32 128, %s22
      %p354 = scmp.lt.s32.totalorder %s21, 1
      %s355 = scalar_select %p354, %s21, 1
      %p356 = scmp.lt.s32.totalorder %s353, 127
      %s357 = scalar_select %p356, %s353, 127
      %s358 = smul.addr %s355, 128
      %s359 = sadd.s32 %s357, %s358
      %s360 = smul.addr %s359, 8
      %s361 = scalar_lea.vmem %s2, %s360
      %s362 = smul.u32 128, %s22
      %s363 = smul.u32 128, %s22
      %p364 = scmp.lt.s32.totalorder %s21, 1
      %s365 = scalar_select %p364, %s21, 1
      %p366 = scmp.lt.s32.totalorder %s363, 127
      %s367 = scalar_select %p366, %s363, 127
      %s368 = smul.addr %s365, 128
      %s369 = sadd.s32 %s367, %s368
      %s370 = smul.addr %s369, 8
      %s371 = scalar_lea.vmem %s3, %s370
      %s372 = smul.u32 128, %s22
      %s373 = smul.u32 128, %s22
      %p374 = scmp.lt.s32.totalorder %s21, 1
      %s375 = scalar_select %p374, %s21, 1
      %p376 = scmp.lt.s32.totalorder %s373, 127
      %s377 = scalar_select %p376, %s373, 127
      %s378 = smul.addr %s375, 128
      %s379 = sadd.s32 %s377, %s378
      %s380 = smul.addr %s379, 8
      %s381 = scalar_lea.vmem %s4, %s380
      %s382 = smul.u32 128, %s22
      %p383 = scmp.lt.s32.totalorder %s21, 1
      %s384 = scalar_select %p383, %s21, 1
      %p385 = scmp.lt.s32.totalorder %s22, 0
      %s386 = scalar_select %p385, %s22, 0
      %s387 = sadd.s32 %s386, %s384
      %s388 = scalar_lea.vmem %s5, %s387
      %v389 = vld [vmem:[%s371] sm:$0xff]
      %v390 = vld [vmem:[%s371 + $0x8] sm:$0xff]
      %v391 = vld [vmem:[%s371 + $0x10] sm:$0xff]
      %v392 = vld [vmem:[%s371 + $0x18] sm:$0xff]
      %v393 = vld [vmem:[%s371 + $0x20] sm:$0xff]
      %v394 = vld [vmem:[%s371 + $0x28] sm:$0xff]
      %v395 = vld [vmem:[%s371 + $0x30] sm:$0xff]
      %v396 = vld [vmem:[%s371 + $0x38] sm:$0xff]
      %v397 = vld [vmem:[%s371 + $0x40] sm:$0xff]
      %v398 = vld [vmem:[%s371 + $0x48] sm:$0xff]
      %v399 = vld [vmem:[%s371 + $0x50] sm:$0xff]
      %v400 = vld [vmem:[%s371 + $0x58] sm:$0xff]
      %v401 = vld [vmem:[%s371 + $0x60] sm:$0xff]
      %v402 = vld [vmem:[%s371 + $0x68] sm:$0xff]
      %v403 = vld [vmem:[%s371 + $0x70] sm:$0xff]
      %v404 = vld [vmem:[%s371 + $0x78] sm:$0xff]
      %v405 = vld [vmem:[%s371 + $0x80] sm:$0xff]
      %v406 = vld [vmem:[%s371 + $0x88] sm:$0xff]
      %v407 = vld [vmem:[%s371 + $0x90] sm:$0xff]
      %v408 = vld [vmem:[%s371 + $0x98] sm:$0xff]
      %v409 = vld [vmem:[%s371 + $0xa0] sm:$0xff]
      %v410 = vld [vmem:[%s371 + $0xa8] sm:$0xff]
      %v411 = vld [vmem:[%s371 + $0xb0] sm:$0xff]
      %v412 = vld [vmem:[%s371 + $0xb8] sm:$0xff]
      %v413 = vld [vmem:[%s371 + $0xc0] sm:$0xff]
      %v414 = vld [vmem:[%s371 + $0xc8] sm:$0xff]
      %v415 = vld [vmem:[%s371 + $0xd0] sm:$0xff]
      %v416 = vld [vmem:[%s371 + $0xd8] sm:$0xff]
      %v417 = vld [vmem:[%s371 + $0xe0] sm:$0xff]
      %v418 = vld [vmem:[%s371 + $0xe8] sm:$0xff]
      %v419 = vld [vmem:[%s371 + $0xf0] sm:$0xff]
      %v420 = vld [vmem:[%s371 + $0xf8] sm:$0xff]
      %v421 = vld [vmem:[%s371 + $0x100] sm:$0xff]
      %v422 = vld [vmem:[%s371 + $0x108] sm:$0xff]
      %v423 = vld [vmem:[%s371 + $0x110] sm:$0xff]
      %v424 = vld [vmem:[%s371 + $0x118] sm:$0xff]
      %v425 = vld [vmem:[%s371 + $0x120] sm:$0xff]
      %v426 = vld [vmem:[%s371 + $0x128] sm:$0xff]
      %v427 = vld [vmem:[%s371 + $0x130] sm:$0xff]
      %v428 = vld [vmem:[%s371 + $0x138] sm:$0xff]
      %v429 = vld [vmem:[%s371 + $0x140] sm:$0xff]
      %v430 = vld [vmem:[%s371 + $0x148] sm:$0xff]
      %v431 = vld [vmem:[%s371 + $0x150] sm:$0xff]
      %v432 = vld [vmem:[%s371 + $0x158] sm:$0xff]
      %v433 = vld [vmem:[%s371 + $0x160] sm:$0xff]
      %v434 = vld [vmem:[%s371 + $0x168] sm:$0xff]
      %v435 = vld [vmem:[%s371 + $0x170] sm:$0xff]
      %v436 = vld [vmem:[%s371 + $0x178] sm:$0xff]
      %v437 = vld [vmem:[%s371 + $0x180] sm:$0xff]
      %v438 = vld [vmem:[%s371 + $0x188] sm:$0xff]
      %v439 = vld [vmem:[%s371 + $0x190] sm:$0xff]
      %v440 = vld [vmem:[%s371 + $0x198] sm:$0xff]
      %v441 = vld [vmem:[%s371 + $0x1a0] sm:$0xff]
      %v442 = vld [vmem:[%s371 + $0x1a8] sm:$0xff]
      %v443 = vld [vmem:[%s371 + $0x1b0] sm:$0xff]
      %v444 = vld [vmem:[%s371 + $0x1b8] sm:$0xff]
      %v445 = vld [vmem:[%s371 + $0x1c0] sm:$0xff]
      %v446 = vld [vmem:[%s371 + $0x1c8] sm:$0xff]
      %v447 = vld [vmem:[%s371 + $0x1d0] sm:$0xff]
      %v448 = vld [vmem:[%s371 + $0x1d8] sm:$0xff]
      %v449 = vld [vmem:[%s371 + $0x1e0] sm:$0xff]
      %v450 = vld [vmem:[%s371 + $0x1e8] sm:$0xff]
      %v451 = vld [vmem:[%s371 + $0x1f0] sm:$0xff]
      %v452 = vld [vmem:[%s371 + $0x1f8] sm:$0xff]
      %v453 = vld [vmem:[%s371 + $0x200] sm:$0xff]
      %v454 = vld [vmem:[%s371 + $0x208] sm:$0xff]
      %v455 = vld [vmem:[%s371 + $0x210] sm:$0xff]
      %v456 = vld [vmem:[%s371 + $0x218] sm:$0xff]
      %v457 = vld [vmem:[%s371 + $0x220] sm:$0xff]
      %v458 = vld [vmem:[%s371 + $0x228] sm:$0xff]
      %v459 = vld [vmem:[%s371 + $0x230] sm:$0xff]
      %v460 = vld [vmem:[%s371 + $0x238] sm:$0xff]
      %v461 = vld [vmem:[%s371 + $0x240] sm:$0xff]
      %v462 = vld [vmem:[%s371 + $0x248] sm:$0xff]
      %v463 = vld [vmem:[%s371 + $0x250] sm:$0xff]
      %v464 = vld [vmem:[%s371 + $0x258] sm:$0xff]
      %v465 = vld [vmem:[%s371 + $0x260] sm:$0xff]
      %v466 = vld [vmem:[%s371 + $0x268] sm:$0xff]
      %v467 = vld [vmem:[%s371 + $0x270] sm:$0xff]
      %v468 = vld [vmem:[%s371 + $0x278] sm:$0xff]
      %v469 = vld [vmem:[%s371 + $0x280] sm:$0xff]
      %v470 = vld [vmem:[%s371 + $0x288] sm:$0xff]
      %v471 = vld [vmem:[%s371 + $0x290] sm:$0xff]
      %v472 = vld [vmem:[%s371 + $0x298] sm:$0xff]
      %v473 = vld [vmem:[%s371 + $0x2a0] sm:$0xff]
      %v474 = vld [vmem:[%s371 + $0x2a8] sm:$0xff]
      %v475 = vld [vmem:[%s371 + $0x2b0] sm:$0xff]
      %v476 = vld [vmem:[%s371 + $0x2b8] sm:$0xff]
      %v477 = vld [vmem:[%s371 + $0x2c0] sm:$0xff]
      %v478 = vld [vmem:[%s371 + $0x2c8] sm:$0xff]
      %v479 = vld [vmem:[%s371 + $0x2d0] sm:$0xff]
      %v480 = vld [vmem:[%s371 + $0x2d8] sm:$0xff]
      %v481 = vld [vmem:[%s371 + $0x2e0] sm:$0xff]
      %v482 = vld [vmem:[%s371 + $0x2e8] sm:$0xff]
      %v483 = vld [vmem:[%s371 + $0x2f0] sm:$0xff]
      %v484 = vld [vmem:[%s371 + $0x2f8] sm:$0xff]
      %v485 = vld [vmem:[%s371 + $0x300] sm:$0xff]
      %v486 = vld [vmem:[%s371 + $0x308] sm:$0xff]
      %v487 = vld [vmem:[%s371 + $0x310] sm:$0xff]
      %v488 = vld [vmem:[%s371 + $0x318] sm:$0xff]
      %v489 = vld [vmem:[%s371 + $0x320] sm:$0xff]
      %v490 = vld [vmem:[%s371 + $0x328] sm:$0xff]
      %v491 = vld [vmem:[%s371 + $0x330] sm:$0xff]
      %v492 = vld [vmem:[%s371 + $0x338] sm:$0xff]
      %v493 = vld [vmem:[%s371 + $0x340] sm:$0xff]
      %v494 = vld [vmem:[%s371 + $0x348] sm:$0xff]
      %v495 = vld [vmem:[%s371 + $0x350] sm:$0xff]
      %v496 = vld [vmem:[%s371 + $0x358] sm:$0xff]
      %v497 = vld [vmem:[%s371 + $0x360] sm:$0xff]
      %v498 = vld [vmem:[%s371 + $0x368] sm:$0xff]
      %v499 = vld [vmem:[%s371 + $0x370] sm:$0xff]
      %v500 = vld [vmem:[%s371 + $0x378] sm:$0xff]
      %v501 = vld [vmem:[%s371 + $0x380] sm:$0xff]
      %v502 = vld [vmem:[%s371 + $0x388] sm:$0xff]
      %v503 = vld [vmem:[%s371 + $0x390] sm:$0xff]
      %v504 = vld [vmem:[%s371 + $0x398] sm:$0xff]
      %v505 = vld [vmem:[%s371 + $0x3a0] sm:$0xff]
      %v506 = vld [vmem:[%s371 + $0x3a8] sm:$0xff]
      %v507 = vld [vmem:[%s371 + $0x3b0] sm:$0xff]
      %v508 = vld [vmem:[%s371 + $0x3b8] sm:$0xff]
      %v509 = vld [vmem:[%s371 + $0x3c0] sm:$0xff]
      %v510 = vld [vmem:[%s371 + $0x3c8] sm:$0xff]
      %v511 = vld [vmem:[%s371 + $0x3d0] sm:$0xff]
      %v512 = vld [vmem:[%s371 + $0x3d8] sm:$0xff]
      %v513 = vld [vmem:[%s371 + $0x3e0] sm:$0xff]
      %v514 = vld [vmem:[%s371 + $0x3e8] sm:$0xff]
      %v515 = vld [vmem:[%s371 + $0x3f0] sm:$0xff]
      %v516 = vld [vmem:[%s371 + $0x3f8] sm:$0xff]
      %vm517 = vcmp.gt.s32.totalorder %v389, 0
      %vm518 = vcmp.gt.s32.totalorder %v390, 0
      %vm519 = vcmp.gt.s32.totalorder %v391, 0
      %vm520 = vcmp.gt.s32.totalorder %v392, 0
      %vm521 = vcmp.gt.s32.totalorder %v393, 0
      %vm522 = vcmp.gt.s32.totalorder %v394, 0
      %vm523 = vcmp.gt.s32.totalorder %v395, 0
      %vm524 = vcmp.gt.s32.totalorder %v396, 0
      %vm525 = vcmp.gt.s32.totalorder %v397, 0
      %vm526 = vcmp.gt.s32.totalorder %v398, 0
      %vm527 = vcmp.gt.s32.totalorder %v399, 0
      %vm528 = vcmp.gt.s32.totalorder %v400, 0
      %vm529 = vcmp.gt.s32.totalorder %v401, 0
      %vm530 = vcmp.gt.s32.totalorder %v402, 0
      %vm531 = vcmp.gt.s32.totalorder %v403, 0
      %vm532 = vcmp.gt.s32.totalorder %v404, 0
      %vm533 = vcmp.gt.s32.totalorder %v405, 0
      %vm534 = vcmp.gt.s32.totalorder %v406, 0
      %vm535 = vcmp.gt.s32.totalorder %v407, 0
      %vm536 = vcmp.gt.s32.totalorder %v408, 0
      %vm537 = vcmp.gt.s32.totalorder %v409, 0
      %vm538 = vcmp.gt.s32.totalorder %v410, 0
      %vm539 = vcmp.gt.s32.totalorder %v411, 0
      %vm540 = vcmp.gt.s32.totalorder %v412, 0
      %vm541 = vcmp.gt.s32.totalorder %v413, 0
      %vm542 = vcmp.gt.s32.totalorder %v414, 0
      %vm543 = vcmp.gt.s32.totalorder %v415, 0
      %vm544 = vcmp.gt.s32.totalorder %v416, 0
      %vm545 = vcmp.gt.s32.totalorder %v417, 0
      %vm546 = vcmp.gt.s32.totalorder %v418, 0
      %vm547 = vcmp.gt.s32.totalorder %v419, 0
      %vm548 = vcmp.gt.s32.totalorder %v420, 0
      %vm549 = vcmp.gt.s32.totalorder %v421, 0
      %vm550 = vcmp.gt.s32.totalorder %v422, 0
      %vm551 = vcmp.gt.s32.totalorder %v423, 0
      %vm552 = vcmp.gt.s32.totalorder %v424, 0
      %vm553 = vcmp.gt.s32.totalorder %v425, 0
      %vm554 = vcmp.gt.s32.totalorder %v426, 0
      %vm555 = vcmp.gt.s32.totalorder %v427, 0
      %vm556 = vcmp.gt.s32.totalorder %v428, 0
      %vm557 = vcmp.gt.s32.totalorder %v429, 0
      %vm558 = vcmp.gt.s32.totalorder %v430, 0
      %vm559 = vcmp.gt.s32.totalorder %v431, 0
      %vm560 = vcmp.gt.s32.totalorder %v432, 0
      %vm561 = vcmp.gt.s32.totalorder %v433, 0
      %vm562 = vcmp.gt.s32.totalorder %v434, 0
      %vm563 = vcmp.gt.s32.totalorder %v435, 0
      %vm564 = vcmp.gt.s32.totalorder %v436, 0
      %vm565 = vcmp.gt.s32.totalorder %v437, 0
      %vm566 = vcmp.gt.s32.totalorder %v438, 0
      %vm567 = vcmp.gt.s32.totalorder %v439, 0
      %vm568 = vcmp.gt.s32.totalorder %v440, 0
      %vm569 = vcmp.gt.s32.totalorder %v441, 0
      %vm570 = vcmp.gt.s32.totalorder %v442, 0
      %vm571 = vcmp.gt.s32.totalorder %v443, 0
      %vm572 = vcmp.gt.s32.totalorder %v444, 0
      %vm573 = vcmp.gt.s32.totalorder %v445, 0
      %vm574 = vcmp.gt.s32.totalorder %v446, 0
      %vm575 = vcmp.gt.s32.totalorder %v447, 0
      %vm576 = vcmp.gt.s32.totalorder %v448, 0
      %vm577 = vcmp.gt.s32.totalorder %v449, 0
      %vm578 = vcmp.gt.s32.totalorder %v450, 0
      %vm579 = vcmp.gt.s32.totalorder %v451, 0
      %vm580 = vcmp.gt.s32.totalorder %v452, 0
      %vm581 = vcmp.gt.s32.totalorder %v453, 0
      %vm582 = vcmp.gt.s32.totalorder %v454, 0
      %vm583 = vcmp.gt.s32.totalorder %v455, 0
      %vm584 = vcmp.gt.s32.totalorder %v456, 0
      %vm585 = vcmp.gt.s32.totalorder %v457, 0
      %vm586 = vcmp.gt.s32.totalorder %v458, 0
      %vm587 = vcmp.gt.s32.totalorder %v459, 0
      %vm588 = vcmp.gt.s32.totalorder %v460, 0
      %vm589 = vcmp.gt.s32.totalorder %v461, 0
      %vm590 = vcmp.gt.s32.totalorder %v462, 0
      %vm591 = vcmp.gt.s32.totalorder %v463, 0
      %vm592 = vcmp.gt.s32.totalorder %v464, 0
      %vm593 = vcmp.gt.s32.totalorder %v465, 0
      %vm594 = vcmp.gt.s32.totalorder %v466, 0
      %vm595 = vcmp.gt.s32.totalorder %v467, 0
      %vm596 = vcmp.gt.s32.totalorder %v468, 0
      %vm597 = vcmp.gt.s32.totalorder %v469, 0
      %vm598 = vcmp.gt.s32.totalorder %v470, 0
      %vm599 = vcmp.gt.s32.totalorder %v471, 0
      %vm600 = vcmp.gt.s32.totalorder %v472, 0
      %vm601 = vcmp.gt.s32.totalorder %v473, 0
      %vm602 = vcmp.gt.s32.totalorder %v474, 0
      %vm603 = vcmp.gt.s32.totalorder %v475, 0
      %vm604 = vcmp.gt.s32.totalorder %v476, 0
      %vm605 = vcmp.gt.s32.totalorder %v477, 0
      %vm606 = vcmp.gt.s32.totalorder %v478, 0
      %vm607 = vcmp.gt.s32.totalorder %v479, 0
      %vm608 = vcmp.gt.s32.totalorder %v480, 0
      %vm609 = vcmp.gt.s32.totalorder %v481, 0
      %vm610 = vcmp.gt.s32.totalorder %v482, 0
      %vm611 = vcmp.gt.s32.totalorder %v483, 0
      %vm612 = vcmp.gt.s32.totalorder %v484, 0
      %vm613 = vcmp.gt.s32.totalorder %v485, 0
      %vm614 = vcmp.gt.s32.totalorder %v486, 0
      %vm615 = vcmp.gt.s32.totalorder %v487, 0
      %vm616 = vcmp.gt.s32.totalorder %v488, 0
      %vm617 = vcmp.gt.s32.totalorder %v489, 0
      %vm618 = vcmp.gt.s32.totalorder %v490, 0
      %vm619 = vcmp.gt.s32.totalorder %v491, 0
      %vm620 = vcmp.gt.s32.totalorder %v492, 0
      %vm621 = vcmp.gt.s32.totalorder %v493, 0
      %vm622 = vcmp.gt.s32.totalorder %v494, 0
      %vm623 = vcmp.gt.s32.totalorder %v495, 0
      %vm624 = vcmp.gt.s32.totalorder %v496, 0
      %vm625 = vcmp.gt.s32.totalorder %v497, 0
      %vm626 = vcmp.gt.s32.totalorder %v498, 0
      %vm627 = vcmp.gt.s32.totalorder %v499, 0
      %vm628 = vcmp.gt.s32.totalorder %v500, 0
      %vm629 = vcmp.gt.s32.totalorder %v501, 0
      %vm630 = vcmp.gt.s32.totalorder %v502, 0
      %vm631 = vcmp.gt.s32.totalorder %v503, 0
      %vm632 = vcmp.gt.s32.totalorder %v504, 0
      %vm633 = vcmp.gt.s32.totalorder %v505, 0
      %vm634 = vcmp.gt.s32.totalorder %v506, 0
      %vm635 = vcmp.gt.s32.totalorder %v507, 0
      %vm636 = vcmp.gt.s32.totalorder %v508, 0
      %vm637 = vcmp.gt.s32.totalorder %v509, 0
      %vm638 = vcmp.gt.s32.totalorder %v510, 0
      %vm639 = vcmp.gt.s32.totalorder %v511, 0
      %vm640 = vcmp.gt.s32.totalorder %v512, 0
      %vm641 = vcmp.gt.s32.totalorder %v513, 0
      %vm642 = vcmp.gt.s32.totalorder %v514, 0
      %vm643 = vcmp.gt.s32.totalorder %v515, 0
      %vm644 = vcmp.gt.s32.totalorder %v516, 0
      %v645 = vld [vmem:[%s341] sm:$0xff]
      %v646 = vld [vmem:[%s341 + $0x8] sm:$0xff]
      %v647 = vld [vmem:[%s341 + $0x10] sm:$0xff]
      %v648 = vld [vmem:[%s341 + $0x18] sm:$0xff]
      %v649 = vld [vmem:[%s341 + $0x20] sm:$0xff]
      %v650 = vld [vmem:[%s341 + $0x28] sm:$0xff]
      %v651 = vld [vmem:[%s341 + $0x30] sm:$0xff]
      %v652 = vld [vmem:[%s341 + $0x38] sm:$0xff]
      %v653 = vld [vmem:[%s341 + $0x40] sm:$0xff]
      %v654 = vld [vmem:[%s341 + $0x48] sm:$0xff]
      %v655 = vld [vmem:[%s341 + $0x50] sm:$0xff]
      %v656 = vld [vmem:[%s341 + $0x58] sm:$0xff]
      %v657 = vld [vmem:[%s341 + $0x60] sm:$0xff]
      %v658 = vld [vmem:[%s341 + $0x68] sm:$0xff]
      %v659 = vld [vmem:[%s341 + $0x70] sm:$0xff]
      %v660 = vld [vmem:[%s341 + $0x78] sm:$0xff]
      %v661 = vld [vmem:[%s341 + $0x80] sm:$0xff]
      %v662 = vld [vmem:[%s341 + $0x88] sm:$0xff]
      %v663 = vld [vmem:[%s341 + $0x90] sm:$0xff]
      %v664 = vld [vmem:[%s341 + $0x98] sm:$0xff]
      %v665 = vld [vmem:[%s341 + $0xa0] sm:$0xff]
      %v666 = vld [vmem:[%s341 + $0xa8] sm:$0xff]
      %v667 = vld [vmem:[%s341 + $0xb0] sm:$0xff]
      %v668 = vld [vmem:[%s341 + $0xb8] sm:$0xff]
      %v669 = vld [vmem:[%s341 + $0xc0] sm:$0xff]
      %v670 = vld [vmem:[%s341 + $0xc8] sm:$0xff]
      %v671 = vld [vmem:[%s341 + $0xd0] sm:$0xff]
      %v672 = vld [vmem:[%s341 + $0xd8] sm:$0xff]
      %v673 = vld [vmem:[%s341 + $0xe0] sm:$0xff]
      %v674 = vld [vmem:[%s341 + $0xe8] sm:$0xff]
      %v675 = vld [vmem:[%s341 + $0xf0] sm:$0xff]
      %v676 = vld [vmem:[%s341 + $0xf8] sm:$0xff]
      %v677 = vld [vmem:[%s341 + $0x100] sm:$0xff]
      %v678 = vld [vmem:[%s341 + $0x108] sm:$0xff]
      %v679 = vld [vmem:[%s341 + $0x110] sm:$0xff]
      %v680 = vld [vmem:[%s341 + $0x118] sm:$0xff]
      %v681 = vld [vmem:[%s341 + $0x120] sm:$0xff]
      %v682 = vld [vmem:[%s341 + $0x128] sm:$0xff]
      %v683 = vld [vmem:[%s341 + $0x130] sm:$0xff]
      %v684 = vld [vmem:[%s341 + $0x138] sm:$0xff]
      %v685 = vld [vmem:[%s341 + $0x140] sm:$0xff]
      %v686 = vld [vmem:[%s341 + $0x148] sm:$0xff]
      %v687 = vld [vmem:[%s341 + $0x150] sm:$0xff]
      %v688 = vld [vmem:[%s341 + $0x158] sm:$0xff]
      %v689 = vld [vmem:[%s341 + $0x160] sm:$0xff]
      %v690 = vld [vmem:[%s341 + $0x168] sm:$0xff]
      %v691 = vld [vmem:[%s341 + $0x170] sm:$0xff]
      %v692 = vld [vmem:[%s341 + $0x178] sm:$0xff]
      %v693 = vld [vmem:[%s341 + $0x180] sm:$0xff]
      %v694 = vld [vmem:[%s341 + $0x188] sm:$0xff]
      %v695 = vld [vmem:[%s341 + $0x190] sm:$0xff]
      %v696 = vld [vmem:[%s341 + $0x198] sm:$0xff]
      %v697 = vld [vmem:[%s341 + $0x1a0] sm:$0xff]
      %v698 = vld [vmem:[%s341 + $0x1a8] sm:$0xff]
      %v699 = vld [vmem:[%s341 + $0x1b0] sm:$0xff]
      %v700 = vld [vmem:[%s341 + $0x1b8] sm:$0xff]
      %v701 = vld [vmem:[%s341 + $0x1c0] sm:$0xff]
      %v702 = vld [vmem:[%s341 + $0x1c8] sm:$0xff]
      %v703 = vld [vmem:[%s341 + $0x1d0] sm:$0xff]
      %v704 = vld [vmem:[%s341 + $0x1d8] sm:$0xff]
      %v705 = vld [vmem:[%s341 + $0x1e0] sm:$0xff]
      %v706 = vld [vmem:[%s341 + $0x1e8] sm:$0xff]
      %v707 = vld [vmem:[%s341 + $0x1f0] sm:$0xff]
      %v708 = vld [vmem:[%s341 + $0x1f8] sm:$0xff]
      %v709 = vld [vmem:[%s341 + $0x200] sm:$0xff]
      %v710 = vld [vmem:[%s341 + $0x208] sm:$0xff]
      %v711 = vld [vmem:[%s341 + $0x210] sm:$0xff]
      %v712 = vld [vmem:[%s341 + $0x218] sm:$0xff]
      %v713 = vld [vmem:[%s341 + $0x220] sm:$0xff]
      %v714 = vld [vmem:[%s341 + $0x228] sm:$0xff]
      %v715 = vld [vmem:[%s341 + $0x230] sm:$0xff]
      %v716 = vld [vmem:[%s341 + $0x238] sm:$0xff]
      %v717 = vld [vmem:[%s341 + $0x240] sm:$0xff]
      %v718 = vld [vmem:[%s341 + $0x248] sm:$0xff]
      %v719 = vld [vmem:[%s341 + $0x250] sm:$0xff]
      %v720 = vld [vmem:[%s341 + $0x258] sm:$0xff]
      %v721 = vld [vmem:[%s341 + $0x260] sm:$0xff]
      %v722 = vld [vmem:[%s341 + $0x268] sm:$0xff]
      %v723 = vld [vmem:[%s341 + $0x270] sm:$0xff]
      %v724 = vld [vmem:[%s341 + $0x278] sm:$0xff]
      %v725 = vld [vmem:[%s341 + $0x280] sm:$0xff]
      %v726 = vld [vmem:[%s341 + $0x288] sm:$0xff]
      %v727 = vld [vmem:[%s341 + $0x290] sm:$0xff]
      %v728 = vld [vmem:[%s341 + $0x298] sm:$0xff]
      %v729 = vld [vmem:[%s341 + $0x2a0] sm:$0xff]
      %v730 = vld [vmem:[%s341 + $0x2a8] sm:$0xff]
      %v731 = vld [vmem:[%s341 + $0x2b0] sm:$0xff]
      %v732 = vld [vmem:[%s341 + $0x2b8] sm:$0xff]
      %v733 = vld [vmem:[%s341 + $0x2c0] sm:$0xff]
      %v734 = vld [vmem:[%s341 + $0x2c8] sm:$0xff]
      %v735 = vld [vmem:[%s341 + $0x2d0] sm:$0xff]
      %v736 = vld [vmem:[%s341 + $0x2d8] sm:$0xff]
      %v737 = vld [vmem:[%s341 + $0x2e0] sm:$0xff]
      %v738 = vld [vmem:[%s341 + $0x2e8] sm:$0xff]
      %v739 = vld [vmem:[%s341 + $0x2f0] sm:$0xff]
      %v740 = vld [vmem:[%s341 + $0x2f8] sm:$0xff]
      %v741 = vld [vmem:[%s341 + $0x300] sm:$0xff]
      %v742 = vld [vmem:[%s341 + $0x308] sm:$0xff]
      %v743 = vld [vmem:[%s341 + $0x310] sm:$0xff]
      %v744 = vld [vmem:[%s341 + $0x318] sm:$0xff]
      %v745 = vld [vmem:[%s341 + $0x320] sm:$0xff]
      %v746 = vld [vmem:[%s341 + $0x328] sm:$0xff]
      %v747 = vld [vmem:[%s341 + $0x330] sm:$0xff]
      %v748 = vld [vmem:[%s341 + $0x338] sm:$0xff]
      %v749 = vld [vmem:[%s341 + $0x340] sm:$0xff]
      %v750 = vld [vmem:[%s341 + $0x348] sm:$0xff]
      %v751 = vld [vmem:[%s341 + $0x350] sm:$0xff]
      %v752 = vld [vmem:[%s341 + $0x358] sm:$0xff]
      %v753 = vld [vmem:[%s341 + $0x360] sm:$0xff]
      %v754 = vld [vmem:[%s341 + $0x368] sm:$0xff]
      %v755 = vld [vmem:[%s341 + $0x370] sm:$0xff]
      %v756 = vld [vmem:[%s341 + $0x378] sm:$0xff]
      %v757 = vld [vmem:[%s341 + $0x380] sm:$0xff]
      %v758 = vld [vmem:[%s341 + $0x388] sm:$0xff]
      %v759 = vld [vmem:[%s341 + $0x390] sm:$0xff]
      %v760 = vld [vmem:[%s341 + $0x398] sm:$0xff]
      %v761 = vld [vmem:[%s341 + $0x3a0] sm:$0xff]
      %v762 = vld [vmem:[%s341 + $0x3a8] sm:$0xff]
      %v763 = vld [vmem:[%s341 + $0x3b0] sm:$0xff]
      %v764 = vld [vmem:[%s341 + $0x3b8] sm:$0xff]
      %v765 = vld [vmem:[%s341 + $0x3c0] sm:$0xff]
      %v766 = vld [vmem:[%s341 + $0x3c8] sm:$0xff]
      %v767 = vld [vmem:[%s341 + $0x3d0] sm:$0xff]
      %v768 = vld [vmem:[%s341 + $0x3d8] sm:$0xff]
      %v769 = vld [vmem:[%s341 + $0x3e0] sm:$0xff]
      %v770 = vld [vmem:[%s341 + $0x3e8] sm:$0xff]
      %v771 = vld [vmem:[%s341 + $0x3f0] sm:$0xff]
      %v772 = vld [vmem:[%s341 + $0x3f8] sm:$0xff]
      %v773 = vld [vmem:[%s351] sm:$0xff]
      %v774 = vld [vmem:[%s351 + $0x8] sm:$0xff]
      %v775 = vld [vmem:[%s351 + $0x10] sm:$0xff]
      %v776 = vld [vmem:[%s351 + $0x18] sm:$0xff]
      %v777 = vld [vmem:[%s351 + $0x20] sm:$0xff]
      %v778 = vld [vmem:[%s351 + $0x28] sm:$0xff]
      %v779 = vld [vmem:[%s351 + $0x30] sm:$0xff]
      %v780 = vld [vmem:[%s351 + $0x38] sm:$0xff]
      %v781 = vld [vmem:[%s351 + $0x40] sm:$0xff]
      %v782 = vld [vmem:[%s351 + $0x48] sm:$0xff]
      %v783 = vld [vmem:[%s351 + $0x50] sm:$0xff]
      %v784 = vld [vmem:[%s351 + $0x58] sm:$0xff]
      %v785 = vld [vmem:[%s351 + $0x60] sm:$0xff]
      %v786 = vld [vmem:[%s351 + $0x68] sm:$0xff]
      %v787 = vld [vmem:[%s351 + $0x70] sm:$0xff]
      %v788 = vld [vmem:[%s351 + $0x78] sm:$0xff]
      %v789 = vld [vmem:[%s351 + $0x80] sm:$0xff]
      %v790 = vld [vmem:[%s351 + $0x88] sm:$0xff]
      %v791 = vld [vmem:[%s351 + $0x90] sm:$0xff]
      %v792 = vld [vmem:[%s351 + $0x98] sm:$0xff]
      %v793 = vld [vmem:[%s351 + $0xa0] sm:$0xff]
      %v794 = vld [vmem:[%s351 + $0xa8] sm:$0xff]
      %v795 = vld [vmem:[%s351 + $0xb0] sm:$0xff]
      %v796 = vld [vmem:[%s351 + $0xb8] sm:$0xff]
      %v797 = vld [vmem:[%s351 + $0xc0] sm:$0xff]
      %v798 = vld [vmem:[%s351 + $0xc8] sm:$0xff]
      %v799 = vld [vmem:[%s351 + $0xd0] sm:$0xff]
      %v800 = vld [vmem:[%s351 + $0xd8] sm:$0xff]
      %v801 = vld [vmem:[%s351 + $0xe0] sm:$0xff]
      %v802 = vld [vmem:[%s351 + $0xe8] sm:$0xff]
      %v803 = vld [vmem:[%s351 + $0xf0] sm:$0xff]
      %v804 = vld [vmem:[%s351 + $0xf8] sm:$0xff]
      %v805 = vld [vmem:[%s351 + $0x100] sm:$0xff]
      %v806 = vld [vmem:[%s351 + $0x108] sm:$0xff]
      %v807 = vld [vmem:[%s351 + $0x110] sm:$0xff]
      %v808 = vld [vmem:[%s351 + $0x118] sm:$0xff]
      %v809 = vld [vmem:[%s351 + $0x120] sm:$0xff]
      %v810 = vld [vmem:[%s351 + $0x128] sm:$0xff]
      %v811 = vld [vmem:[%s351 + $0x130] sm:$0xff]
      %v812 = vld [vmem:[%s351 + $0x138] sm:$0xff]
      %v813 = vld [vmem:[%s351 + $0x140] sm:$0xff]
      %v814 = vld [vmem:[%s351 + $0x148] sm:$0xff]
      %v815 = vld [vmem:[%s351 + $0x150] sm:$0xff]
      %v816 = vld [vmem:[%s351 + $0x158] sm:$0xff]
      %v817 = vld [vmem:[%s351 + $0x160] sm:$0xff]
      %v818 = vld [vmem:[%s351 + $0x168] sm:$0xff]
      %v819 = vld [vmem:[%s351 + $0x170] sm:$0xff]
      %v820 = vld [vmem:[%s351 + $0x178] sm:$0xff]
      %v821 = vld [vmem:[%s351 + $0x180] sm:$0xff]
      %v822 = vld [vmem:[%s351 + $0x188] sm:$0xff]
      %v823 = vld [vmem:[%s351 + $0x190] sm:$0xff]
      %v824 = vld [vmem:[%s351 + $0x198] sm:$0xff]
      %v825 = vld [vmem:[%s351 + $0x1a0] sm:$0xff]
      %v826 = vld [vmem:[%s351 + $0x1a8] sm:$0xff]
      %v827 = vld [vmem:[%s351 + $0x1b0] sm:$0xff]
      %v828 = vld [vmem:[%s351 + $0x1b8] sm:$0xff]
      %v829 = vld [vmem:[%s351 + $0x1c0] sm:$0xff]
      %v830 = vld [vmem:[%s351 + $0x1c8] sm:$0xff]
      %v831 = vld [vmem:[%s351 + $0x1d0] sm:$0xff]
      %v832 = vld [vmem:[%s351 + $0x1d8] sm:$0xff]
      %v833 = vld [vmem:[%s351 + $0x1e0] sm:$0xff]
      %v834 = vld [vmem:[%s351 + $0x1e8] sm:$0xff]
      %v835 = vld [vmem:[%s351 + $0x1f0] sm:$0xff]
      %v836 = vld [vmem:[%s351 + $0x1f8] sm:$0xff]
      %v837 = vld [vmem:[%s351 + $0x200] sm:$0xff]
      %v838 = vld [vmem:[%s351 + $0x208] sm:$0xff]
      %v839 = vld [vmem:[%s351 + $0x210] sm:$0xff]
      %v840 = vld [vmem:[%s351 + $0x218] sm:$0xff]
      %v841 = vld [vmem:[%s351 + $0x220] sm:$0xff]
      %v842 = vld [vmem:[%s351 + $0x228] sm:$0xff]
      %v843 = vld [vmem:[%s351 + $0x230] sm:$0xff]
      %v844 = vld [vmem:[%s351 + $0x238] sm:$0xff]
      %v845 = vld [vmem:[%s351 + $0x240] sm:$0xff]
      %v846 = vld [vmem:[%s351 + $0x248] sm:$0xff]
      %v847 = vld [vmem:[%s351 + $0x250] sm:$0xff]
      %v848 = vld [vmem:[%s351 + $0x258] sm:$0xff]
      %v849 = vld [vmem:[%s351 + $0x260] sm:$0xff]
      %v850 = vld [vmem:[%s351 + $0x268] sm:$0xff]
      %v851 = vld [vmem:[%s351 + $0x270] sm:$0xff]
      %v852 = vld [vmem:[%s351 + $0x278] sm:$0xff]
      %v853 = vld [vmem:[%s351 + $0x280] sm:$0xff]
      %v854 = vld [vmem:[%s351 + $0x288] sm:$0xff]
      %v855 = vld [vmem:[%s351 + $0x290] sm:$0xff]
      %v856 = vld [vmem:[%s351 + $0x298] sm:$0xff]
      %v857 = vld [vmem:[%s351 + $0x2a0] sm:$0xff]
      %v858 = vld [vmem:[%s351 + $0x2a8] sm:$0xff]
      %v859 = vld [vmem:[%s351 + $0x2b0] sm:$0xff]
      %v860 = vld [vmem:[%s351 + $0x2b8] sm:$0xff]
      %v861 = vld [vmem:[%s351 + $0x2c0] sm:$0xff]
      %v862 = vld [vmem:[%s351 + $0x2c8] sm:$0xff]
      %v863 = vld [vmem:[%s351 + $0x2d0] sm:$0xff]
      %v864 = vld [vmem:[%s351 + $0x2d8] sm:$0xff]
      %v865 = vld [vmem:[%s351 + $0x2e0] sm:$0xff]
      %v866 = vld [vmem:[%s351 + $0x2e8] sm:$0xff]
      %v867 = vld [vmem:[%s351 + $0x2f0] sm:$0xff]
      %v868 = vld [vmem:[%s351 + $0x2f8] sm:$0xff]
      %v869 = vld [vmem:[%s351 + $0x300] sm:$0xff]
      %v870 = vld [vmem:[%s351 + $0x308] sm:$0xff]
      %v871 = vld [vmem:[%s351 + $0x310] sm:$0xff]
      %v872 = vld [vmem:[%s351 + $0x318] sm:$0xff]
      %v873 = vld [vmem:[%s351 + $0x320] sm:$0xff]
      %v874 = vld [vmem:[%s351 + $0x328] sm:$0xff]
      %v875 = vld [vmem:[%s351 + $0x330] sm:$0xff]
      %v876 = vld [vmem:[%s351 + $0x338] sm:$0xff]
      %v877 = vld [vmem:[%s351 + $0x340] sm:$0xff]
      %v878 = vld [vmem:[%s351 + $0x348] sm:$0xff]
      %v879 = vld [vmem:[%s351 + $0x350] sm:$0xff]
      %v880 = vld [vmem:[%s351 + $0x358] sm:$0xff]
      %v881 = vld [vmem:[%s351 + $0x360] sm:$0xff]
      %v882 = vld [vmem:[%s351 + $0x368] sm:$0xff]
      %v883 = vld [vmem:[%s351 + $0x370] sm:$0xff]
      %v884 = vld [vmem:[%s351 + $0x378] sm:$0xff]
      %v885 = vld [vmem:[%s351 + $0x380] sm:$0xff]
      %v886 = vld [vmem:[%s351 + $0x388] sm:$0xff]
      %v887 = vld [vmem:[%s351 + $0x390] sm:$0xff]
      %v888 = vld [vmem:[%s351 + $0x398] sm:$0xff]
      %v889 = vld [vmem:[%s351 + $0x3a0] sm:$0xff]
      %v890 = vld [vmem:[%s351 + $0x3a8] sm:$0xff]
      %v891 = vld [vmem:[%s351 + $0x3b0] sm:$0xff]
      %v892 = vld [vmem:[%s351 + $0x3b8] sm:$0xff]
      %v893 = vld [vmem:[%s351 + $0x3c0] sm:$0xff]
      %v894 = vld [vmem:[%s351 + $0x3c8] sm:$0xff]
      %v895 = vld [vmem:[%s351 + $0x3d0] sm:$0xff]
      %v896 = vld [vmem:[%s351 + $0x3d8] sm:$0xff]
      %v897 = vld [vmem:[%s351 + $0x3e0] sm:$0xff]
      %v898 = vld [vmem:[%s351 + $0x3e8] sm:$0xff]
      %v899 = vld [vmem:[%s351 + $0x3f0] sm:$0xff]
      %v900 = vld [vmem:[%s351 + $0x3f8] sm:$0xff]
      %v901 = vsub.f32 %v645, %v773
      %v902 = vsub.f32 %v646, %v774
      %v903 = vsub.f32 %v647, %v775
      %v904 = vsub.f32 %v648, %v776
      %v905 = vsub.f32 %v649, %v777
      %v906 = vsub.f32 %v650, %v778
      %v907 = vsub.f32 %v651, %v779
      %v908 = vsub.f32 %v652, %v780
      %v909 = vsub.f32 %v653, %v781
      %v910 = vsub.f32 %v654, %v782
      %v911 = vsub.f32 %v655, %v783
      %v912 = vsub.f32 %v656, %v784
      %v913 = vsub.f32 %v657, %v785
      %v914 = vsub.f32 %v658, %v786
      %v915 = vsub.f32 %v659, %v787
      %v916 = vsub.f32 %v660, %v788
      %v917 = vsub.f32 %v661, %v789
      %v918 = vsub.f32 %v662, %v790
      %v919 = vsub.f32 %v663, %v791
      %v920 = vsub.f32 %v664, %v792
      %v921 = vsub.f32 %v665, %v793
      %v922 = vsub.f32 %v666, %v794
      %v923 = vsub.f32 %v667, %v795
      %v924 = vsub.f32 %v668, %v796
      %v925 = vsub.f32 %v669, %v797
      %v926 = vsub.f32 %v670, %v798
      %v927 = vsub.f32 %v671, %v799
      %v928 = vsub.f32 %v672, %v800
      %v929 = vsub.f32 %v673, %v801
      %v930 = vsub.f32 %v674, %v802
      %v931 = vsub.f32 %v675, %v803
      %v932 = vsub.f32 %v676, %v804
      %v933 = vsub.f32 %v677, %v805
      %v934 = vsub.f32 %v678, %v806
      %v935 = vsub.f32 %v679, %v807
      %v936 = vsub.f32 %v680, %v808
      %v937 = vsub.f32 %v681, %v809
      %v938 = vsub.f32 %v682, %v810
      %v939 = vsub.f32 %v683, %v811
      %v940 = vsub.f32 %v684, %v812
      %v941 = vsub.f32 %v685, %v813
      %v942 = vsub.f32 %v686, %v814
      %v943 = vsub.f32 %v687, %v815
      %v944 = vsub.f32 %v688, %v816
      %v945 = vsub.f32 %v689, %v817
      %v946 = vsub.f32 %v690, %v818
      %v947 = vsub.f32 %v691, %v819
      %v948 = vsub.f32 %v692, %v820
      %v949 = vsub.f32 %v693, %v821
      %v950 = vsub.f32 %v694, %v822
      %v951 = vsub.f32 %v695, %v823
      %v952 = vsub.f32 %v696, %v824
      %v953 = vsub.f32 %v697, %v825
      %v954 = vsub.f32 %v698, %v826
      %v955 = vsub.f32 %v699, %v827
      %v956 = vsub.f32 %v700, %v828
      %v957 = vsub.f32 %v701, %v829
      %v958 = vsub.f32 %v702, %v830
      %v959 = vsub.f32 %v703, %v831
      %v960 = vsub.f32 %v704, %v832
      %v961 = vsub.f32 %v705, %v833
      %v962 = vsub.f32 %v706, %v834
      %v963 = vsub.f32 %v707, %v835
      %v964 = vsub.f32 %v708, %v836
      %v965 = vsub.f32 %v709, %v837
      %v966 = vsub.f32 %v710, %v838
      %v967 = vsub.f32 %v711, %v839
      %v968 = vsub.f32 %v712, %v840
      %v969 = vsub.f32 %v713, %v841
      %v970 = vsub.f32 %v714, %v842
      %v971 = vsub.f32 %v715, %v843
      %v972 = vsub.f32 %v716, %v844
      %v973 = vsub.f32 %v717, %v845
      %v974 = vsub.f32 %v718, %v846
      %v975 = vsub.f32 %v719, %v847
      %v976 = vsub.f32 %v720, %v848
      %v977 = vsub.f32 %v721, %v849
      %v978 = vsub.f32 %v722, %v850
      %v979 = vsub.f32 %v723, %v851
      %v980 = vsub.f32 %v724, %v852
      %v981 = vsub.f32 %v725, %v853
      %v982 = vsub.f32 %v726, %v854
      %v983 = vsub.f32 %v727, %v855
      %v984 = vsub.f32 %v728, %v856
      %v985 = vsub.f32 %v729, %v857
      %v986 = vsub.f32 %v730, %v858
      %v987 = vsub.f32 %v731, %v859
      %v988 = vsub.f32 %v732, %v860
      %v989 = vsub.f32 %v733, %v861
      %v990 = vsub.f32 %v734, %v862
      %v991 = vsub.f32 %v735, %v863
      %v992 = vsub.f32 %v736, %v864
      %v993 = vsub.f32 %v737, %v865
      %v994 = vsub.f32 %v738, %v866
      %v995 = vsub.f32 %v739, %v867
      %v996 = vsub.f32 %v740, %v868
      %v997 = vsub.f32 %v741, %v869
      %v998 = vsub.f32 %v742, %v870
      %v999 = vsub.f32 %v743, %v871
      %v1000 = vsub.f32 %v744, %v872
      %v1001 = vsub.f32 %v745, %v873
      %v1002 = vsub.f32 %v746, %v874
      %v1003 = vsub.f32 %v747, %v875
      %v1004 = vsub.f32 %v748, %v876
      %v1005 = vsub.f32 %v749, %v877
      %v1006 = vsub.f32 %v750, %v878
      %v1007 = vsub.f32 %v751, %v879
      %v1008 = vsub.f32 %v752, %v880
      %v1009 = vsub.f32 %v753, %v881
      %v1010 = vsub.f32 %v754, %v882
      %v1011 = vsub.f32 %v755, %v883
      %v1012 = vsub.f32 %v756, %v884
      %v1013 = vsub.f32 %v757, %v885
      %v1014 = vsub.f32 %v758, %v886
      %v1015 = vsub.f32 %v759, %v887
      %v1016 = vsub.f32 %v760, %v888
      %v1017 = vsub.f32 %v761, %v889
      %v1018 = vsub.f32 %v762, %v890
      %v1019 = vsub.f32 %v763, %v891
      %v1020 = vsub.f32 %v764, %v892
      %v1021 = vsub.f32 %v765, %v893
      %v1022 = vsub.f32 %v766, %v894
      %v1023 = vsub.f32 %v767, %v895
      %v1024 = vsub.f32 %v768, %v896
      %v1025 = vsub.f32 %v769, %v897
      %v1026 = vsub.f32 %v770, %v898
      %v1027 = vsub.f32 %v771, %v899
      %v1028 = vsub.f32 %v772, %v900
      %v1029 = vand.u32 2147483647, %v901
      %v1030 = vand.u32 2147483647, %v902
      %v1031 = vand.u32 2147483647, %v903
      %v1032 = vand.u32 2147483647, %v904
      %v1033 = vand.u32 2147483647, %v905
      %v1034 = vand.u32 2147483647, %v906
      %v1035 = vand.u32 2147483647, %v907
      %v1036 = vand.u32 2147483647, %v908
      %v1037 = vand.u32 2147483647, %v909
      %v1038 = vand.u32 2147483647, %v910
      %v1039 = vand.u32 2147483647, %v911
      %v1040 = vand.u32 2147483647, %v912
      %v1041 = vand.u32 2147483647, %v913
      %v1042 = vand.u32 2147483647, %v914
      %v1043 = vand.u32 2147483647, %v915
      %v1044 = vand.u32 2147483647, %v916
      %v1045 = vand.u32 2147483647, %v917
      %v1046 = vand.u32 2147483647, %v918
      %v1047 = vand.u32 2147483647, %v919
      %v1048 = vand.u32 2147483647, %v920
      %v1049 = vand.u32 2147483647, %v921
      %v1050 = vand.u32 2147483647, %v922
      %v1051 = vand.u32 2147483647, %v923
      %v1052 = vand.u32 2147483647, %v924
      %v1053 = vand.u32 2147483647, %v925
      %v1054 = vand.u32 2147483647, %v926
      %v1055 = vand.u32 2147483647, %v927
      %v1056 = vand.u32 2147483647, %v928
      %v1057 = vand.u32 2147483647, %v929
      %v1058 = vand.u32 2147483647, %v930
      %v1059 = vand.u32 2147483647, %v931
      %v1060 = vand.u32 2147483647, %v932
      %v1061 = vand.u32 2147483647, %v933
      %v1062 = vand.u32 2147483647, %v934
      %v1063 = vand.u32 2147483647, %v935
      %v1064 = vand.u32 2147483647, %v936
      %v1065 = vand.u32 2147483647, %v937
      %v1066 = vand.u32 2147483647, %v938
      %v1067 = vand.u32 2147483647, %v939
      %v1068 = vand.u32 2147483647, %v940
      %v1069 = vand.u32 2147483647, %v941
      %v1070 = vand.u32 2147483647, %v942
      %v1071 = vand.u32 2147483647, %v943
      %v1072 = vand.u32 2147483647, %v944
      %v1073 = vand.u32 2147483647, %v945
      %v1074 = vand.u32 2147483647, %v946
      %v1075 = vand.u32 2147483647, %v947
      %v1076 = vand.u32 2147483647, %v948
      %v1077 = vand.u32 2147483647, %v949
      %v1078 = vand.u32 2147483647, %v950
      %v1079 = vand.u32 2147483647, %v951
      %v1080 = vand.u32 2147483647, %v952
      %v1081 = vand.u32 2147483647, %v953
      %v1082 = vand.u32 2147483647, %v954
      %v1083 = vand.u32 2147483647, %v955
      %v1084 = vand.u32 2147483647, %v956
      %v1085 = vand.u32 2147483647, %v957
      %v1086 = vand.u32 2147483647, %v958
      %v1087 = vand.u32 2147483647, %v959
      %v1088 = vand.u32 2147483647, %v960
      %v1089 = vand.u32 2147483647, %v961
      %v1090 = vand.u32 2147483647, %v962
      %v1091 = vand.u32 2147483647, %v963
      %v1092 = vand.u32 2147483647, %v964
      %v1093 = vand.u32 2147483647, %v965
      %v1094 = vand.u32 2147483647, %v966
      %v1095 = vand.u32 2147483647, %v967
      %v1096 = vand.u32 2147483647, %v968
      %v1097 = vand.u32 2147483647, %v969
      %v1098 = vand.u32 2147483647, %v970
      %v1099 = vand.u32 2147483647, %v971
      %v1100 = vand.u32 2147483647, %v972
      %v1101 = vand.u32 2147483647, %v973
      %v1102 = vand.u32 2147483647, %v974
      %v1103 = vand.u32 2147483647, %v975
      %v1104 = vand.u32 2147483647, %v976
      %v1105 = vand.u32 2147483647, %v977
      %v1106 = vand.u32 2147483647, %v978
      %v1107 = vand.u32 2147483647, %v979
      %v1108 = vand.u32 2147483647, %v980
      %v1109 = vand.u32 2147483647, %v981
      %v1110 = vand.u32 2147483647, %v982
      %v1111 = vand.u32 2147483647, %v983
      %v1112 = vand.u32 2147483647, %v984
      %v1113 = vand.u32 2147483647, %v985
      %v1114 = vand.u32 2147483647, %v986
      %v1115 = vand.u32 2147483647, %v987
      %v1116 = vand.u32 2147483647, %v988
      %v1117 = vand.u32 2147483647, %v989
      %v1118 = vand.u32 2147483647, %v990
      %v1119 = vand.u32 2147483647, %v991
      %v1120 = vand.u32 2147483647, %v992
      %v1121 = vand.u32 2147483647, %v993
      %v1122 = vand.u32 2147483647, %v994
      %v1123 = vand.u32 2147483647, %v995
      %v1124 = vand.u32 2147483647, %v996
      %v1125 = vand.u32 2147483647, %v997
      %v1126 = vand.u32 2147483647, %v998
      %v1127 = vand.u32 2147483647, %v999
      %v1128 = vand.u32 2147483647, %v1000
      %v1129 = vand.u32 2147483647, %v1001
      %v1130 = vand.u32 2147483647, %v1002
      %v1131 = vand.u32 2147483647, %v1003
      %v1132 = vand.u32 2147483647, %v1004
      %v1133 = vand.u32 2147483647, %v1005
      %v1134 = vand.u32 2147483647, %v1006
      %v1135 = vand.u32 2147483647, %v1007
      %v1136 = vand.u32 2147483647, %v1008
      %v1137 = vand.u32 2147483647, %v1009
      %v1138 = vand.u32 2147483647, %v1010
      %v1139 = vand.u32 2147483647, %v1011
      %v1140 = vand.u32 2147483647, %v1012
      %v1141 = vand.u32 2147483647, %v1013
      %v1142 = vand.u32 2147483647, %v1014
      %v1143 = vand.u32 2147483647, %v1015
      %v1144 = vand.u32 2147483647, %v1016
      %v1145 = vand.u32 2147483647, %v1017
      %v1146 = vand.u32 2147483647, %v1018
      %v1147 = vand.u32 2147483647, %v1019
      %v1148 = vand.u32 2147483647, %v1020
      %v1149 = vand.u32 2147483647, %v1021
      %v1150 = vand.u32 2147483647, %v1022
      %v1151 = vand.u32 2147483647, %v1023
      %v1152 = vand.u32 2147483647, %v1024
      %v1153 = vand.u32 2147483647, %v1025
      %v1154 = vand.u32 2147483647, %v1026
      %v1155 = vand.u32 2147483647, %v1027
      %v1156 = vand.u32 2147483647, %v1028
      %vm1157 = vcmp.lt.f32.partialorder %v1029, 1.0
      %vm1158 = vcmp.lt.f32.partialorder %v1030, 1.0
      %vm1159 = vcmp.lt.f32.partialorder %v1031, 1.0
      %vm1160 = vcmp.lt.f32.partialorder %v1032, 1.0
      %vm1161 = vcmp.lt.f32.partialorder %v1033, 1.0
      %vm1162 = vcmp.lt.f32.partialorder %v1034, 1.0
      %vm1163 = vcmp.lt.f32.partialorder %v1035, 1.0
      %vm1164 = vcmp.lt.f32.partialorder %v1036, 1.0
      %vm1165 = vcmp.lt.f32.partialorder %v1037, 1.0
      %vm1166 = vcmp.lt.f32.partialorder %v1038, 1.0
      %vm1167 = vcmp.lt.f32.partialorder %v1039, 1.0
      %vm1168 = vcmp.lt.f32.partialorder %v1040, 1.0
      %vm1169 = vcmp.lt.f32.partialorder %v1041, 1.0
      %vm1170 = vcmp.lt.f32.partialorder %v1042, 1.0
      %vm1171 = vcmp.lt.f32.partialorder %v1043, 1.0
      %vm1172 = vcmp.lt.f32.partialorder %v1044, 1.0
      %vm1173 = vcmp.lt.f32.partialorder %v1045, 1.0
      %vm1174 = vcmp.lt.f32.partialorder %v1046, 1.0
      %vm1175 = vcmp.lt.f32.partialorder %v1047, 1.0
      %vm1176 = vcmp.lt.f32.partialorder %v1048, 1.0
      %vm1177 = vcmp.lt.f32.partialorder %v1049, 1.0
      %vm1178 = vcmp.lt.f32.partialorder %v1050, 1.0
      %vm1179 = vcmp.lt.f32.partialorder %v1051, 1.0
      %vm1180 = vcmp.lt.f32.partialorder %v1052, 1.0
      %vm1181 = vcmp.lt.f32.partialorder %v1053, 1.0
      %vm1182 = vcmp.lt.f32.partialorder %v1054, 1.0
      %vm1183 = vcmp.lt.f32.partialorder %v1055, 1.0
      %vm1184 = vcmp.lt.f32.partialorder %v1056, 1.0
      %vm1185 = vcmp.lt.f32.partialorder %v1057, 1.0
      %vm1186 = vcmp.lt.f32.partialorder %v1058, 1.0
      %vm1187 = vcmp.lt.f32.partialorder %v1059, 1.0
      %vm1188 = vcmp.lt.f32.partialorder %v1060, 1.0
      %vm1189 = vcmp.lt.f32.partialorder %v1061, 1.0
      %vm1190 = vcmp.lt.f32.partialorder %v1062, 1.0
      %vm1191 = vcmp.lt.f32.partialorder %v1063, 1.0
      %vm1192 = vcmp.lt.f32.partialorder %v1064, 1.0
      %vm1193 = vcmp.lt.f32.partialorder %v1065, 1.0
      %vm1194 = vcmp.lt.f32.partialorder %v1066, 1.0
      %vm1195 = vcmp.lt.f32.partialorder %v1067, 1.0
      %vm1196 = vcmp.lt.f32.partialorder %v1068, 1.0
      %vm1197 = vcmp.lt.f32.partialorder %v1069, 1.0
      %vm1198 = vcmp.lt.f32.partialorder %v1070, 1.0
      %vm1199 = vcmp.lt.f32.partialorder %v1071, 1.0
      %vm1200 = vcmp.lt.f32.partialorder %v1072, 1.0
      %vm1201 = vcmp.lt.f32.partialorder %v1073, 1.0
      %vm1202 = vcmp.lt.f32.partialorder %v1074, 1.0
      %vm1203 = vcmp.lt.f32.partialorder %v1075, 1.0
      %vm1204 = vcmp.lt.f32.partialorder %v1076, 1.0
      %vm1205 = vcmp.lt.f32.partialorder %v1077, 1.0
      %vm1206 = vcmp.lt.f32.partialorder %v1078, 1.0
      %vm1207 = vcmp.lt.f32.partialorder %v1079, 1.0
      %vm1208 = vcmp.lt.f32.partialorder %v1080, 1.0
      %vm1209 = vcmp.lt.f32.partialorder %v1081, 1.0
      %vm1210 = vcmp.lt.f32.partialorder %v1082, 1.0
      %vm1211 = vcmp.lt.f32.partialorder %v1083, 1.0
      %vm1212 = vcmp.lt.f32.partialorder %v1084, 1.0
      %vm1213 = vcmp.lt.f32.partialorder %v1085, 1.0
      %vm1214 = vcmp.lt.f32.partialorder %v1086, 1.0
      %vm1215 = vcmp.lt.f32.partialorder %v1087, 1.0
      %vm1216 = vcmp.lt.f32.partialorder %v1088, 1.0
      %vm1217 = vcmp.lt.f32.partialorder %v1089, 1.0
      %vm1218 = vcmp.lt.f32.partialorder %v1090, 1.0
      %vm1219 = vcmp.lt.f32.partialorder %v1091, 1.0
      %vm1220 = vcmp.lt.f32.partialorder %v1092, 1.0
      %vm1221 = vcmp.lt.f32.partialorder %v1093, 1.0
      %vm1222 = vcmp.lt.f32.partialorder %v1094, 1.0
      %vm1223 = vcmp.lt.f32.partialorder %v1095, 1.0
      %vm1224 = vcmp.lt.f32.partialorder %v1096, 1.0
      %vm1225 = vcmp.lt.f32.partialorder %v1097, 1.0
      %vm1226 = vcmp.lt.f32.partialorder %v1098, 1.0
      %vm1227 = vcmp.lt.f32.partialorder %v1099, 1.0
      %vm1228 = vcmp.lt.f32.partialorder %v1100, 1.0
      %vm1229 = vcmp.lt.f32.partialorder %v1101, 1.0
      %vm1230 = vcmp.lt.f32.partialorder %v1102, 1.0
      %vm1231 = vcmp.lt.f32.partialorder %v1103, 1.0
      %vm1232 = vcmp.lt.f32.partialorder %v1104, 1.0
      %vm1233 = vcmp.lt.f32.partialorder %v1105, 1.0
      %vm1234 = vcmp.lt.f32.partialorder %v1106, 1.0
      %vm1235 = vcmp.lt.f32.partialorder %v1107, 1.0
      %vm1236 = vcmp.lt.f32.partialorder %v1108, 1.0
      %vm1237 = vcmp.lt.f32.partialorder %v1109, 1.0
      %vm1238 = vcmp.lt.f32.partialorder %v1110, 1.0
      %vm1239 = vcmp.lt.f32.partialorder %v1111, 1.0
      %vm1240 = vcmp.lt.f32.partialorder %v1112, 1.0
      %vm1241 = vcmp.lt.f32.partialorder %v1113, 1.0
      %vm1242 = vcmp.lt.f32.partialorder %v1114, 1.0
      %vm1243 = vcmp.lt.f32.partialorder %v1115, 1.0
      %vm1244 = vcmp.lt.f32.partialorder %v1116, 1.0
      %vm1245 = vcmp.lt.f32.partialorder %v1117, 1.0
      %vm1246 = vcmp.lt.f32.partialorder %v1118, 1.0
      %vm1247 = vcmp.lt.f32.partialorder %v1119, 1.0
      %vm1248 = vcmp.lt.f32.partialorder %v1120, 1.0
      %vm1249 = vcmp.lt.f32.partialorder %v1121, 1.0
      %vm1250 = vcmp.lt.f32.partialorder %v1122, 1.0
      %vm1251 = vcmp.lt.f32.partialorder %v1123, 1.0
      %vm1252 = vcmp.lt.f32.partialorder %v1124, 1.0
      %vm1253 = vcmp.lt.f32.partialorder %v1125, 1.0
      %vm1254 = vcmp.lt.f32.partialorder %v1126, 1.0
      %vm1255 = vcmp.lt.f32.partialorder %v1127, 1.0
      %vm1256 = vcmp.lt.f32.partialorder %v1128, 1.0
      %vm1257 = vcmp.lt.f32.partialorder %v1129, 1.0
      %vm1258 = vcmp.lt.f32.partialorder %v1130, 1.0
      %vm1259 = vcmp.lt.f32.partialorder %v1131, 1.0
      %vm1260 = vcmp.lt.f32.partialorder %v1132, 1.0
      %vm1261 = vcmp.lt.f32.partialorder %v1133, 1.0
      %vm1262 = vcmp.lt.f32.partialorder %v1134, 1.0
      %vm1263 = vcmp.lt.f32.partialorder %v1135, 1.0
      %vm1264 = vcmp.lt.f32.partialorder %v1136, 1.0
      %vm1265 = vcmp.lt.f32.partialorder %v1137, 1.0
      %vm1266 = vcmp.lt.f32.partialorder %v1138, 1.0
      %vm1267 = vcmp.lt.f32.partialorder %v1139, 1.0
      %vm1268 = vcmp.lt.f32.partialorder %v1140, 1.0
      %vm1269 = vcmp.lt.f32.partialorder %v1141, 1.0
      %vm1270 = vcmp.lt.f32.partialorder %v1142, 1.0
      %vm1271 = vcmp.lt.f32.partialorder %v1143, 1.0
      %vm1272 = vcmp.lt.f32.partialorder %v1144, 1.0
      %vm1273 = vcmp.lt.f32.partialorder %v1145, 1.0
      %vm1274 = vcmp.lt.f32.partialorder %v1146, 1.0
      %vm1275 = vcmp.lt.f32.partialorder %v1147, 1.0
      %vm1276 = vcmp.lt.f32.partialorder %v1148, 1.0
      %vm1277 = vcmp.lt.f32.partialorder %v1149, 1.0
      %vm1278 = vcmp.lt.f32.partialorder %v1150, 1.0
      %vm1279 = vcmp.lt.f32.partialorder %v1151, 1.0
      %vm1280 = vcmp.lt.f32.partialorder %v1152, 1.0
      %vm1281 = vcmp.lt.f32.partialorder %v1153, 1.0
      %vm1282 = vcmp.lt.f32.partialorder %v1154, 1.0
      %vm1283 = vcmp.lt.f32.partialorder %v1155, 1.0
      %vm1284 = vcmp.lt.f32.partialorder %v1156, 1.0
      %v1285 = vmul.f32 %v901, 0.5
      %v1286 = vmul.f32 %v902, 0.5
      %v1287 = vmul.f32 %v903, 0.5
      %v1288 = vmul.f32 %v904, 0.5
      %v1289 = vmul.f32 %v905, 0.5
      %v1290 = vmul.f32 %v906, 0.5
      %v1291 = vmul.f32 %v907, 0.5
      %v1292 = vmul.f32 %v908, 0.5
      %v1293 = vmul.f32 %v909, 0.5
      %v1294 = vmul.f32 %v910, 0.5
      %v1295 = vmul.f32 %v911, 0.5
      %v1296 = vmul.f32 %v912, 0.5
      %v1297 = vmul.f32 %v913, 0.5
      %v1298 = vmul.f32 %v914, 0.5
      %v1299 = vmul.f32 %v915, 0.5
      %v1300 = vmul.f32 %v916, 0.5
      %v1301 = vmul.f32 %v917, 0.5
      %v1302 = vmul.f32 %v918, 0.5
      %v1303 = vmul.f32 %v919, 0.5
      %v1304 = vmul.f32 %v920, 0.5
      %v1305 = vmul.f32 %v921, 0.5
      %v1306 = vmul.f32 %v922, 0.5
      %v1307 = vmul.f32 %v923, 0.5
      %v1308 = vmul.f32 %v924, 0.5
      %v1309 = vmul.f32 %v925, 0.5
      %v1310 = vmul.f32 %v926, 0.5
      %v1311 = vmul.f32 %v927, 0.5
      %v1312 = vmul.f32 %v928, 0.5
      %v1313 = vmul.f32 %v929, 0.5
      %v1314 = vmul.f32 %v930, 0.5
      %v1315 = vmul.f32 %v931, 0.5
      %v1316 = vmul.f32 %v932, 0.5
      %v1317 = vmul.f32 %v933, 0.5
      %v1318 = vmul.f32 %v934, 0.5
      %v1319 = vmul.f32 %v935, 0.5
      %v1320 = vmul.f32 %v936, 0.5
      %v1321 = vmul.f32 %v937, 0.5
      %v1322 = vmul.f32 %v938, 0.5
      %v1323 = vmul.f32 %v939, 0.5
      %v1324 = vmul.f32 %v940, 0.5
      %v1325 = vmul.f32 %v941, 0.5
      %v1326 = vmul.f32 %v942, 0.5
      %v1327 = vmul.f32 %v943, 0.5
      %v1328 = vmul.f32 %v944, 0.5
      %v1329 = vmul.f32 %v945, 0.5
      %v1330 = vmul.f32 %v946, 0.5
      %v1331 = vmul.f32 %v947, 0.5
      %v1332 = vmul.f32 %v948, 0.5
      %v1333 = vmul.f32 %v949, 0.5
      %v1334 = vmul.f32 %v950, 0.5
      %v1335 = vmul.f32 %v951, 0.5
      %v1336 = vmul.f32 %v952, 0.5
      %v1337 = vmul.f32 %v953, 0.5
      %v1338 = vmul.f32 %v954, 0.5
      %v1339 = vmul.f32 %v955, 0.5
      %v1340 = vmul.f32 %v956, 0.5
      %v1341 = vmul.f32 %v957, 0.5
      %v1342 = vmul.f32 %v958, 0.5
      %v1343 = vmul.f32 %v959, 0.5
      %v1344 = vmul.f32 %v960, 0.5
      %v1345 = vmul.f32 %v961, 0.5
      %v1346 = vmul.f32 %v962, 0.5
      %v1347 = vmul.f32 %v963, 0.5
      %v1348 = vmul.f32 %v964, 0.5
      %v1349 = vmul.f32 %v965, 0.5
      %v1350 = vmul.f32 %v966, 0.5
      %v1351 = vmul.f32 %v967, 0.5
      %v1352 = vmul.f32 %v968, 0.5
      %v1353 = vmul.f32 %v969, 0.5
      %v1354 = vmul.f32 %v970, 0.5
      %v1355 = vmul.f32 %v971, 0.5
      %v1356 = vmul.f32 %v972, 0.5
      %v1357 = vmul.f32 %v973, 0.5
      %v1358 = vmul.f32 %v974, 0.5
      %v1359 = vmul.f32 %v975, 0.5
      %v1360 = vmul.f32 %v976, 0.5
      %v1361 = vmul.f32 %v977, 0.5
      %v1362 = vmul.f32 %v978, 0.5
      %v1363 = vmul.f32 %v979, 0.5
      %v1364 = vmul.f32 %v980, 0.5
      %v1365 = vmul.f32 %v981, 0.5
      %v1366 = vmul.f32 %v982, 0.5
      %v1367 = vmul.f32 %v983, 0.5
      %v1368 = vmul.f32 %v984, 0.5
      %v1369 = vmul.f32 %v985, 0.5
      %v1370 = vmul.f32 %v986, 0.5
      %v1371 = vmul.f32 %v987, 0.5
      %v1372 = vmul.f32 %v988, 0.5
      %v1373 = vmul.f32 %v989, 0.5
      %v1374 = vmul.f32 %v990, 0.5
      %v1375 = vmul.f32 %v991, 0.5
      %v1376 = vmul.f32 %v992, 0.5
      %v1377 = vmul.f32 %v993, 0.5
      %v1378 = vmul.f32 %v994, 0.5
      %v1379 = vmul.f32 %v995, 0.5
      %v1380 = vmul.f32 %v996, 0.5
      %v1381 = vmul.f32 %v997, 0.5
      %v1382 = vmul.f32 %v998, 0.5
      %v1383 = vmul.f32 %v999, 0.5
      %v1384 = vmul.f32 %v1000, 0.5
      %v1385 = vmul.f32 %v1001, 0.5
      %v1386 = vmul.f32 %v1002, 0.5
      %v1387 = vmul.f32 %v1003, 0.5
      %v1388 = vmul.f32 %v1004, 0.5
      %v1389 = vmul.f32 %v1005, 0.5
      %v1390 = vmul.f32 %v1006, 0.5
      %v1391 = vmul.f32 %v1007, 0.5
      %v1392 = vmul.f32 %v1008, 0.5
      %v1393 = vmul.f32 %v1009, 0.5
      %v1394 = vmul.f32 %v1010, 0.5
      %v1395 = vmul.f32 %v1011, 0.5
      %v1396 = vmul.f32 %v1012, 0.5
      %v1397 = vmul.f32 %v1013, 0.5
      %v1398 = vmul.f32 %v1014, 0.5
      %v1399 = vmul.f32 %v1015, 0.5
      %v1400 = vmul.f32 %v1016, 0.5
      %v1401 = vmul.f32 %v1017, 0.5
      %v1402 = vmul.f32 %v1018, 0.5
      %v1403 = vmul.f32 %v1019, 0.5
      %v1404 = vmul.f32 %v1020, 0.5
      %v1405 = vmul.f32 %v1021, 0.5
      %v1406 = vmul.f32 %v1022, 0.5
      %v1407 = vmul.f32 %v1023, 0.5
      %v1408 = vmul.f32 %v1024, 0.5
      %v1409 = vmul.f32 %v1025, 0.5
      %v1410 = vmul.f32 %v1026, 0.5
      %v1411 = vmul.f32 %v1027, 0.5
      %v1412 = vmul.f32 %v1028, 0.5
      %v1413 = vmul.f32 %v1285, %v901
      %v1414 = vmul.f32 %v1286, %v902
      %v1415 = vmul.f32 %v1287, %v903
      %v1416 = vmul.f32 %v1288, %v904
      %v1417 = vmul.f32 %v1289, %v905
      %v1418 = vmul.f32 %v1290, %v906
      %v1419 = vmul.f32 %v1291, %v907
      %v1420 = vmul.f32 %v1292, %v908
      %v1421 = vmul.f32 %v1293, %v909
      %v1422 = vmul.f32 %v1294, %v910
      %v1423 = vmul.f32 %v1295, %v911
      %v1424 = vmul.f32 %v1296, %v912
      %v1425 = vmul.f32 %v1297, %v913
      %v1426 = vmul.f32 %v1298, %v914
      %v1427 = vmul.f32 %v1299, %v915
      %v1428 = vmul.f32 %v1300, %v916
      %v1429 = vmul.f32 %v1301, %v917
      %v1430 = vmul.f32 %v1302, %v918
      %v1431 = vmul.f32 %v1303, %v919
      %v1432 = vmul.f32 %v1304, %v920
      %v1433 = vmul.f32 %v1305, %v921
      %v1434 = vmul.f32 %v1306, %v922
      %v1435 = vmul.f32 %v1307, %v923
      %v1436 = vmul.f32 %v1308, %v924
      %v1437 = vmul.f32 %v1309, %v925
      %v1438 = vmul.f32 %v1310, %v926
      %v1439 = vmul.f32 %v1311, %v927
      %v1440 = vmul.f32 %v1312, %v928
      %v1441 = vmul.f32 %v1313, %v929
      %v1442 = vmul.f32 %v1314, %v930
      %v1443 = vmul.f32 %v1315, %v931
      %v1444 = vmul.f32 %v1316, %v932
      %v1445 = vmul.f32 %v1317, %v933
      %v1446 = vmul.f32 %v1318, %v934
      %v1447 = vmul.f32 %v1319, %v935
      %v1448 = vmul.f32 %v1320, %v936
      %v1449 = vmul.f32 %v1321, %v937
      %v1450 = vmul.f32 %v1322, %v938
      %v1451 = vmul.f32 %v1323, %v939
      %v1452 = vmul.f32 %v1324, %v940
      %v1453 = vmul.f32 %v1325, %v941
      %v1454 = vmul.f32 %v1326, %v942
      %v1455 = vmul.f32 %v1327, %v943
      %v1456 = vmul.f32 %v1328, %v944
      %v1457 = vmul.f32 %v1329, %v945
      %v1458 = vmul.f32 %v1330, %v946
      %v1459 = vmul.f32 %v1331, %v947
      %v1460 = vmul.f32 %v1332, %v948
      %v1461 = vmul.f32 %v1333, %v949
      %v1462 = vmul.f32 %v1334, %v950
      %v1463 = vmul.f32 %v1335, %v951
      %v1464 = vmul.f32 %v1336, %v952
      %v1465 = vmul.f32 %v1337, %v953
      %v1466 = vmul.f32 %v1338, %v954
      %v1467 = vmul.f32 %v1339, %v955
      %v1468 = vmul.f32 %v1340, %v956
      %v1469 = vmul.f32 %v1341, %v957
      %v1470 = vmul.f32 %v1342, %v958
      %v1471 = vmul.f32 %v1343, %v959
      %v1472 = vmul.f32 %v1344, %v960
      %v1473 = vmul.f32 %v1345, %v961
      %v1474 = vmul.f32 %v1346, %v962
      %v1475 = vmul.f32 %v1347, %v963
      %v1476 = vmul.f32 %v1348, %v964
      %v1477 = vmul.f32 %v1349, %v965
      %v1478 = vmul.f32 %v1350, %v966
      %v1479 = vmul.f32 %v1351, %v967
      %v1480 = vmul.f32 %v1352, %v968
      %v1481 = vmul.f32 %v1353, %v969
      %v1482 = vmul.f32 %v1354, %v970
      %v1483 = vmul.f32 %v1355, %v971
      %v1484 = vmul.f32 %v1356, %v972
      %v1485 = vmul.f32 %v1357, %v973
      %v1486 = vmul.f32 %v1358, %v974
      %v1487 = vmul.f32 %v1359, %v975
      %v1488 = vmul.f32 %v1360, %v976
      %v1489 = vmul.f32 %v1361, %v977
      %v1490 = vmul.f32 %v1362, %v978
      %v1491 = vmul.f32 %v1363, %v979
      %v1492 = vmul.f32 %v1364, %v980
      %v1493 = vmul.f32 %v1365, %v981
      %v1494 = vmul.f32 %v1366, %v982
      %v1495 = vmul.f32 %v1367, %v983
      %v1496 = vmul.f32 %v1368, %v984
      %v1497 = vmul.f32 %v1369, %v985
      %v1498 = vmul.f32 %v1370, %v986
      %v1499 = vmul.f32 %v1371, %v987
      %v1500 = vmul.f32 %v1372, %v988
      %v1501 = vmul.f32 %v1373, %v989
      %v1502 = vmul.f32 %v1374, %v990
      %v1503 = vmul.f32 %v1375, %v991
      %v1504 = vmul.f32 %v1376, %v992
      %v1505 = vmul.f32 %v1377, %v993
      %v1506 = vmul.f32 %v1378, %v994
      %v1507 = vmul.f32 %v1379, %v995
      %v1508 = vmul.f32 %v1380, %v996
      %v1509 = vmul.f32 %v1381, %v997
      %v1510 = vmul.f32 %v1382, %v998
      %v1511 = vmul.f32 %v1383, %v999
      %v1512 = vmul.f32 %v1384, %v1000
      %v1513 = vmul.f32 %v1385, %v1001
      %v1514 = vmul.f32 %v1386, %v1002
      %v1515 = vmul.f32 %v1387, %v1003
      %v1516 = vmul.f32 %v1388, %v1004
      %v1517 = vmul.f32 %v1389, %v1005
      %v1518 = vmul.f32 %v1390, %v1006
      %v1519 = vmul.f32 %v1391, %v1007
      %v1520 = vmul.f32 %v1392, %v1008
      %v1521 = vmul.f32 %v1393, %v1009
      %v1522 = vmul.f32 %v1394, %v1010
      %v1523 = vmul.f32 %v1395, %v1011
      %v1524 = vmul.f32 %v1396, %v1012
      %v1525 = vmul.f32 %v1397, %v1013
      %v1526 = vmul.f32 %v1398, %v1014
      %v1527 = vmul.f32 %v1399, %v1015
      %v1528 = vmul.f32 %v1400, %v1016
      %v1529 = vmul.f32 %v1401, %v1017
      %v1530 = vmul.f32 %v1402, %v1018
      %v1531 = vmul.f32 %v1403, %v1019
      %v1532 = vmul.f32 %v1404, %v1020
      %v1533 = vmul.f32 %v1405, %v1021
      %v1534 = vmul.f32 %v1406, %v1022
      %v1535 = vmul.f32 %v1407, %v1023
      %v1536 = vmul.f32 %v1408, %v1024
      %v1537 = vmul.f32 %v1409, %v1025
      %v1538 = vmul.f32 %v1410, %v1026
      %v1539 = vmul.f32 %v1411, %v1027
      %v1540 = vmul.f32 %v1412, %v1028
      %v1541 = vsub.f32 %v1029, 0.5
      %v1542 = vsub.f32 %v1030, 0.5
      %v1543 = vsub.f32 %v1031, 0.5
      %v1544 = vsub.f32 %v1032, 0.5
      %v1545 = vsub.f32 %v1033, 0.5
      %v1546 = vsub.f32 %v1034, 0.5
      %v1547 = vsub.f32 %v1035, 0.5
      %v1548 = vsub.f32 %v1036, 0.5
      %v1549 = vsub.f32 %v1037, 0.5
      %v1550 = vsub.f32 %v1038, 0.5
      %v1551 = vsub.f32 %v1039, 0.5
      %v1552 = vsub.f32 %v1040, 0.5
      %v1553 = vsub.f32 %v1041, 0.5
      %v1554 = vsub.f32 %v1042, 0.5
      %v1555 = vsub.f32 %v1043, 0.5
      %v1556 = vsub.f32 %v1044, 0.5
      %v1557 = vsub.f32 %v1045, 0.5
      %v1558 = vsub.f32 %v1046, 0.5
      %v1559 = vsub.f32 %v1047, 0.5
      %v1560 = vsub.f32 %v1048, 0.5
      %v1561 = vsub.f32 %v1049, 0.5
      %v1562 = vsub.f32 %v1050, 0.5
      %v1563 = vsub.f32 %v1051, 0.5
      %v1564 = vsub.f32 %v1052, 0.5
      %v1565 = vsub.f32 %v1053, 0.5
      %v1566 = vsub.f32 %v1054, 0.5
      %v1567 = vsub.f32 %v1055, 0.5
      %v1568 = vsub.f32 %v1056, 0.5
      %v1569 = vsub.f32 %v1057, 0.5
      %v1570 = vsub.f32 %v1058, 0.5
      %v1571 = vsub.f32 %v1059, 0.5
      %v1572 = vsub.f32 %v1060, 0.5
      %v1573 = vsub.f32 %v1061, 0.5
      %v1574 = vsub.f32 %v1062, 0.5
      %v1575 = vsub.f32 %v1063, 0.5
      %v1576 = vsub.f32 %v1064, 0.5
      %v1577 = vsub.f32 %v1065, 0.5
      %v1578 = vsub.f32 %v1066, 0.5
      %v1579 = vsub.f32 %v1067, 0.5
      %v1580 = vsub.f32 %v1068, 0.5
      %v1581 = vsub.f32 %v1069, 0.5
      %v1582 = vsub.f32 %v1070, 0.5
      %v1583 = vsub.f32 %v1071, 0.5
      %v1584 = vsub.f32 %v1072, 0.5
      %v1585 = vsub.f32 %v1073, 0.5
      %v1586 = vsub.f32 %v1074, 0.5
      %v1587 = vsub.f32 %v1075, 0.5
      %v1588 = vsub.f32 %v1076, 0.5
      %v1589 = vsub.f32 %v1077, 0.5
      %v1590 = vsub.f32 %v1078, 0.5
      %v1591 = vsub.f32 %v1079, 0.5
      %v1592 = vsub.f32 %v1080, 0.5
      %v1593 = vsub.f32 %v1081, 0.5
      %v1594 = vsub.f32 %v1082, 0.5
      %v1595 = vsub.f32 %v1083, 0.5
      %v1596 = vsub.f32 %v1084, 0.5
      %v1597 = vsub.f32 %v1085, 0.5
      %v1598 = vsub.f32 %v1086, 0.5
      %v1599 = vsub.f32 %v1087, 0.5
      %v1600 = vsub.f32 %v1088, 0.5
      %v1601 = vsub.f32 %v1089, 0.5
      %v1602 = vsub.f32 %v1090, 0.5
      %v1603 = vsub.f32 %v1091, 0.5
      %v1604 = vsub.f32 %v1092, 0.5
      %v1605 = vsub.f32 %v1093, 0.5
      %v1606 = vsub.f32 %v1094, 0.5
      %v1607 = vsub.f32 %v1095, 0.5
      %v1608 = vsub.f32 %v1096, 0.5
      %v1609 = vsub.f32 %v1097, 0.5
      %v1610 = vsub.f32 %v1098, 0.5
      %v1611 = vsub.f32 %v1099, 0.5
      %v1612 = vsub.f32 %v1100, 0.5
      %v1613 = vsub.f32 %v1101, 0.5
      %v1614 = vsub.f32 %v1102, 0.5
      %v1615 = vsub.f32 %v1103, 0.5
      %v1616 = vsub.f32 %v1104, 0.5
      %v1617 = vsub.f32 %v1105, 0.5
      %v1618 = vsub.f32 %v1106, 0.5
      %v1619 = vsub.f32 %v1107, 0.5
      %v1620 = vsub.f32 %v1108, 0.5
      %v1621 = vsub.f32 %v1109, 0.5
      %v1622 = vsub.f32 %v1110, 0.5
      %v1623 = vsub.f32 %v1111, 0.5
      %v1624 = vsub.f32 %v1112, 0.5
      %v1625 = vsub.f32 %v1113, 0.5
      %v1626 = vsub.f32 %v1114, 0.5
      %v1627 = vsub.f32 %v1115, 0.5
      %v1628 = vsub.f32 %v1116, 0.5
      %v1629 = vsub.f32 %v1117, 0.5
      %v1630 = vsub.f32 %v1118, 0.5
      %v1631 = vsub.f32 %v1119, 0.5
      %v1632 = vsub.f32 %v1120, 0.5
      %v1633 = vsub.f32 %v1121, 0.5
      %v1634 = vsub.f32 %v1122, 0.5
      %v1635 = vsub.f32 %v1123, 0.5
      %v1636 = vsub.f32 %v1124, 0.5
      %v1637 = vsub.f32 %v1125, 0.5
      %v1638 = vsub.f32 %v1126, 0.5
      %v1639 = vsub.f32 %v1127, 0.5
      %v1640 = vsub.f32 %v1128, 0.5
      %v1641 = vsub.f32 %v1129, 0.5
      %v1642 = vsub.f32 %v1130, 0.5
      %v1643 = vsub.f32 %v1131, 0.5
      %v1644 = vsub.f32 %v1132, 0.5
      %v1645 = vsub.f32 %v1133, 0.5
      %v1646 = vsub.f32 %v1134, 0.5
      %v1647 = vsub.f32 %v1135, 0.5
      %v1648 = vsub.f32 %v1136, 0.5
      %v1649 = vsub.f32 %v1137, 0.5
      %v1650 = vsub.f32 %v1138, 0.5
      %v1651 = vsub.f32 %v1139, 0.5
      %v1652 = vsub.f32 %v1140, 0.5
      %v1653 = vsub.f32 %v1141, 0.5
      %v1654 = vsub.f32 %v1142, 0.5
      %v1655 = vsub.f32 %v1143, 0.5
      %v1656 = vsub.f32 %v1144, 0.5
      %v1657 = vsub.f32 %v1145, 0.5
      %v1658 = vsub.f32 %v1146, 0.5
      %v1659 = vsub.f32 %v1147, 0.5
      %v1660 = vsub.f32 %v1148, 0.5
      %v1661 = vsub.f32 %v1149, 0.5
      %v1662 = vsub.f32 %v1150, 0.5
      %v1663 = vsub.f32 %v1151, 0.5
      %v1664 = vsub.f32 %v1152, 0.5
      %v1665 = vsub.f32 %v1153, 0.5
      %v1666 = vsub.f32 %v1154, 0.5
      %v1667 = vsub.f32 %v1155, 0.5
      %v1668 = vsub.f32 %v1156, 0.5
      %v1669 = vsel %vm1157, %v1413, %v1541
      %v1670 = vsel %vm1158, %v1414, %v1542
      %v1671 = vsel %vm1159, %v1415, %v1543
      %v1672 = vsel %vm1160, %v1416, %v1544
      %v1673 = vsel %vm1161, %v1417, %v1545
      %v1674 = vsel %vm1162, %v1418, %v1546
      %v1675 = vsel %vm1163, %v1419, %v1547
      %v1676 = vsel %vm1164, %v1420, %v1548
      %v1677 = vsel %vm1165, %v1421, %v1549
      %v1678 = vsel %vm1166, %v1422, %v1550
      %v1679 = vsel %vm1167, %v1423, %v1551
      %v1680 = vsel %vm1168, %v1424, %v1552
      %v1681 = vsel %vm1169, %v1425, %v1553
      %v1682 = vsel %vm1170, %v1426, %v1554
      %v1683 = vsel %vm1171, %v1427, %v1555
      %v1684 = vsel %vm1172, %v1428, %v1556
      %v1685 = vsel %vm1173, %v1429, %v1557
      %v1686 = vsel %vm1174, %v1430, %v1558
      %v1687 = vsel %vm1175, %v1431, %v1559
      %v1688 = vsel %vm1176, %v1432, %v1560
      %v1689 = vsel %vm1177, %v1433, %v1561
      %v1690 = vsel %vm1178, %v1434, %v1562
      %v1691 = vsel %vm1179, %v1435, %v1563
      %v1692 = vsel %vm1180, %v1436, %v1564
      %v1693 = vsel %vm1181, %v1437, %v1565
      %v1694 = vsel %vm1182, %v1438, %v1566
      %v1695 = vsel %vm1183, %v1439, %v1567
      %v1696 = vsel %vm1184, %v1440, %v1568
      %v1697 = vsel %vm1185, %v1441, %v1569
      %v1698 = vsel %vm1186, %v1442, %v1570
      %v1699 = vsel %vm1187, %v1443, %v1571
      %v1700 = vsel %vm1188, %v1444, %v1572
      %v1701 = vsel %vm1189, %v1445, %v1573
      %v1702 = vsel %vm1190, %v1446, %v1574
      %v1703 = vsel %vm1191, %v1447, %v1575
      %v1704 = vsel %vm1192, %v1448, %v1576
      %v1705 = vsel %vm1193, %v1449, %v1577
      %v1706 = vsel %vm1194, %v1450, %v1578
      %v1707 = vsel %vm1195, %v1451, %v1579
      %v1708 = vsel %vm1196, %v1452, %v1580
      %v1709 = vsel %vm1197, %v1453, %v1581
      %v1710 = vsel %vm1198, %v1454, %v1582
      %v1711 = vsel %vm1199, %v1455, %v1583
      %v1712 = vsel %vm1200, %v1456, %v1584
      %v1713 = vsel %vm1201, %v1457, %v1585
      %v1714 = vsel %vm1202, %v1458, %v1586
      %v1715 = vsel %vm1203, %v1459, %v1587
      %v1716 = vsel %vm1204, %v1460, %v1588
      %v1717 = vsel %vm1205, %v1461, %v1589
      %v1718 = vsel %vm1206, %v1462, %v1590
      %v1719 = vsel %vm1207, %v1463, %v1591
      %v1720 = vsel %vm1208, %v1464, %v1592
      %v1721 = vsel %vm1209, %v1465, %v1593
      %v1722 = vsel %vm1210, %v1466, %v1594
      %v1723 = vsel %vm1211, %v1467, %v1595
      %v1724 = vsel %vm1212, %v1468, %v1596
      %v1725 = vsel %vm1213, %v1469, %v1597
      %v1726 = vsel %vm1214, %v1470, %v1598
      %v1727 = vsel %vm1215, %v1471, %v1599
      %v1728 = vsel %vm1216, %v1472, %v1600
      %v1729 = vsel %vm1217, %v1473, %v1601
      %v1730 = vsel %vm1218, %v1474, %v1602
      %v1731 = vsel %vm1219, %v1475, %v1603
      %v1732 = vsel %vm1220, %v1476, %v1604
      %v1733 = vsel %vm1221, %v1477, %v1605
      %v1734 = vsel %vm1222, %v1478, %v1606
      %v1735 = vsel %vm1223, %v1479, %v1607
      %v1736 = vsel %vm1224, %v1480, %v1608
      %v1737 = vsel %vm1225, %v1481, %v1609
      %v1738 = vsel %vm1226, %v1482, %v1610
      %v1739 = vsel %vm1227, %v1483, %v1611
      %v1740 = vsel %vm1228, %v1484, %v1612
      %v1741 = vsel %vm1229, %v1485, %v1613
      %v1742 = vsel %vm1230, %v1486, %v1614
      %v1743 = vsel %vm1231, %v1487, %v1615
      %v1744 = vsel %vm1232, %v1488, %v1616
      %v1745 = vsel %vm1233, %v1489, %v1617
      %v1746 = vsel %vm1234, %v1490, %v1618
      %v1747 = vsel %vm1235, %v1491, %v1619
      %v1748 = vsel %vm1236, %v1492, %v1620
      %v1749 = vsel %vm1237, %v1493, %v1621
      %v1750 = vsel %vm1238, %v1494, %v1622
      %v1751 = vsel %vm1239, %v1495, %v1623
      %v1752 = vsel %vm1240, %v1496, %v1624
      %v1753 = vsel %vm1241, %v1497, %v1625
      %v1754 = vsel %vm1242, %v1498, %v1626
      %v1755 = vsel %vm1243, %v1499, %v1627
      %v1756 = vsel %vm1244, %v1500, %v1628
      %v1757 = vsel %vm1245, %v1501, %v1629
      %v1758 = vsel %vm1246, %v1502, %v1630
      %v1759 = vsel %vm1247, %v1503, %v1631
      %v1760 = vsel %vm1248, %v1504, %v1632
      %v1761 = vsel %vm1249, %v1505, %v1633
      %v1762 = vsel %vm1250, %v1506, %v1634
      %v1763 = vsel %vm1251, %v1507, %v1635
      %v1764 = vsel %vm1252, %v1508, %v1636
      %v1765 = vsel %vm1253, %v1509, %v1637
      %v1766 = vsel %vm1254, %v1510, %v1638
      %v1767 = vsel %vm1255, %v1511, %v1639
      %v1768 = vsel %vm1256, %v1512, %v1640
      %v1769 = vsel %vm1257, %v1513, %v1641
      %v1770 = vsel %vm1258, %v1514, %v1642
      %v1771 = vsel %vm1259, %v1515, %v1643
      %v1772 = vsel %vm1260, %v1516, %v1644
      %v1773 = vsel %vm1261, %v1517, %v1645
      %v1774 = vsel %vm1262, %v1518, %v1646
      %v1775 = vsel %vm1263, %v1519, %v1647
      %v1776 = vsel %vm1264, %v1520, %v1648
      %v1777 = vsel %vm1265, %v1521, %v1649
      %v1778 = vsel %vm1266, %v1522, %v1650
      %v1779 = vsel %vm1267, %v1523, %v1651
      %v1780 = vsel %vm1268, %v1524, %v1652
      %v1781 = vsel %vm1269, %v1525, %v1653
      %v1782 = vsel %vm1270, %v1526, %v1654
      %v1783 = vsel %vm1271, %v1527, %v1655
      %v1784 = vsel %vm1272, %v1528, %v1656
      %v1785 = vsel %vm1273, %v1529, %v1657
      %v1786 = vsel %vm1274, %v1530, %v1658
      %v1787 = vsel %vm1275, %v1531, %v1659
      %v1788 = vsel %vm1276, %v1532, %v1660
      %v1789 = vsel %vm1277, %v1533, %v1661
      %v1790 = vsel %vm1278, %v1534, %v1662
      %v1791 = vsel %vm1279, %v1535, %v1663
      %v1792 = vsel %vm1280, %v1536, %v1664
      %v1793 = vsel %vm1281, %v1537, %v1665
      %v1794 = vsel %vm1282, %v1538, %v1666
      %v1795 = vsel %vm1283, %v1539, %v1667
      %v1796 = vsel %vm1284, %v1540, %v1668
      %v1797 = vsel %vm517, 1, 0
      %v1798 = vsel %vm518, 1, 0
      %v1799 = vsel %vm519, 1, 0
      %v1800 = vsel %vm520, 1, 0
      %v1801 = vsel %vm521, 1, 0
      %v1802 = vsel %vm522, 1, 0
      %v1803 = vsel %vm523, 1, 0
      %v1804 = vsel %vm524, 1, 0
      %v1805 = vsel %vm525, 1, 0
      %v1806 = vsel %vm526, 1, 0
      %v1807 = vsel %vm527, 1, 0
      %v1808 = vsel %vm528, 1, 0
      %v1809 = vsel %vm529, 1, 0
      %v1810 = vsel %vm530, 1, 0
      %v1811 = vsel %vm531, 1, 0
      %v1812 = vsel %vm532, 1, 0
      %v1813 = vsel %vm533, 1, 0
      %v1814 = vsel %vm534, 1, 0
      %v1815 = vsel %vm535, 1, 0
      %v1816 = vsel %vm536, 1, 0
      %v1817 = vsel %vm537, 1, 0
      %v1818 = vsel %vm538, 1, 0
      %v1819 = vsel %vm539, 1, 0
      %v1820 = vsel %vm540, 1, 0
      %v1821 = vsel %vm541, 1, 0
      %v1822 = vsel %vm542, 1, 0
      %v1823 = vsel %vm543, 1, 0
      %v1824 = vsel %vm544, 1, 0
      %v1825 = vsel %vm545, 1, 0
      %v1826 = vsel %vm546, 1, 0
      %v1827 = vsel %vm547, 1, 0
      %v1828 = vsel %vm548, 1, 0
      %v1829 = vsel %vm549, 1, 0
      %v1830 = vsel %vm550, 1, 0
      %v1831 = vsel %vm551, 1, 0
      %v1832 = vsel %vm552, 1, 0
      %v1833 = vsel %vm553, 1, 0
      %v1834 = vsel %vm554, 1, 0
      %v1835 = vsel %vm555, 1, 0
      %v1836 = vsel %vm556, 1, 0
      %v1837 = vsel %vm557, 1, 0
      %v1838 = vsel %vm558, 1, 0
      %v1839 = vsel %vm559, 1, 0
      %v1840 = vsel %vm560, 1, 0
      %v1841 = vsel %vm561, 1, 0
      %v1842 = vsel %vm562, 1, 0
      %v1843 = vsel %vm563, 1, 0
      %v1844 = vsel %vm564, 1, 0
      %v1845 = vsel %vm565, 1, 0
      %v1846 = vsel %vm566, 1, 0
      %v1847 = vsel %vm567, 1, 0
      %v1848 = vsel %vm568, 1, 0
      %v1849 = vsel %vm569, 1, 0
      %v1850 = vsel %vm570, 1, 0
      %v1851 = vsel %vm571, 1, 0
      %v1852 = vsel %vm572, 1, 0
      %v1853 = vsel %vm573, 1, 0
      %v1854 = vsel %vm574, 1, 0
      %v1855 = vsel %vm575, 1, 0
      %v1856 = vsel %vm576, 1, 0
      %v1857 = vsel %vm577, 1, 0
      %v1858 = vsel %vm578, 1, 0
      %v1859 = vsel %vm579, 1, 0
      %v1860 = vsel %vm580, 1, 0
      %v1861 = vsel %vm581, 1, 0
      %v1862 = vsel %vm582, 1, 0
      %v1863 = vsel %vm583, 1, 0
      %v1864 = vsel %vm584, 1, 0
      %v1865 = vsel %vm585, 1, 0
      %v1866 = vsel %vm586, 1, 0
      %v1867 = vsel %vm587, 1, 0
      %v1868 = vsel %vm588, 1, 0
      %v1869 = vsel %vm589, 1, 0
      %v1870 = vsel %vm590, 1, 0
      %v1871 = vsel %vm591, 1, 0
      %v1872 = vsel %vm592, 1, 0
      %v1873 = vsel %vm593, 1, 0
      %v1874 = vsel %vm594, 1, 0
      %v1875 = vsel %vm595, 1, 0
      %v1876 = vsel %vm596, 1, 0
      %v1877 = vsel %vm597, 1, 0
      %v1878 = vsel %vm598, 1, 0
      %v1879 = vsel %vm599, 1, 0
      %v1880 = vsel %vm600, 1, 0
      %v1881 = vsel %vm601, 1, 0
      %v1882 = vsel %vm602, 1, 0
      %v1883 = vsel %vm603, 1, 0
      %v1884 = vsel %vm604, 1, 0
      %v1885 = vsel %vm605, 1, 0
      %v1886 = vsel %vm606, 1, 0
      %v1887 = vsel %vm607, 1, 0
      %v1888 = vsel %vm608, 1, 0
      %v1889 = vsel %vm609, 1, 0
      %v1890 = vsel %vm610, 1, 0
      %v1891 = vsel %vm611, 1, 0
      %v1892 = vsel %vm612, 1, 0
      %v1893 = vsel %vm613, 1, 0
      %v1894 = vsel %vm614, 1, 0
      %v1895 = vsel %vm615, 1, 0
      %v1896 = vsel %vm616, 1, 0
      %v1897 = vsel %vm617, 1, 0
      %v1898 = vsel %vm618, 1, 0
      %v1899 = vsel %vm619, 1, 0
      %v1900 = vsel %vm620, 1, 0
      %v1901 = vsel %vm621, 1, 0
      %v1902 = vsel %vm622, 1, 0
      %v1903 = vsel %vm623, 1, 0
      %v1904 = vsel %vm624, 1, 0
      %v1905 = vsel %vm625, 1, 0
      %v1906 = vsel %vm626, 1, 0
      %v1907 = vsel %vm627, 1, 0
      %v1908 = vsel %vm628, 1, 0
      %v1909 = vsel %vm629, 1, 0
      %v1910 = vsel %vm630, 1, 0
      %v1911 = vsel %vm631, 1, 0
      %v1912 = vsel %vm632, 1, 0
      %v1913 = vsel %vm633, 1, 0
      %v1914 = vsel %vm634, 1, 0
      %v1915 = vsel %vm635, 1, 0
      %v1916 = vsel %vm636, 1, 0
      %v1917 = vsel %vm637, 1, 0
      %v1918 = vsel %vm638, 1, 0
      %v1919 = vsel %vm639, 1, 0
      %v1920 = vsel %vm640, 1, 0
      %v1921 = vsel %vm641, 1, 0
      %v1922 = vsel %vm642, 1, 0
      %v1923 = vsel %vm643, 1, 0
      %v1924 = vsel %vm644, 1, 0
      %1925 = vset.pattern.permute.xlu0 0
      %1926 = vperm.xlu0 %1925, %v1797
      %v1927 = vpop.permute.xlu0 %1926
      %1928 = vset.pattern.permute.xlu0 0
      %1929 = vperm.xlu0 %1928, %v1798
      %v1930 = vpop.permute.xlu0 %1929
      %1931 = vset.pattern.permute.xlu0 0
      %1932 = vperm.xlu0 %1931, %v1799
      %v1933 = vpop.permute.xlu0 %1932
      %1934 = vset.pattern.permute.xlu0 0
      %1935 = vperm.xlu0 %1934, %v1800
      %v1936 = vpop.permute.xlu0 %1935
      %1937 = vset.pattern.permute.xlu0 0
      %1938 = vperm.xlu0 %1937, %v1801
      %v1939 = vpop.permute.xlu0 %1938
      %1940 = vset.pattern.permute.xlu0 0
      %1941 = vperm.xlu0 %1940, %v1802
      %v1942 = vpop.permute.xlu0 %1941
      %1943 = vset.pattern.permute.xlu0 0
      %1944 = vperm.xlu0 %1943, %v1803
      %v1945 = vpop.permute.xlu0 %1944
      %1946 = vset.pattern.permute.xlu0 0
      %1947 = vperm.xlu0 %1946, %v1804
      %v1948 = vpop.permute.xlu0 %1947
      %1949 = vset.pattern.permute.xlu0 0
      %1950 = vperm.xlu0 %1949, %v1805
      %v1951 = vpop.permute.xlu0 %1950
      %1952 = vset.pattern.permute.xlu0 0
      %1953 = vperm.xlu0 %1952, %v1806
      %v1954 = vpop.permute.xlu0 %1953
      %1955 = vset.pattern.permute.xlu0 0
      %1956 = vperm.xlu0 %1955, %v1807
      %v1957 = vpop.permute.xlu0 %1956
      %1958 = vset.pattern.permute.xlu0 0
      %1959 = vperm.xlu0 %1958, %v1808
      %v1960 = vpop.permute.xlu0 %1959
      %1961 = vset.pattern.permute.xlu0 0
      %1962 = vperm.xlu0 %1961, %v1809
      %v1963 = vpop.permute.xlu0 %1962
      %1964 = vset.pattern.permute.xlu0 0
      %1965 = vperm.xlu0 %1964, %v1810
      %v1966 = vpop.permute.xlu0 %1965
      %1967 = vset.pattern.permute.xlu0 0
      %1968 = vperm.xlu0 %1967, %v1811
      %v1969 = vpop.permute.xlu0 %1968
      %1970 = vset.pattern.permute.xlu0 0
      %1971 = vperm.xlu0 %1970, %v1812
      %v1972 = vpop.permute.xlu0 %1971
      %1973 = vset.pattern.permute.xlu0 0
      %1974 = vperm.xlu0 %1973, %v1813
      %v1975 = vpop.permute.xlu0 %1974
      %1976 = vset.pattern.permute.xlu0 0
      %1977 = vperm.xlu0 %1976, %v1814
      %v1978 = vpop.permute.xlu0 %1977
      %1979 = vset.pattern.permute.xlu0 0
      %1980 = vperm.xlu0 %1979, %v1815
      %v1981 = vpop.permute.xlu0 %1980
      %1982 = vset.pattern.permute.xlu0 0
      %1983 = vperm.xlu0 %1982, %v1816
      %v1984 = vpop.permute.xlu0 %1983
      %1985 = vset.pattern.permute.xlu0 0
      %1986 = vperm.xlu0 %1985, %v1817
      %v1987 = vpop.permute.xlu0 %1986
      %1988 = vset.pattern.permute.xlu0 0
      %1989 = vperm.xlu0 %1988, %v1818
      %v1990 = vpop.permute.xlu0 %1989
      %1991 = vset.pattern.permute.xlu0 0
      %1992 = vperm.xlu0 %1991, %v1819
      %v1993 = vpop.permute.xlu0 %1992
      %1994 = vset.pattern.permute.xlu0 0
      %1995 = vperm.xlu0 %1994, %v1820
      %v1996 = vpop.permute.xlu0 %1995
      %1997 = vset.pattern.permute.xlu0 0
      %1998 = vperm.xlu0 %1997, %v1821
      %v1999 = vpop.permute.xlu0 %1998
      %2000 = vset.pattern.permute.xlu0 0
      %2001 = vperm.xlu0 %2000, %v1822
      %v2002 = vpop.permute.xlu0 %2001
      %2003 = vset.pattern.permute.xlu0 0
      %2004 = vperm.xlu0 %2003, %v1823
      %v2005 = vpop.permute.xlu0 %2004
      %2006 = vset.pattern.permute.xlu0 0
      %2007 = vperm.xlu0 %2006, %v1824
      %v2008 = vpop.permute.xlu0 %2007
      %2009 = vset.pattern.permute.xlu0 0
      %2010 = vperm.xlu0 %2009, %v1825
      %v2011 = vpop.permute.xlu0 %2010
      %2012 = vset.pattern.permute.xlu0 0
      %2013 = vperm.xlu0 %2012, %v1826
      %v2014 = vpop.permute.xlu0 %2013
      %2015 = vset.pattern.permute.xlu0 0
      %2016 = vperm.xlu0 %2015, %v1827
      %v2017 = vpop.permute.xlu0 %2016
      %2018 = vset.pattern.permute.xlu0 0
      %2019 = vperm.xlu0 %2018, %v1828
      %v2020 = vpop.permute.xlu0 %2019
      %2021 = vset.pattern.permute.xlu0 0
      %2022 = vperm.xlu0 %2021, %v1829
      %v2023 = vpop.permute.xlu0 %2022
      %2024 = vset.pattern.permute.xlu0 0
      %2025 = vperm.xlu0 %2024, %v1830
      %v2026 = vpop.permute.xlu0 %2025
      %2027 = vset.pattern.permute.xlu0 0
      %2028 = vperm.xlu0 %2027, %v1831
      %v2029 = vpop.permute.xlu0 %2028
      %2030 = vset.pattern.permute.xlu0 0
      %2031 = vperm.xlu0 %2030, %v1832
      %v2032 = vpop.permute.xlu0 %2031
      %2033 = vset.pattern.permute.xlu0 0
      %2034 = vperm.xlu0 %2033, %v1833
      %v2035 = vpop.permute.xlu0 %2034
      %2036 = vset.pattern.permute.xlu0 0
      %2037 = vperm.xlu0 %2036, %v1834
      %v2038 = vpop.permute.xlu0 %2037
      %2039 = vset.pattern.permute.xlu0 0
      %2040 = vperm.xlu0 %2039, %v1835
      %v2041 = vpop.permute.xlu0 %2040
      %2042 = vset.pattern.permute.xlu0 0
      %2043 = vperm.xlu0 %2042, %v1836
      %v2044 = vpop.permute.xlu0 %2043
      %2045 = vset.pattern.permute.xlu0 0
      %2046 = vperm.xlu0 %2045, %v1837
      %v2047 = vpop.permute.xlu0 %2046
      %2048 = vset.pattern.permute.xlu0 0
      %2049 = vperm.xlu0 %2048, %v1838
      %v2050 = vpop.permute.xlu0 %2049
      %2051 = vset.pattern.permute.xlu0 0
      %2052 = vperm.xlu0 %2051, %v1839
      %v2053 = vpop.permute.xlu0 %2052
      %2054 = vset.pattern.permute.xlu0 0
      %2055 = vperm.xlu0 %2054, %v1840
      %v2056 = vpop.permute.xlu0 %2055
      %2057 = vset.pattern.permute.xlu0 0
      %2058 = vperm.xlu0 %2057, %v1841
      %v2059 = vpop.permute.xlu0 %2058
      %2060 = vset.pattern.permute.xlu0 0
      %2061 = vperm.xlu0 %2060, %v1842
      %v2062 = vpop.permute.xlu0 %2061
      %2063 = vset.pattern.permute.xlu0 0
      %2064 = vperm.xlu0 %2063, %v1843
      %v2065 = vpop.permute.xlu0 %2064
      %2066 = vset.pattern.permute.xlu0 0
      %2067 = vperm.xlu0 %2066, %v1844
      %v2068 = vpop.permute.xlu0 %2067
      %2069 = vset.pattern.permute.xlu0 0
      %2070 = vperm.xlu0 %2069, %v1845
      %v2071 = vpop.permute.xlu0 %2070
      %2072 = vset.pattern.permute.xlu0 0
      %2073 = vperm.xlu0 %2072, %v1846
      %v2074 = vpop.permute.xlu0 %2073
      %2075 = vset.pattern.permute.xlu0 0
      %2076 = vperm.xlu0 %2075, %v1847
      %v2077 = vpop.permute.xlu0 %2076
      %2078 = vset.pattern.permute.xlu0 0
      %2079 = vperm.xlu0 %2078, %v1848
      %v2080 = vpop.permute.xlu0 %2079
      %2081 = vset.pattern.permute.xlu0 0
      %2082 = vperm.xlu0 %2081, %v1849
      %v2083 = vpop.permute.xlu0 %2082
      %2084 = vset.pattern.permute.xlu0 0
      %2085 = vperm.xlu0 %2084, %v1850
      %v2086 = vpop.permute.xlu0 %2085
      %2087 = vset.pattern.permute.xlu0 0
      %2088 = vperm.xlu0 %2087, %v1851
      %v2089 = vpop.permute.xlu0 %2088
      %2090 = vset.pattern.permute.xlu0 0
      %2091 = vperm.xlu0 %2090, %v1852
      %v2092 = vpop.permute.xlu0 %2091
      %2093 = vset.pattern.permute.xlu0 0
      %2094 = vperm.xlu0 %2093, %v1853
      %v2095 = vpop.permute.xlu0 %2094
      %2096 = vset.pattern.permute.xlu0 0
      %2097 = vperm.xlu0 %2096, %v1854
      %v2098 = vpop.permute.xlu0 %2097
      %2099 = vset.pattern.permute.xlu0 0
      %2100 = vperm.xlu0 %2099, %v1855
      %v2101 = vpop.permute.xlu0 %2100
      %2102 = vset.pattern.permute.xlu0 0
      %2103 = vperm.xlu0 %2102, %v1856
      %v2104 = vpop.permute.xlu0 %2103
      %2105 = vset.pattern.permute.xlu0 0
      %2106 = vperm.xlu0 %2105, %v1857
      %v2107 = vpop.permute.xlu0 %2106
      %2108 = vset.pattern.permute.xlu0 0
      %2109 = vperm.xlu0 %2108, %v1858
      %v2110 = vpop.permute.xlu0 %2109
      %2111 = vset.pattern.permute.xlu0 0
      %2112 = vperm.xlu0 %2111, %v1859
      %v2113 = vpop.permute.xlu0 %2112
      %2114 = vset.pattern.permute.xlu0 0
      %2115 = vperm.xlu0 %2114, %v1860
      %v2116 = vpop.permute.xlu0 %2115
      %2117 = vset.pattern.permute.xlu0 0
      %2118 = vperm.xlu0 %2117, %v1861
      %v2119 = vpop.permute.xlu0 %2118
      %2120 = vset.pattern.permute.xlu0 0
      %2121 = vperm.xlu0 %2120, %v1862
      %v2122 = vpop.permute.xlu0 %2121
      %2123 = vset.pattern.permute.xlu0 0
      %2124 = vperm.xlu0 %2123, %v1863
      %v2125 = vpop.permute.xlu0 %2124
      %2126 = vset.pattern.permute.xlu0 0
      %2127 = vperm.xlu0 %2126, %v1864
      %v2128 = vpop.permute.xlu0 %2127
      %2129 = vset.pattern.permute.xlu0 0
      %2130 = vperm.xlu0 %2129, %v1865
      %v2131 = vpop.permute.xlu0 %2130
      %2132 = vset.pattern.permute.xlu0 0
      %2133 = vperm.xlu0 %2132, %v1866
      %v2134 = vpop.permute.xlu0 %2133
      %2135 = vset.pattern.permute.xlu0 0
      %2136 = vperm.xlu0 %2135, %v1867
      %v2137 = vpop.permute.xlu0 %2136
      %2138 = vset.pattern.permute.xlu0 0
      %2139 = vperm.xlu0 %2138, %v1868
      %v2140 = vpop.permute.xlu0 %2139
      %2141 = vset.pattern.permute.xlu0 0
      %2142 = vperm.xlu0 %2141, %v1869
      %v2143 = vpop.permute.xlu0 %2142
      %2144 = vset.pattern.permute.xlu0 0
      %2145 = vperm.xlu0 %2144, %v1870
      %v2146 = vpop.permute.xlu0 %2145
      %2147 = vset.pattern.permute.xlu0 0
      %2148 = vperm.xlu0 %2147, %v1871
      %v2149 = vpop.permute.xlu0 %2148
      %2150 = vset.pattern.permute.xlu0 0
      %2151 = vperm.xlu0 %2150, %v1872
      %v2152 = vpop.permute.xlu0 %2151
      %2153 = vset.pattern.permute.xlu0 0
      %2154 = vperm.xlu0 %2153, %v1873
      %v2155 = vpop.permute.xlu0 %2154
      %2156 = vset.pattern.permute.xlu0 0
      %2157 = vperm.xlu0 %2156, %v1874
      %v2158 = vpop.permute.xlu0 %2157
      %2159 = vset.pattern.permute.xlu0 0
      %2160 = vperm.xlu0 %2159, %v1875
      %v2161 = vpop.permute.xlu0 %2160
      %2162 = vset.pattern.permute.xlu0 0
      %2163 = vperm.xlu0 %2162, %v1876
      %v2164 = vpop.permute.xlu0 %2163
      %2165 = vset.pattern.permute.xlu0 0
      %2166 = vperm.xlu0 %2165, %v1877
      %v2167 = vpop.permute.xlu0 %2166
      %2168 = vset.pattern.permute.xlu0 0
      %2169 = vperm.xlu0 %2168, %v1878
      %v2170 = vpop.permute.xlu0 %2169
      %2171 = vset.pattern.permute.xlu0 0
      %2172 = vperm.xlu0 %2171, %v1879
      %v2173 = vpop.permute.xlu0 %2172
      %2174 = vset.pattern.permute.xlu0 0
      %2175 = vperm.xlu0 %2174, %v1880
      %v2176 = vpop.permute.xlu0 %2175
      %2177 = vset.pattern.permute.xlu0 0
      %2178 = vperm.xlu0 %2177, %v1881
      %v2179 = vpop.permute.xlu0 %2178
      %2180 = vset.pattern.permute.xlu0 0
      %2181 = vperm.xlu0 %2180, %v1882
      %v2182 = vpop.permute.xlu0 %2181
      %2183 = vset.pattern.permute.xlu0 0
      %2184 = vperm.xlu0 %2183, %v1883
      %v2185 = vpop.permute.xlu0 %2184
      %2186 = vset.pattern.permute.xlu0 0
      %2187 = vperm.xlu0 %2186, %v1884
      %v2188 = vpop.permute.xlu0 %2187
      %2189 = vset.pattern.permute.xlu0 0
      %2190 = vperm.xlu0 %2189, %v1885
      %v2191 = vpop.permute.xlu0 %2190
      %2192 = vset.pattern.permute.xlu0 0
      %2193 = vperm.xlu0 %2192, %v1886
      %v2194 = vpop.permute.xlu0 %2193
      %2195 = vset.pattern.permute.xlu0 0
      %2196 = vperm.xlu0 %2195, %v1887
      %v2197 = vpop.permute.xlu0 %2196
      %2198 = vset.pattern.permute.xlu0 0
      %2199 = vperm.xlu0 %2198, %v1888
      %v2200 = vpop.permute.xlu0 %2199
      %2201 = vset.pattern.permute.xlu0 0
      %2202 = vperm.xlu0 %2201, %v1889
      %v2203 = vpop.permute.xlu0 %2202
      %2204 = vset.pattern.permute.xlu0 0
      %2205 = vperm.xlu0 %2204, %v1890
      %v2206 = vpop.permute.xlu0 %2205
      %2207 = vset.pattern.permute.xlu0 0
      %2208 = vperm.xlu0 %2207, %v1891
      %v2209 = vpop.permute.xlu0 %2208
      %2210 = vset.pattern.permute.xlu0 0
      %2211 = vperm.xlu0 %2210, %v1892
      %v2212 = vpop.permute.xlu0 %2211
      %2213 = vset.pattern.permute.xlu0 0
      %2214 = vperm.xlu0 %2213, %v1893
      %v2215 = vpop.permute.xlu0 %2214
      %2216 = vset.pattern.permute.xlu0 0
      %2217 = vperm.xlu0 %2216, %v1894
      %v2218 = vpop.permute.xlu0 %2217
      %2219 = vset.pattern.permute.xlu0 0
      %2220 = vperm.xlu0 %2219, %v1895
      %v2221 = vpop.permute.xlu0 %2220
      %2222 = vset.pattern.permute.xlu0 0
      %2223 = vperm.xlu0 %2222, %v1896
      %v2224 = vpop.permute.xlu0 %2223
      %2225 = vset.pattern.permute.xlu0 0
      %2226 = vperm.xlu0 %2225, %v1897
      %v2227 = vpop.permute.xlu0 %2226
      %2228 = vset.pattern.permute.xlu0 0
      %2229 = vperm.xlu0 %2228, %v1898
      %v2230 = vpop.permute.xlu0 %2229
      %2231 = vset.pattern.permute.xlu0 0
      %2232 = vperm.xlu0 %2231, %v1899
      %v2233 = vpop.permute.xlu0 %2232
      %2234 = vset.pattern.permute.xlu0 0
      %2235 = vperm.xlu0 %2234, %v1900
      %v2236 = vpop.permute.xlu0 %2235
      %2237 = vset.pattern.permute.xlu0 0
      %2238 = vperm.xlu0 %2237, %v1901
      %v2239 = vpop.permute.xlu0 %2238
      %2240 = vset.pattern.permute.xlu0 0
      %2241 = vperm.xlu0 %2240, %v1902
      %v2242 = vpop.permute.xlu0 %2241
      %2243 = vset.pattern.permute.xlu0 0
      %2244 = vperm.xlu0 %2243, %v1903
      %v2245 = vpop.permute.xlu0 %2244
      %2246 = vset.pattern.permute.xlu0 0
      %2247 = vperm.xlu0 %2246, %v1904
      %v2248 = vpop.permute.xlu0 %2247
      %2249 = vset.pattern.permute.xlu0 0
      %2250 = vperm.xlu0 %2249, %v1905
      %v2251 = vpop.permute.xlu0 %2250
      %2252 = vset.pattern.permute.xlu0 0
      %2253 = vperm.xlu0 %2252, %v1906
      %v2254 = vpop.permute.xlu0 %2253
      %2255 = vset.pattern.permute.xlu0 0
      %2256 = vperm.xlu0 %2255, %v1907
      %v2257 = vpop.permute.xlu0 %2256
      %2258 = vset.pattern.permute.xlu0 0
      %2259 = vperm.xlu0 %2258, %v1908
      %v2260 = vpop.permute.xlu0 %2259
      %2261 = vset.pattern.permute.xlu0 0
      %2262 = vperm.xlu0 %2261, %v1909
      %v2263 = vpop.permute.xlu0 %2262
      %2264 = vset.pattern.permute.xlu0 0
      %2265 = vperm.xlu0 %2264, %v1910
      %v2266 = vpop.permute.xlu0 %2265
      %2267 = vset.pattern.permute.xlu0 0
      %2268 = vperm.xlu0 %2267, %v1911
      %v2269 = vpop.permute.xlu0 %2268
      %2270 = vset.pattern.permute.xlu0 0
      %2271 = vperm.xlu0 %2270, %v1912
      %v2272 = vpop.permute.xlu0 %2271
      %2273 = vset.pattern.permute.xlu0 0
      %2274 = vperm.xlu0 %2273, %v1913
      %v2275 = vpop.permute.xlu0 %2274
      %2276 = vset.pattern.permute.xlu0 0
      %2277 = vperm.xlu0 %2276, %v1914
      %v2278 = vpop.permute.xlu0 %2277
      %2279 = vset.pattern.permute.xlu0 0
      %2280 = vperm.xlu0 %2279, %v1915
      %v2281 = vpop.permute.xlu0 %2280
      %2282 = vset.pattern.permute.xlu0 0
      %2283 = vperm.xlu0 %2282, %v1916
      %v2284 = vpop.permute.xlu0 %2283
      %2285 = vset.pattern.permute.xlu0 0
      %2286 = vperm.xlu0 %2285, %v1917
      %v2287 = vpop.permute.xlu0 %2286
      %2288 = vset.pattern.permute.xlu0 0
      %2289 = vperm.xlu0 %2288, %v1918
      %v2290 = vpop.permute.xlu0 %2289
      %2291 = vset.pattern.permute.xlu0 0
      %2292 = vperm.xlu0 %2291, %v1919
      %v2293 = vpop.permute.xlu0 %2292
      %2294 = vset.pattern.permute.xlu0 0
      %2295 = vperm.xlu0 %2294, %v1920
      %v2296 = vpop.permute.xlu0 %2295
      %2297 = vset.pattern.permute.xlu0 0
      %2298 = vperm.xlu0 %2297, %v1921
      %v2299 = vpop.permute.xlu0 %2298
      %2300 = vset.pattern.permute.xlu0 0
      %2301 = vperm.xlu0 %2300, %v1922
      %v2302 = vpop.permute.xlu0 %2301
      %2303 = vset.pattern.permute.xlu0 0
      %2304 = vperm.xlu0 %2303, %v1923
      %v2305 = vpop.permute.xlu0 %2304
      %2306 = vset.pattern.permute.xlu0 0
      %2307 = vperm.xlu0 %2306, %v1924
      %v2308 = vpop.permute.xlu0 %2307
      %vm2309 = vcmp.eq.s32.totalorder %v1927, 1
      %vm2310 = vcmp.eq.s32.totalorder %v1930, 1
      %vm2311 = vcmp.eq.s32.totalorder %v1933, 1
      %vm2312 = vcmp.eq.s32.totalorder %v1936, 1
      %vm2313 = vcmp.eq.s32.totalorder %v1939, 1
      %vm2314 = vcmp.eq.s32.totalorder %v1942, 1
      %vm2315 = vcmp.eq.s32.totalorder %v1945, 1
      %vm2316 = vcmp.eq.s32.totalorder %v1948, 1
      %vm2317 = vcmp.eq.s32.totalorder %v1951, 1
      %vm2318 = vcmp.eq.s32.totalorder %v1954, 1
      %vm2319 = vcmp.eq.s32.totalorder %v1957, 1
      %vm2320 = vcmp.eq.s32.totalorder %v1960, 1
      %vm2321 = vcmp.eq.s32.totalorder %v1963, 1
      %vm2322 = vcmp.eq.s32.totalorder %v1966, 1
      %vm2323 = vcmp.eq.s32.totalorder %v1969, 1
      %vm2324 = vcmp.eq.s32.totalorder %v1972, 1
      %vm2325 = vcmp.eq.s32.totalorder %v1975, 1
      %vm2326 = vcmp.eq.s32.totalorder %v1978, 1
      %vm2327 = vcmp.eq.s32.totalorder %v1981, 1
      %vm2328 = vcmp.eq.s32.totalorder %v1984, 1
      %vm2329 = vcmp.eq.s32.totalorder %v1987, 1
      %vm2330 = vcmp.eq.s32.totalorder %v1990, 1
      %vm2331 = vcmp.eq.s32.totalorder %v1993, 1
      %vm2332 = vcmp.eq.s32.totalorder %v1996, 1
      %vm2333 = vcmp.eq.s32.totalorder %v1999, 1
      %vm2334 = vcmp.eq.s32.totalorder %v2002, 1
      %vm2335 = vcmp.eq.s32.totalorder %v2005, 1
      %vm2336 = vcmp.eq.s32.totalorder %v2008, 1
      %vm2337 = vcmp.eq.s32.totalorder %v2011, 1
      %vm2338 = vcmp.eq.s32.totalorder %v2014, 1
      %vm2339 = vcmp.eq.s32.totalorder %v2017, 1
      %vm2340 = vcmp.eq.s32.totalorder %v2020, 1
      %vm2341 = vcmp.eq.s32.totalorder %v2023, 1
      %vm2342 = vcmp.eq.s32.totalorder %v2026, 1
      %vm2343 = vcmp.eq.s32.totalorder %v2029, 1
      %vm2344 = vcmp.eq.s32.totalorder %v2032, 1
      %vm2345 = vcmp.eq.s32.totalorder %v2035, 1
      %vm2346 = vcmp.eq.s32.totalorder %v2038, 1
      %vm2347 = vcmp.eq.s32.totalorder %v2041, 1
      %vm2348 = vcmp.eq.s32.totalorder %v2044, 1
      %vm2349 = vcmp.eq.s32.totalorder %v2047, 1
      %vm2350 = vcmp.eq.s32.totalorder %v2050, 1
      %vm2351 = vcmp.eq.s32.totalorder %v2053, 1
      %vm2352 = vcmp.eq.s32.totalorder %v2056, 1
      %vm2353 = vcmp.eq.s32.totalorder %v2059, 1
      %vm2354 = vcmp.eq.s32.totalorder %v2062, 1
      %vm2355 = vcmp.eq.s32.totalorder %v2065, 1
      %vm2356 = vcmp.eq.s32.totalorder %v2068, 1
      %vm2357 = vcmp.eq.s32.totalorder %v2071, 1
      %vm2358 = vcmp.eq.s32.totalorder %v2074, 1
      %vm2359 = vcmp.eq.s32.totalorder %v2077, 1
      %vm2360 = vcmp.eq.s32.totalorder %v2080, 1
      %vm2361 = vcmp.eq.s32.totalorder %v2083, 1
      %vm2362 = vcmp.eq.s32.totalorder %v2086, 1
      %vm2363 = vcmp.eq.s32.totalorder %v2089, 1
      %vm2364 = vcmp.eq.s32.totalorder %v2092, 1
      %vm2365 = vcmp.eq.s32.totalorder %v2095, 1
      %vm2366 = vcmp.eq.s32.totalorder %v2098, 1
      %vm2367 = vcmp.eq.s32.totalorder %v2101, 1
      %vm2368 = vcmp.eq.s32.totalorder %v2104, 1
      %vm2369 = vcmp.eq.s32.totalorder %v2107, 1
      %vm2370 = vcmp.eq.s32.totalorder %v2110, 1
      %vm2371 = vcmp.eq.s32.totalorder %v2113, 1
      %vm2372 = vcmp.eq.s32.totalorder %v2116, 1
      %vm2373 = vcmp.eq.s32.totalorder %v2119, 1
      %vm2374 = vcmp.eq.s32.totalorder %v2122, 1
      %vm2375 = vcmp.eq.s32.totalorder %v2125, 1
      %vm2376 = vcmp.eq.s32.totalorder %v2128, 1
      %vm2377 = vcmp.eq.s32.totalorder %v2131, 1
      %vm2378 = vcmp.eq.s32.totalorder %v2134, 1
      %vm2379 = vcmp.eq.s32.totalorder %v2137, 1
      %vm2380 = vcmp.eq.s32.totalorder %v2140, 1
      %vm2381 = vcmp.eq.s32.totalorder %v2143, 1
      %vm2382 = vcmp.eq.s32.totalorder %v2146, 1
      %vm2383 = vcmp.eq.s32.totalorder %v2149, 1
      %vm2384 = vcmp.eq.s32.totalorder %v2152, 1
      %vm2385 = vcmp.eq.s32.totalorder %v2155, 1
      %vm2386 = vcmp.eq.s32.totalorder %v2158, 1
      %vm2387 = vcmp.eq.s32.totalorder %v2161, 1
      %vm2388 = vcmp.eq.s32.totalorder %v2164, 1
      %vm2389 = vcmp.eq.s32.totalorder %v2167, 1
      %vm2390 = vcmp.eq.s32.totalorder %v2170, 1
      %vm2391 = vcmp.eq.s32.totalorder %v2173, 1
      %vm2392 = vcmp.eq.s32.totalorder %v2176, 1
      %vm2393 = vcmp.eq.s32.totalorder %v2179, 1
      %vm2394 = vcmp.eq.s32.totalorder %v2182, 1
      %vm2395 = vcmp.eq.s32.totalorder %v2185, 1
      %vm2396 = vcmp.eq.s32.totalorder %v2188, 1
      %vm2397 = vcmp.eq.s32.totalorder %v2191, 1
      %vm2398 = vcmp.eq.s32.totalorder %v2194, 1
      %vm2399 = vcmp.eq.s32.totalorder %v2197, 1
      %vm2400 = vcmp.eq.s32.totalorder %v2200, 1
      %vm2401 = vcmp.eq.s32.totalorder %v2203, 1
      %vm2402 = vcmp.eq.s32.totalorder %v2206, 1
      %vm2403 = vcmp.eq.s32.totalorder %v2209, 1
      %vm2404 = vcmp.eq.s32.totalorder %v2212, 1
      %vm2405 = vcmp.eq.s32.totalorder %v2215, 1
      %vm2406 = vcmp.eq.s32.totalorder %v2218, 1
      %vm2407 = vcmp.eq.s32.totalorder %v2221, 1
      %vm2408 = vcmp.eq.s32.totalorder %v2224, 1
      %vm2409 = vcmp.eq.s32.totalorder %v2227, 1
      %vm2410 = vcmp.eq.s32.totalorder %v2230, 1
      %vm2411 = vcmp.eq.s32.totalorder %v2233, 1
      %vm2412 = vcmp.eq.s32.totalorder %v2236, 1
      %vm2413 = vcmp.eq.s32.totalorder %v2239, 1
      %vm2414 = vcmp.eq.s32.totalorder %v2242, 1
      %vm2415 = vcmp.eq.s32.totalorder %v2245, 1
      %vm2416 = vcmp.eq.s32.totalorder %v2248, 1
      %vm2417 = vcmp.eq.s32.totalorder %v2251, 1
      %vm2418 = vcmp.eq.s32.totalorder %v2254, 1
      %vm2419 = vcmp.eq.s32.totalorder %v2257, 1
      %vm2420 = vcmp.eq.s32.totalorder %v2260, 1
      %vm2421 = vcmp.eq.s32.totalorder %v2263, 1
      %vm2422 = vcmp.eq.s32.totalorder %v2266, 1
      %vm2423 = vcmp.eq.s32.totalorder %v2269, 1
      %vm2424 = vcmp.eq.s32.totalorder %v2272, 1
      %vm2425 = vcmp.eq.s32.totalorder %v2275, 1
      %vm2426 = vcmp.eq.s32.totalorder %v2278, 1
      %vm2427 = vcmp.eq.s32.totalorder %v2281, 1
      %vm2428 = vcmp.eq.s32.totalorder %v2284, 1
      %vm2429 = vcmp.eq.s32.totalorder %v2287, 1
      %vm2430 = vcmp.eq.s32.totalorder %v2290, 1
      %vm2431 = vcmp.eq.s32.totalorder %v2293, 1
      %vm2432 = vcmp.eq.s32.totalorder %v2296, 1
      %vm2433 = vcmp.eq.s32.totalorder %v2299, 1
      %vm2434 = vcmp.eq.s32.totalorder %v2302, 1
      %vm2435 = vcmp.eq.s32.totalorder %v2305, 1
      %vm2436 = vcmp.eq.s32.totalorder %v2308, 1
      %v2437 = vsel %vm2309, %v1669, 0.0
      %v2438 = vsel %vm2310, %v1670, 0.0
      %v2439 = vsel %vm2311, %v1671, 0.0
      %v2440 = vsel %vm2312, %v1672, 0.0
      %v2441 = vsel %vm2313, %v1673, 0.0
      %v2442 = vsel %vm2314, %v1674, 0.0
      %v2443 = vsel %vm2315, %v1675, 0.0
      %v2444 = vsel %vm2316, %v1676, 0.0
      %v2445 = vsel %vm2317, %v1677, 0.0
      %v2446 = vsel %vm2318, %v1678, 0.0
      %v2447 = vsel %vm2319, %v1679, 0.0
      %v2448 = vsel %vm2320, %v1680, 0.0
      %v2449 = vsel %vm2321, %v1681, 0.0
      %v2450 = vsel %vm2322, %v1682, 0.0
      %v2451 = vsel %vm2323, %v1683, 0.0
      %v2452 = vsel %vm2324, %v1684, 0.0
      %v2453 = vsel %vm2325, %v1685, 0.0
      %v2454 = vsel %vm2326, %v1686, 0.0
      %v2455 = vsel %vm2327, %v1687, 0.0
      %v2456 = vsel %vm2328, %v1688, 0.0
      %v2457 = vsel %vm2329, %v1689, 0.0
      %v2458 = vsel %vm2330, %v1690, 0.0
      %v2459 = vsel %vm2331, %v1691, 0.0
      %v2460 = vsel %vm2332, %v1692, 0.0
      %v2461 = vsel %vm2333, %v1693, 0.0
      %v2462 = vsel %vm2334, %v1694, 0.0
      %v2463 = vsel %vm2335, %v1695, 0.0
      %v2464 = vsel %vm2336, %v1696, 0.0
      %v2465 = vsel %vm2337, %v1697, 0.0
      %v2466 = vsel %vm2338, %v1698, 0.0
      %v2467 = vsel %vm2339, %v1699, 0.0
      %v2468 = vsel %vm2340, %v1700, 0.0
      %v2469 = vsel %vm2341, %v1701, 0.0
      %v2470 = vsel %vm2342, %v1702, 0.0
      %v2471 = vsel %vm2343, %v1703, 0.0
      %v2472 = vsel %vm2344, %v1704, 0.0
      %v2473 = vsel %vm2345, %v1705, 0.0
      %v2474 = vsel %vm2346, %v1706, 0.0
      %v2475 = vsel %vm2347, %v1707, 0.0
      %v2476 = vsel %vm2348, %v1708, 0.0
      %v2477 = vsel %vm2349, %v1709, 0.0
      %v2478 = vsel %vm2350, %v1710, 0.0
      %v2479 = vsel %vm2351, %v1711, 0.0
      %v2480 = vsel %vm2352, %v1712, 0.0
      %v2481 = vsel %vm2353, %v1713, 0.0
      %v2482 = vsel %vm2354, %v1714, 0.0
      %v2483 = vsel %vm2355, %v1715, 0.0
      %v2484 = vsel %vm2356, %v1716, 0.0
      %v2485 = vsel %vm2357, %v1717, 0.0
      %v2486 = vsel %vm2358, %v1718, 0.0
      %v2487 = vsel %vm2359, %v1719, 0.0
      %v2488 = vsel %vm2360, %v1720, 0.0
      %v2489 = vsel %vm2361, %v1721, 0.0
      %v2490 = vsel %vm2362, %v1722, 0.0
      %v2491 = vsel %vm2363, %v1723, 0.0
      %v2492 = vsel %vm2364, %v1724, 0.0
      %v2493 = vsel %vm2365, %v1725, 0.0
      %v2494 = vsel %vm2366, %v1726, 0.0
      %v2495 = vsel %vm2367, %v1727, 0.0
      %v2496 = vsel %vm2368, %v1728, 0.0
      %v2497 = vsel %vm2369, %v1729, 0.0
      %v2498 = vsel %vm2370, %v1730, 0.0
      %v2499 = vsel %vm2371, %v1731, 0.0
      %v2500 = vsel %vm2372, %v1732, 0.0
      %v2501 = vsel %vm2373, %v1733, 0.0
      %v2502 = vsel %vm2374, %v1734, 0.0
      %v2503 = vsel %vm2375, %v1735, 0.0
      %v2504 = vsel %vm2376, %v1736, 0.0
      %v2505 = vsel %vm2377, %v1737, 0.0
      %v2506 = vsel %vm2378, %v1738, 0.0
      %v2507 = vsel %vm2379, %v1739, 0.0
      %v2508 = vsel %vm2380, %v1740, 0.0
      %v2509 = vsel %vm2381, %v1741, 0.0
      %v2510 = vsel %vm2382, %v1742, 0.0
      %v2511 = vsel %vm2383, %v1743, 0.0
      %v2512 = vsel %vm2384, %v1744, 0.0
      %v2513 = vsel %vm2385, %v1745, 0.0
      %v2514 = vsel %vm2386, %v1746, 0.0
      %v2515 = vsel %vm2387, %v1747, 0.0
      %v2516 = vsel %vm2388, %v1748, 0.0
      %v2517 = vsel %vm2389, %v1749, 0.0
      %v2518 = vsel %vm2390, %v1750, 0.0
      %v2519 = vsel %vm2391, %v1751, 0.0
      %v2520 = vsel %vm2392, %v1752, 0.0
      %v2521 = vsel %vm2393, %v1753, 0.0
      %v2522 = vsel %vm2394, %v1754, 0.0
      %v2523 = vsel %vm2395, %v1755, 0.0
      %v2524 = vsel %vm2396, %v1756, 0.0
      %v2525 = vsel %vm2397, %v1757, 0.0
      %v2526 = vsel %vm2398, %v1758, 0.0
      %v2527 = vsel %vm2399, %v1759, 0.0
      %v2528 = vsel %vm2400, %v1760, 0.0
      %v2529 = vsel %vm2401, %v1761, 0.0
      %v2530 = vsel %vm2402, %v1762, 0.0
      %v2531 = vsel %vm2403, %v1763, 0.0
      %v2532 = vsel %vm2404, %v1764, 0.0
      %v2533 = vsel %vm2405, %v1765, 0.0
      %v2534 = vsel %vm2406, %v1766, 0.0
      %v2535 = vsel %vm2407, %v1767, 0.0
      %v2536 = vsel %vm2408, %v1768, 0.0
      %v2537 = vsel %vm2409, %v1769, 0.0
      %v2538 = vsel %vm2410, %v1770, 0.0
      %v2539 = vsel %vm2411, %v1771, 0.0
      %v2540 = vsel %vm2412, %v1772, 0.0
      %v2541 = vsel %vm2413, %v1773, 0.0
      %v2542 = vsel %vm2414, %v1774, 0.0
      %v2543 = vsel %vm2415, %v1775, 0.0
      %v2544 = vsel %vm2416, %v1776, 0.0
      %v2545 = vsel %vm2417, %v1777, 0.0
      %v2546 = vsel %vm2418, %v1778, 0.0
      %v2547 = vsel %vm2419, %v1779, 0.0
      %v2548 = vsel %vm2420, %v1780, 0.0
      %v2549 = vsel %vm2421, %v1781, 0.0
      %v2550 = vsel %vm2422, %v1782, 0.0
      %v2551 = vsel %vm2423, %v1783, 0.0
      %v2552 = vsel %vm2424, %v1784, 0.0
      %v2553 = vsel %vm2425, %v1785, 0.0
      %v2554 = vsel %vm2426, %v1786, 0.0
      %v2555 = vsel %vm2427, %v1787, 0.0
      %v2556 = vsel %vm2428, %v1788, 0.0
      %v2557 = vsel %vm2429, %v1789, 0.0
      %v2558 = vsel %vm2430, %v1790, 0.0
      %v2559 = vsel %vm2431, %v1791, 0.0
      %v2560 = vsel %vm2432, %v1792, 0.0
      %v2561 = vsel %vm2433, %v1793, 0.0
      %v2562 = vsel %vm2434, %v1794, 0.0
      %v2563 = vsel %vm2435, %v1795, 0.0
      %v2564 = vsel %vm2436, %v1796, 0.0
      %vm2565 = vcmask 31744
      %v2566 = vsel %vm2565, %v2437, 0.0
      %v2567 = vsel %vm2565, %v2438, 0.0
      %v2568 = vadd.f32 %v2566, %v2567
      %v2569 = vsel %vm2565, %v2439, 0.0
      %v2570 = vadd.f32 %v2568, %v2569
      %v2571 = vsel %vm2565, %v2440, 0.0
      %v2572 = vadd.f32 %v2570, %v2571
      %v2573 = vsel %vm2565, %v2441, 0.0
      %v2574 = vadd.f32 %v2572, %v2573
      %v2575 = vsel %vm2565, %v2442, 0.0
      %v2576 = vadd.f32 %v2574, %v2575
      %v2577 = vsel %vm2565, %v2443, 0.0
      %v2578 = vadd.f32 %v2576, %v2577
      %v2579 = vsel %vm2565, %v2444, 0.0
      %v2580 = vadd.f32 %v2578, %v2579
      %v2581 = vsel %vm2565, %v2445, 0.0
      %v2582 = vadd.f32 %v2580, %v2581
      %v2583 = vsel %vm2565, %v2446, 0.0
      %v2584 = vadd.f32 %v2582, %v2583
      %v2585 = vsel %vm2565, %v2447, 0.0
      %v2586 = vadd.f32 %v2584, %v2585
      %v2587 = vsel %vm2565, %v2448, 0.0
      %v2588 = vadd.f32 %v2586, %v2587
      %v2589 = vsel %vm2565, %v2449, 0.0
      %v2590 = vadd.f32 %v2588, %v2589
      %v2591 = vsel %vm2565, %v2450, 0.0
      %v2592 = vadd.f32 %v2590, %v2591
      %v2593 = vsel %vm2565, %v2451, 0.0
      %v2594 = vadd.f32 %v2592, %v2593
      %v2595 = vsel %vm2565, %v2452, 0.0
      %v2596 = vadd.f32 %v2594, %v2595
      %v2597 = vsel %vm2565, %v2453, 0.0
      %v2598 = vadd.f32 %v2596, %v2597
      %v2599 = vsel %vm2565, %v2454, 0.0
      %v2600 = vadd.f32 %v2598, %v2599
      %v2601 = vsel %vm2565, %v2455, 0.0
      %v2602 = vadd.f32 %v2600, %v2601
      %v2603 = vsel %vm2565, %v2456, 0.0
      %v2604 = vadd.f32 %v2602, %v2603
      %v2605 = vsel %vm2565, %v2457, 0.0
      %v2606 = vadd.f32 %v2604, %v2605
      %v2607 = vsel %vm2565, %v2458, 0.0
      %v2608 = vadd.f32 %v2606, %v2607
      %v2609 = vsel %vm2565, %v2459, 0.0
      %v2610 = vadd.f32 %v2608, %v2609
      %v2611 = vsel %vm2565, %v2460, 0.0
      %v2612 = vadd.f32 %v2610, %v2611
      %v2613 = vsel %vm2565, %v2461, 0.0
      %v2614 = vadd.f32 %v2612, %v2613
      %v2615 = vsel %vm2565, %v2462, 0.0
      %v2616 = vadd.f32 %v2614, %v2615
      %v2617 = vsel %vm2565, %v2463, 0.0
      %v2618 = vadd.f32 %v2616, %v2617
      %v2619 = vsel %vm2565, %v2464, 0.0
      %v2620 = vadd.f32 %v2618, %v2619
      %v2621 = vsel %vm2565, %v2465, 0.0
      %v2622 = vadd.f32 %v2620, %v2621
      %v2623 = vsel %vm2565, %v2466, 0.0
      %v2624 = vadd.f32 %v2622, %v2623
      %v2625 = vsel %vm2565, %v2467, 0.0
      %v2626 = vadd.f32 %v2624, %v2625
      %v2627 = vsel %vm2565, %v2468, 0.0
      %v2628 = vadd.f32 %v2626, %v2627
      %v2629 = vsel %vm2565, %v2469, 0.0
      %v2630 = vadd.f32 %v2628, %v2629
      %v2631 = vsel %vm2565, %v2470, 0.0
      %v2632 = vadd.f32 %v2630, %v2631
      %v2633 = vsel %vm2565, %v2471, 0.0
      %v2634 = vadd.f32 %v2632, %v2633
      %v2635 = vsel %vm2565, %v2472, 0.0
      %v2636 = vadd.f32 %v2634, %v2635
      %v2637 = vsel %vm2565, %v2473, 0.0
      %v2638 = vadd.f32 %v2636, %v2637
      %v2639 = vsel %vm2565, %v2474, 0.0
      %v2640 = vadd.f32 %v2638, %v2639
      %v2641 = vsel %vm2565, %v2475, 0.0
      %v2642 = vadd.f32 %v2640, %v2641
      %v2643 = vsel %vm2565, %v2476, 0.0
      %v2644 = vadd.f32 %v2642, %v2643
      %v2645 = vsel %vm2565, %v2477, 0.0
      %v2646 = vadd.f32 %v2644, %v2645
      %v2647 = vsel %vm2565, %v2478, 0.0
      %v2648 = vadd.f32 %v2646, %v2647
      %v2649 = vsel %vm2565, %v2479, 0.0
      %v2650 = vadd.f32 %v2648, %v2649
      %v2651 = vsel %vm2565, %v2480, 0.0
      %v2652 = vadd.f32 %v2650, %v2651
      %v2653 = vsel %vm2565, %v2481, 0.0
      %v2654 = vadd.f32 %v2652, %v2653
      %v2655 = vsel %vm2565, %v2482, 0.0
      %v2656 = vadd.f32 %v2654, %v2655
      %v2657 = vsel %vm2565, %v2483, 0.0
      %v2658 = vadd.f32 %v2656, %v2657
      %v2659 = vsel %vm2565, %v2484, 0.0
      %v2660 = vadd.f32 %v2658, %v2659
      %v2661 = vsel %vm2565, %v2485, 0.0
      %v2662 = vadd.f32 %v2660, %v2661
      %v2663 = vsel %vm2565, %v2486, 0.0
      %v2664 = vadd.f32 %v2662, %v2663
      %v2665 = vsel %vm2565, %v2487, 0.0
      %v2666 = vadd.f32 %v2664, %v2665
      %v2667 = vsel %vm2565, %v2488, 0.0
      %v2668 = vadd.f32 %v2666, %v2667
      %v2669 = vsel %vm2565, %v2489, 0.0
      %v2670 = vadd.f32 %v2668, %v2669
      %v2671 = vsel %vm2565, %v2490, 0.0
      %v2672 = vadd.f32 %v2670, %v2671
      %v2673 = vsel %vm2565, %v2491, 0.0
      %v2674 = vadd.f32 %v2672, %v2673
      %v2675 = vsel %vm2565, %v2492, 0.0
      %v2676 = vadd.f32 %v2674, %v2675
      %v2677 = vsel %vm2565, %v2493, 0.0
      %v2678 = vadd.f32 %v2676, %v2677
      %v2679 = vsel %vm2565, %v2494, 0.0
      %v2680 = vadd.f32 %v2678, %v2679
      %v2681 = vsel %vm2565, %v2495, 0.0
      %v2682 = vadd.f32 %v2680, %v2681
      %v2683 = vsel %vm2565, %v2496, 0.0
      %v2684 = vadd.f32 %v2682, %v2683
      %v2685 = vsel %vm2565, %v2497, 0.0
      %v2686 = vadd.f32 %v2684, %v2685
      %v2687 = vsel %vm2565, %v2498, 0.0
      %v2688 = vadd.f32 %v2686, %v2687
      %v2689 = vsel %vm2565, %v2499, 0.0
      %v2690 = vadd.f32 %v2688, %v2689
      %v2691 = vsel %vm2565, %v2500, 0.0
      %v2692 = vadd.f32 %v2690, %v2691
      %v2693 = vsel %vm2565, %v2501, 0.0
      %v2694 = vadd.f32 %v2692, %v2693
      %v2695 = vsel %vm2565, %v2502, 0.0
      %v2696 = vadd.f32 %v2694, %v2695
      %v2697 = vsel %vm2565, %v2503, 0.0
      %v2698 = vadd.f32 %v2696, %v2697
      %v2699 = vsel %vm2565, %v2504, 0.0
      %v2700 = vadd.f32 %v2698, %v2699
      %v2701 = vsel %vm2565, %v2505, 0.0
      %v2702 = vadd.f32 %v2700, %v2701
      %v2703 = vsel %vm2565, %v2506, 0.0
      %v2704 = vadd.f32 %v2702, %v2703
      %v2705 = vsel %vm2565, %v2507, 0.0
      %v2706 = vadd.f32 %v2704, %v2705
      %v2707 = vsel %vm2565, %v2508, 0.0
      %v2708 = vadd.f32 %v2706, %v2707
      %v2709 = vsel %vm2565, %v2509, 0.0
      %v2710 = vadd.f32 %v2708, %v2709
      %v2711 = vsel %vm2565, %v2510, 0.0
      %v2712 = vadd.f32 %v2710, %v2711
      %v2713 = vsel %vm2565, %v2511, 0.0
      %v2714 = vadd.f32 %v2712, %v2713
      %v2715 = vsel %vm2565, %v2512, 0.0
      %v2716 = vadd.f32 %v2714, %v2715
      %v2717 = vsel %vm2565, %v2513, 0.0
      %v2718 = vadd.f32 %v2716, %v2717
      %v2719 = vsel %vm2565, %v2514, 0.0
      %v2720 = vadd.f32 %v2718, %v2719
      %v2721 = vsel %vm2565, %v2515, 0.0
      %v2722 = vadd.f32 %v2720, %v2721
      %v2723 = vsel %vm2565, %v2516, 0.0
      %v2724 = vadd.f32 %v2722, %v2723
      %v2725 = vsel %vm2565, %v2517, 0.0
      %v2726 = vadd.f32 %v2724, %v2725
      %v2727 = vsel %vm2565, %v2518, 0.0
      %v2728 = vadd.f32 %v2726, %v2727
      %v2729 = vsel %vm2565, %v2519, 0.0
      %v2730 = vadd.f32 %v2728, %v2729
      %v2731 = vsel %vm2565, %v2520, 0.0
      %v2732 = vadd.f32 %v2730, %v2731
      %v2733 = vsel %vm2565, %v2521, 0.0
      %v2734 = vadd.f32 %v2732, %v2733
      %v2735 = vsel %vm2565, %v2522, 0.0
      %v2736 = vadd.f32 %v2734, %v2735
      %v2737 = vsel %vm2565, %v2523, 0.0
      %v2738 = vadd.f32 %v2736, %v2737
      %v2739 = vsel %vm2565, %v2524, 0.0
      %v2740 = vadd.f32 %v2738, %v2739
      %v2741 = vsel %vm2565, %v2525, 0.0
      %v2742 = vadd.f32 %v2740, %v2741
      %v2743 = vsel %vm2565, %v2526, 0.0
      %v2744 = vadd.f32 %v2742, %v2743
      %v2745 = vsel %vm2565, %v2527, 0.0
      %v2746 = vadd.f32 %v2744, %v2745
      %v2747 = vsel %vm2565, %v2528, 0.0
      %v2748 = vadd.f32 %v2746, %v2747
      %v2749 = vsel %vm2565, %v2529, 0.0
      %v2750 = vadd.f32 %v2748, %v2749
      %v2751 = vsel %vm2565, %v2530, 0.0
      %v2752 = vadd.f32 %v2750, %v2751
      %v2753 = vsel %vm2565, %v2531, 0.0
      %v2754 = vadd.f32 %v2752, %v2753
      %v2755 = vsel %vm2565, %v2532, 0.0
      %v2756 = vadd.f32 %v2754, %v2755
      %v2757 = vsel %vm2565, %v2533, 0.0
      %v2758 = vadd.f32 %v2756, %v2757
      %v2759 = vsel %vm2565, %v2534, 0.0
      %v2760 = vadd.f32 %v2758, %v2759
      %v2761 = vsel %vm2565, %v2535, 0.0
      %v2762 = vadd.f32 %v2760, %v2761
      %v2763 = vsel %vm2565, %v2536, 0.0
      %v2764 = vadd.f32 %v2762, %v2763
      %v2765 = vsel %vm2565, %v2537, 0.0
      %v2766 = vadd.f32 %v2764, %v2765
      %v2767 = vsel %vm2565, %v2538, 0.0
      %v2768 = vadd.f32 %v2766, %v2767
      %v2769 = vsel %vm2565, %v2539, 0.0
      %v2770 = vadd.f32 %v2768, %v2769
      %v2771 = vsel %vm2565, %v2540, 0.0
      %v2772 = vadd.f32 %v2770, %v2771
      %v2773 = vsel %vm2565, %v2541, 0.0
      %v2774 = vadd.f32 %v2772, %v2773
      %v2775 = vsel %vm2565, %v2542, 0.0
      %v2776 = vadd.f32 %v2774, %v2775
      %v2777 = vsel %vm2565, %v2543, 0.0
      %v2778 = vadd.f32 %v2776, %v2777
      %v2779 = vsel %vm2565, %v2544, 0.0
      %v2780 = vadd.f32 %v2778, %v2779
      %v2781 = vsel %vm2565, %v2545, 0.0
      %v2782 = vadd.f32 %v2780, %v2781
      %v2783 = vsel %vm2565, %v2546, 0.0
      %v2784 = vadd.f32 %v2782, %v2783
      %v2785 = vsel %vm2565, %v2547, 0.0
      %v2786 = vadd.f32 %v2784, %v2785
      %v2787 = vsel %vm2565, %v2548, 0.0
      %v2788 = vadd.f32 %v2786, %v2787
      %v2789 = vsel %vm2565, %v2549, 0.0
      %v2790 = vadd.f32 %v2788, %v2789
      %v2791 = vsel %vm2565, %v2550, 0.0
      %v2792 = vadd.f32 %v2790, %v2791
      %v2793 = vsel %vm2565, %v2551, 0.0
      %v2794 = vadd.f32 %v2792, %v2793
      %v2795 = vsel %vm2565, %v2552, 0.0
      %v2796 = vadd.f32 %v2794, %v2795
      %v2797 = vsel %vm2565, %v2553, 0.0
      %v2798 = vadd.f32 %v2796, %v2797
      %v2799 = vsel %vm2565, %v2554, 0.0
      %v2800 = vadd.f32 %v2798, %v2799
      %v2801 = vsel %vm2565, %v2555, 0.0
      %v2802 = vadd.f32 %v2800, %v2801
      %v2803 = vsel %vm2565, %v2556, 0.0
      %v2804 = vadd.f32 %v2802, %v2803
      %v2805 = vsel %vm2565, %v2557, 0.0
      %v2806 = vadd.f32 %v2804, %v2805
      %v2807 = vsel %vm2565, %v2558, 0.0
      %v2808 = vadd.f32 %v2806, %v2807
      %v2809 = vsel %vm2565, %v2559, 0.0
      %v2810 = vadd.f32 %v2808, %v2809
      %v2811 = vsel %vm2565, %v2560, 0.0
      %v2812 = vadd.f32 %v2810, %v2811
      %v2813 = vsel %vm2565, %v2561, 0.0
      %v2814 = vadd.f32 %v2812, %v2813
      %v2815 = vsel %vm2565, %v2562, 0.0
      %v2816 = vadd.f32 %v2814, %v2815
      %v2817 = vsel %vm2565, %v2563, 0.0
      %v2818 = vadd.f32 %v2816, %v2817
      %v2819 = vsel %vm2565, %v2564, 0.0
      %v2820 = vadd.f32 %v2818, %v2819
      %2821 = vadd.xlane.f32.xlu0 %v2820
      %v2822 = vpop.xlane.xlu0 %2821
      %v2823 = vrot.slane %v2822, 4
      %v2824 = vadd.f32 %v2822, %v2823
      %v2825 = vrot.slane %v2824, 2
      %v2826 = vadd.f32 %v2824, %v2825
      %v2827 = vrot.slane %v2826, 1
      %v2828 = vadd.f32 %v2826, %v2827
      %s2829 = vtos %v2828
      %v2830 = vld [vmem:[%s361] sm:$0xff]
      %v2831 = vld [vmem:[%s361 + $0x8] sm:$0xff]
      %v2832 = vld [vmem:[%s361 + $0x10] sm:$0xff]
      %v2833 = vld [vmem:[%s361 + $0x18] sm:$0xff]
      %v2834 = vld [vmem:[%s361 + $0x20] sm:$0xff]
      %v2835 = vld [vmem:[%s361 + $0x28] sm:$0xff]
      %v2836 = vld [vmem:[%s361 + $0x30] sm:$0xff]
      %v2837 = vld [vmem:[%s361 + $0x38] sm:$0xff]
      %v2838 = vld [vmem:[%s361 + $0x40] sm:$0xff]
      %v2839 = vld [vmem:[%s361 + $0x48] sm:$0xff]
      %v2840 = vld [vmem:[%s361 + $0x50] sm:$0xff]
      %v2841 = vld [vmem:[%s361 + $0x58] sm:$0xff]
      %v2842 = vld [vmem:[%s361 + $0x60] sm:$0xff]
      %v2843 = vld [vmem:[%s361 + $0x68] sm:$0xff]
      %v2844 = vld [vmem:[%s361 + $0x70] sm:$0xff]
      %v2845 = vld [vmem:[%s361 + $0x78] sm:$0xff]
      %v2846 = vld [vmem:[%s361 + $0x80] sm:$0xff]
      %v2847 = vld [vmem:[%s361 + $0x88] sm:$0xff]
      %v2848 = vld [vmem:[%s361 + $0x90] sm:$0xff]
      %v2849 = vld [vmem:[%s361 + $0x98] sm:$0xff]
      %v2850 = vld [vmem:[%s361 + $0xa0] sm:$0xff]
      %v2851 = vld [vmem:[%s361 + $0xa8] sm:$0xff]
      %v2852 = vld [vmem:[%s361 + $0xb0] sm:$0xff]
      %v2853 = vld [vmem:[%s361 + $0xb8] sm:$0xff]
      %v2854 = vld [vmem:[%s361 + $0xc0] sm:$0xff]
      %v2855 = vld [vmem:[%s361 + $0xc8] sm:$0xff]
      %v2856 = vld [vmem:[%s361 + $0xd0] sm:$0xff]
      %v2857 = vld [vmem:[%s361 + $0xd8] sm:$0xff]
      %v2858 = vld [vmem:[%s361 + $0xe0] sm:$0xff]
      %v2859 = vld [vmem:[%s361 + $0xe8] sm:$0xff]
      %v2860 = vld [vmem:[%s361 + $0xf0] sm:$0xff]
      %v2861 = vld [vmem:[%s361 + $0xf8] sm:$0xff]
      %v2862 = vld [vmem:[%s361 + $0x100] sm:$0xff]
      %v2863 = vld [vmem:[%s361 + $0x108] sm:$0xff]
      %v2864 = vld [vmem:[%s361 + $0x110] sm:$0xff]
      %v2865 = vld [vmem:[%s361 + $0x118] sm:$0xff]
      %v2866 = vld [vmem:[%s361 + $0x120] sm:$0xff]
      %v2867 = vld [vmem:[%s361 + $0x128] sm:$0xff]
      %v2868 = vld [vmem:[%s361 + $0x130] sm:$0xff]
      %v2869 = vld [vmem:[%s361 + $0x138] sm:$0xff]
      %v2870 = vld [vmem:[%s361 + $0x140] sm:$0xff]
      %v2871 = vld [vmem:[%s361 + $0x148] sm:$0xff]
      %v2872 = vld [vmem:[%s361 + $0x150] sm:$0xff]
      %v2873 = vld [vmem:[%s361 + $0x158] sm:$0xff]
      %v2874 = vld [vmem:[%s361 + $0x160] sm:$0xff]
      %v2875 = vld [vmem:[%s361 + $0x168] sm:$0xff]
      %v2876 = vld [vmem:[%s361 + $0x170] sm:$0xff]
      %v2877 = vld [vmem:[%s361 + $0x178] sm:$0xff]
      %v2878 = vld [vmem:[%s361 + $0x180] sm:$0xff]
      %v2879 = vld [vmem:[%s361 + $0x188] sm:$0xff]
      %v2880 = vld [vmem:[%s361 + $0x190] sm:$0xff]
      %v2881 = vld [vmem:[%s361 + $0x198] sm:$0xff]
      %v2882 = vld [vmem:[%s361 + $0x1a0] sm:$0xff]
      %v2883 = vld [vmem:[%s361 + $0x1a8] sm:$0xff]
      %v2884 = vld [vmem:[%s361 + $0x1b0] sm:$0xff]
      %v2885 = vld [vmem:[%s361 + $0x1b8] sm:$0xff]
      %v2886 = vld [vmem:[%s361 + $0x1c0] sm:$0xff]
      %v2887 = vld [vmem:[%s361 + $0x1c8] sm:$0xff]
      %v2888 = vld [vmem:[%s361 + $0x1d0] sm:$0xff]
      %v2889 = vld [vmem:[%s361 + $0x1d8] sm:$0xff]
      %v2890 = vld [vmem:[%s361 + $0x1e0] sm:$0xff]
      %v2891 = vld [vmem:[%s361 + $0x1e8] sm:$0xff]
      %v2892 = vld [vmem:[%s361 + $0x1f0] sm:$0xff]
      %v2893 = vld [vmem:[%s361 + $0x1f8] sm:$0xff]
      %v2894 = vld [vmem:[%s361 + $0x200] sm:$0xff]
      %v2895 = vld [vmem:[%s361 + $0x208] sm:$0xff]
      %v2896 = vld [vmem:[%s361 + $0x210] sm:$0xff]
      %v2897 = vld [vmem:[%s361 + $0x218] sm:$0xff]
      %v2898 = vld [vmem:[%s361 + $0x220] sm:$0xff]
      %v2899 = vld [vmem:[%s361 + $0x228] sm:$0xff]
      %v2900 = vld [vmem:[%s361 + $0x230] sm:$0xff]
      %v2901 = vld [vmem:[%s361 + $0x238] sm:$0xff]
      %v2902 = vld [vmem:[%s361 + $0x240] sm:$0xff]
      %v2903 = vld [vmem:[%s361 + $0x248] sm:$0xff]
      %v2904 = vld [vmem:[%s361 + $0x250] sm:$0xff]
      %v2905 = vld [vmem:[%s361 + $0x258] sm:$0xff]
      %v2906 = vld [vmem:[%s361 + $0x260] sm:$0xff]
      %v2907 = vld [vmem:[%s361 + $0x268] sm:$0xff]
      %v2908 = vld [vmem:[%s361 + $0x270] sm:$0xff]
      %v2909 = vld [vmem:[%s361 + $0x278] sm:$0xff]
      %v2910 = vld [vmem:[%s361 + $0x280] sm:$0xff]
      %v2911 = vld [vmem:[%s361 + $0x288] sm:$0xff]
      %v2912 = vld [vmem:[%s361 + $0x290] sm:$0xff]
      %v2913 = vld [vmem:[%s361 + $0x298] sm:$0xff]
      %v2914 = vld [vmem:[%s361 + $0x2a0] sm:$0xff]
      %v2915 = vld [vmem:[%s361 + $0x2a8] sm:$0xff]
      %v2916 = vld [vmem:[%s361 + $0x2b0] sm:$0xff]
      %v2917 = vld [vmem:[%s361 + $0x2b8] sm:$0xff]
      %v2918 = vld [vmem:[%s361 + $0x2c0] sm:$0xff]
      %v2919 = vld [vmem:[%s361 + $0x2c8] sm:$0xff]
      %v2920 = vld [vmem:[%s361 + $0x2d0] sm:$0xff]
      %v2921 = vld [vmem:[%s361 + $0x2d8] sm:$0xff]
      %v2922 = vld [vmem:[%s361 + $0x2e0] sm:$0xff]
      %v2923 = vld [vmem:[%s361 + $0x2e8] sm:$0xff]
      %v2924 = vld [vmem:[%s361 + $0x2f0] sm:$0xff]
      %v2925 = vld [vmem:[%s361 + $0x2f8] sm:$0xff]
      %v2926 = vld [vmem:[%s361 + $0x300] sm:$0xff]
      %v2927 = vld [vmem:[%s361 + $0x308] sm:$0xff]
      %v2928 = vld [vmem:[%s361 + $0x310] sm:$0xff]
      %v2929 = vld [vmem:[%s361 + $0x318] sm:$0xff]
      %v2930 = vld [vmem:[%s361 + $0x320] sm:$0xff]
      %v2931 = vld [vmem:[%s361 + $0x328] sm:$0xff]
      %v2932 = vld [vmem:[%s361 + $0x330] sm:$0xff]
      %v2933 = vld [vmem:[%s361 + $0x338] sm:$0xff]
      %v2934 = vld [vmem:[%s361 + $0x340] sm:$0xff]
      %v2935 = vld [vmem:[%s361 + $0x348] sm:$0xff]
      %v2936 = vld [vmem:[%s361 + $0x350] sm:$0xff]
      %v2937 = vld [vmem:[%s361 + $0x358] sm:$0xff]
      %v2938 = vld [vmem:[%s361 + $0x360] sm:$0xff]
      %v2939 = vld [vmem:[%s361 + $0x368] sm:$0xff]
      %v2940 = vld [vmem:[%s361 + $0x370] sm:$0xff]
      %v2941 = vld [vmem:[%s361 + $0x378] sm:$0xff]
      %v2942 = vld [vmem:[%s361 + $0x380] sm:$0xff]
      %v2943 = vld [vmem:[%s361 + $0x388] sm:$0xff]
      %v2944 = vld [vmem:[%s361 + $0x390] sm:$0xff]
      %v2945 = vld [vmem:[%s361 + $0x398] sm:$0xff]
      %v2946 = vld [vmem:[%s361 + $0x3a0] sm:$0xff]
      %v2947 = vld [vmem:[%s361 + $0x3a8] sm:$0xff]
      %v2948 = vld [vmem:[%s361 + $0x3b0] sm:$0xff]
      %v2949 = vld [vmem:[%s361 + $0x3b8] sm:$0xff]
      %v2950 = vld [vmem:[%s361 + $0x3c0] sm:$0xff]
      %v2951 = vld [vmem:[%s361 + $0x3c8] sm:$0xff]
      %v2952 = vld [vmem:[%s361 + $0x3d0] sm:$0xff]
      %v2953 = vld [vmem:[%s361 + $0x3d8] sm:$0xff]
      %v2954 = vld [vmem:[%s361 + $0x3e0] sm:$0xff]
      %v2955 = vld [vmem:[%s361 + $0x3e8] sm:$0xff]
      %v2956 = vld [vmem:[%s361 + $0x3f0] sm:$0xff]
      %v2957 = vld [vmem:[%s361 + $0x3f8] sm:$0xff]
      %v2958 = vsel %vm2565, %v2830, -inf
      %2959 = vmax.xlane.f32.xlu0 %v2958
      %v2960 = vpop.xlane.xlu0 %2959
      %v2961 = vsel %vm2565, %v2831, -inf
      %2962 = vmax.xlane.f32.xlu0 %v2961
      %v2963 = vpop.xlane.xlu0 %2962
      %v2964 = vsel %vm2565, %v2832, -inf
      %2965 = vmax.xlane.f32.xlu0 %v2964
      %v2966 = vpop.xlane.xlu0 %2965
      %v2967 = vsel %vm2565, %v2833, -inf
      %2968 = vmax.xlane.f32.xlu0 %v2967
      %v2969 = vpop.xlane.xlu0 %2968
      %v2970 = vsel %vm2565, %v2834, -inf
      %2971 = vmax.xlane.f32.xlu0 %v2970
      %v2972 = vpop.xlane.xlu0 %2971
      %v2973 = vsel %vm2565, %v2835, -inf
      %2974 = vmax.xlane.f32.xlu0 %v2973
      %v2975 = vpop.xlane.xlu0 %2974
      %v2976 = vsel %vm2565, %v2836, -inf
      %2977 = vmax.xlane.f32.xlu0 %v2976
      %v2978 = vpop.xlane.xlu0 %2977
      %v2979 = vsel %vm2565, %v2837, -inf
      %2980 = vmax.xlane.f32.xlu0 %v2979
      %v2981 = vpop.xlane.xlu0 %2980
      %v2982 = vsel %vm2565, %v2838, -inf
      %2983 = vmax.xlane.f32.xlu0 %v2982
      %v2984 = vpop.xlane.xlu0 %2983
      %v2985 = vsel %vm2565, %v2839, -inf
      %2986 = vmax.xlane.f32.xlu0 %v2985
      %v2987 = vpop.xlane.xlu0 %2986
      %v2988 = vsel %vm2565, %v2840, -inf
      %2989 = vmax.xlane.f32.xlu0 %v2988
      %v2990 = vpop.xlane.xlu0 %2989
      %v2991 = vsel %vm2565, %v2841, -inf
      %2992 = vmax.xlane.f32.xlu0 %v2991
      %v2993 = vpop.xlane.xlu0 %2992
      %v2994 = vsel %vm2565, %v2842, -inf
      %2995 = vmax.xlane.f32.xlu0 %v2994
      %v2996 = vpop.xlane.xlu0 %2995
      %v2997 = vsel %vm2565, %v2843, -inf
      %2998 = vmax.xlane.f32.xlu0 %v2997
      %v2999 = vpop.xlane.xlu0 %2998
      %v3000 = vsel %vm2565, %v2844, -inf
      %3001 = vmax.xlane.f32.xlu0 %v3000
      %v3002 = vpop.xlane.xlu0 %3001
      %v3003 = vsel %vm2565, %v2845, -inf
      %3004 = vmax.xlane.f32.xlu0 %v3003
      %v3005 = vpop.xlane.xlu0 %3004
      %v3006 = vsel %vm2565, %v2846, -inf
      %3007 = vmax.xlane.f32.xlu0 %v3006
      %v3008 = vpop.xlane.xlu0 %3007
      %v3009 = vsel %vm2565, %v2847, -inf
      %3010 = vmax.xlane.f32.xlu0 %v3009
      %v3011 = vpop.xlane.xlu0 %3010
      %v3012 = vsel %vm2565, %v2848, -inf
      %3013 = vmax.xlane.f32.xlu0 %v3012
      %v3014 = vpop.xlane.xlu0 %3013
      %v3015 = vsel %vm2565, %v2849, -inf
      %3016 = vmax.xlane.f32.xlu0 %v3015
      %v3017 = vpop.xlane.xlu0 %3016
      %v3018 = vsel %vm2565, %v2850, -inf
      %3019 = vmax.xlane.f32.xlu0 %v3018
      %v3020 = vpop.xlane.xlu0 %3019
      %v3021 = vsel %vm2565, %v2851, -inf
      %3022 = vmax.xlane.f32.xlu0 %v3021
      %v3023 = vpop.xlane.xlu0 %3022
      %v3024 = vsel %vm2565, %v2852, -inf
      %3025 = vmax.xlane.f32.xlu0 %v3024
      %v3026 = vpop.xlane.xlu0 %3025
      %v3027 = vsel %vm2565, %v2853, -inf
      %3028 = vmax.xlane.f32.xlu0 %v3027
      %v3029 = vpop.xlane.xlu0 %3028
      %v3030 = vsel %vm2565, %v2854, -inf
      %3031 = vmax.xlane.f32.xlu0 %v3030
      %v3032 = vpop.xlane.xlu0 %3031
      %v3033 = vsel %vm2565, %v2855, -inf
      %3034 = vmax.xlane.f32.xlu0 %v3033
      %v3035 = vpop.xlane.xlu0 %3034
      %v3036 = vsel %vm2565, %v2856, -inf
      %3037 = vmax.xlane.f32.xlu0 %v3036
      %v3038 = vpop.xlane.xlu0 %3037
      %v3039 = vsel %vm2565, %v2857, -inf
      %3040 = vmax.xlane.f32.xlu0 %v3039
      %v3041 = vpop.xlane.xlu0 %3040
      %v3042 = vsel %vm2565, %v2858, -inf
      %3043 = vmax.xlane.f32.xlu0 %v3042
      %v3044 = vpop.xlane.xlu0 %3043
      %v3045 = vsel %vm2565, %v2859, -inf
      %3046 = vmax.xlane.f32.xlu0 %v3045
      %v3047 = vpop.xlane.xlu0 %3046
      %v3048 = vsel %vm2565, %v2860, -inf
      %3049 = vmax.xlane.f32.xlu0 %v3048
      %v3050 = vpop.xlane.xlu0 %3049
      %v3051 = vsel %vm2565, %v2861, -inf
      %3052 = vmax.xlane.f32.xlu0 %v3051
      %v3053 = vpop.xlane.xlu0 %3052
      %v3054 = vsel %vm2565, %v2862, -inf
      %3055 = vmax.xlane.f32.xlu0 %v3054
      %v3056 = vpop.xlane.xlu0 %3055
      %v3057 = vsel %vm2565, %v2863, -inf
      %3058 = vmax.xlane.f32.xlu0 %v3057
      %v3059 = vpop.xlane.xlu0 %3058
      %v3060 = vsel %vm2565, %v2864, -inf
      %3061 = vmax.xlane.f32.xlu0 %v3060
      %v3062 = vpop.xlane.xlu0 %3061
      %v3063 = vsel %vm2565, %v2865, -inf
      %3064 = vmax.xlane.f32.xlu0 %v3063
      %v3065 = vpop.xlane.xlu0 %3064
      %v3066 = vsel %vm2565, %v2866, -inf
      %3067 = vmax.xlane.f32.xlu0 %v3066
      %v3068 = vpop.xlane.xlu0 %3067
      %v3069 = vsel %vm2565, %v2867, -inf
      %3070 = vmax.xlane.f32.xlu0 %v3069
      %v3071 = vpop.xlane.xlu0 %3070
      %v3072 = vsel %vm2565, %v2868, -inf
      %3073 = vmax.xlane.f32.xlu0 %v3072
      %v3074 = vpop.xlane.xlu0 %3073
      %v3075 = vsel %vm2565, %v2869, -inf
      %3076 = vmax.xlane.f32.xlu0 %v3075
      %v3077 = vpop.xlane.xlu0 %3076
      %v3078 = vsel %vm2565, %v2870, -inf
      %3079 = vmax.xlane.f32.xlu0 %v3078
      %v3080 = vpop.xlane.xlu0 %3079
      %v3081 = vsel %vm2565, %v2871, -inf
      %3082 = vmax.xlane.f32.xlu0 %v3081
      %v3083 = vpop.xlane.xlu0 %3082
      %v3084 = vsel %vm2565, %v2872, -inf
      %3085 = vmax.xlane.f32.xlu0 %v3084
      %v3086 = vpop.xlane.xlu0 %3085
      %v3087 = vsel %vm2565, %v2873, -inf
      %3088 = vmax.xlane.f32.xlu0 %v3087
      %v3089 = vpop.xlane.xlu0 %3088
      %v3090 = vsel %vm2565, %v2874, -inf
      %3091 = vmax.xlane.f32.xlu0 %v3090
      %v3092 = vpop.xlane.xlu0 %3091
      %v3093 = vsel %vm2565, %v2875, -inf
      %3094 = vmax.xlane.f32.xlu0 %v3093
      %v3095 = vpop.xlane.xlu0 %3094
      %v3096 = vsel %vm2565, %v2876, -inf
      %3097 = vmax.xlane.f32.xlu0 %v3096
      %v3098 = vpop.xlane.xlu0 %3097
      %v3099 = vsel %vm2565, %v2877, -inf
      %3100 = vmax.xlane.f32.xlu0 %v3099
      %v3101 = vpop.xlane.xlu0 %3100
      %v3102 = vsel %vm2565, %v2878, -inf
      %3103 = vmax.xlane.f32.xlu0 %v3102
      %v3104 = vpop.xlane.xlu0 %3103
      %v3105 = vsel %vm2565, %v2879, -inf
      %3106 = vmax.xlane.f32.xlu0 %v3105
      %v3107 = vpop.xlane.xlu0 %3106
      %v3108 = vsel %vm2565, %v2880, -inf
      %3109 = vmax.xlane.f32.xlu0 %v3108
      %v3110 = vpop.xlane.xlu0 %3109
      %v3111 = vsel %vm2565, %v2881, -inf
      %3112 = vmax.xlane.f32.xlu0 %v3111
      %v3113 = vpop.xlane.xlu0 %3112
      %v3114 = vsel %vm2565, %v2882, -inf
      %3115 = vmax.xlane.f32.xlu0 %v3114
      %v3116 = vpop.xlane.xlu0 %3115
      %v3117 = vsel %vm2565, %v2883, -inf
      %3118 = vmax.xlane.f32.xlu0 %v3117
      %v3119 = vpop.xlane.xlu0 %3118
      %v3120 = vsel %vm2565, %v2884, -inf
      %3121 = vmax.xlane.f32.xlu0 %v3120
      %v3122 = vpop.xlane.xlu0 %3121
      %v3123 = vsel %vm2565, %v2885, -inf
      %3124 = vmax.xlane.f32.xlu0 %v3123
      %v3125 = vpop.xlane.xlu0 %3124
      %v3126 = vsel %vm2565, %v2886, -inf
      %3127 = vmax.xlane.f32.xlu0 %v3126
      %v3128 = vpop.xlane.xlu0 %3127
      %v3129 = vsel %vm2565, %v2887, -inf
      %3130 = vmax.xlane.f32.xlu0 %v3129
      %v3131 = vpop.xlane.xlu0 %3130
      %v3132 = vsel %vm2565, %v2888, -inf
      %3133 = vmax.xlane.f32.xlu0 %v3132
      %v3134 = vpop.xlane.xlu0 %3133
      %v3135 = vsel %vm2565, %v2889, -inf
      %3136 = vmax.xlane.f32.xlu0 %v3135
      %v3137 = vpop.xlane.xlu0 %3136
      %v3138 = vsel %vm2565, %v2890, -inf
      %3139 = vmax.xlane.f32.xlu0 %v3138
      %v3140 = vpop.xlane.xlu0 %3139
      %v3141 = vsel %vm2565, %v2891, -inf
      %3142 = vmax.xlane.f32.xlu0 %v3141
      %v3143 = vpop.xlane.xlu0 %3142
      %v3144 = vsel %vm2565, %v2892, -inf
      %3145 = vmax.xlane.f32.xlu0 %v3144
      %v3146 = vpop.xlane.xlu0 %3145
      %v3147 = vsel %vm2565, %v2893, -inf
      %3148 = vmax.xlane.f32.xlu0 %v3147
      %v3149 = vpop.xlane.xlu0 %3148
      %v3150 = vsel %vm2565, %v2894, -inf
      %3151 = vmax.xlane.f32.xlu0 %v3150
      %v3152 = vpop.xlane.xlu0 %3151
      %v3153 = vsel %vm2565, %v2895, -inf
      %3154 = vmax.xlane.f32.xlu0 %v3153
      %v3155 = vpop.xlane.xlu0 %3154
      %v3156 = vsel %vm2565, %v2896, -inf
      %3157 = vmax.xlane.f32.xlu0 %v3156
      %v3158 = vpop.xlane.xlu0 %3157
      %v3159 = vsel %vm2565, %v2897, -inf
      %3160 = vmax.xlane.f32.xlu0 %v3159
      %v3161 = vpop.xlane.xlu0 %3160
      %v3162 = vsel %vm2565, %v2898, -inf
      %3163 = vmax.xlane.f32.xlu0 %v3162
      %v3164 = vpop.xlane.xlu0 %3163
      %v3165 = vsel %vm2565, %v2899, -inf
      %3166 = vmax.xlane.f32.xlu0 %v3165
      %v3167 = vpop.xlane.xlu0 %3166
      %v3168 = vsel %vm2565, %v2900, -inf
      %3169 = vmax.xlane.f32.xlu0 %v3168
      %v3170 = vpop.xlane.xlu0 %3169
      %v3171 = vsel %vm2565, %v2901, -inf
      %3172 = vmax.xlane.f32.xlu0 %v3171
      %v3173 = vpop.xlane.xlu0 %3172
      %v3174 = vsel %vm2565, %v2902, -inf
      %3175 = vmax.xlane.f32.xlu0 %v3174
      %v3176 = vpop.xlane.xlu0 %3175
      %v3177 = vsel %vm2565, %v2903, -inf
      %3178 = vmax.xlane.f32.xlu0 %v3177
      %v3179 = vpop.xlane.xlu0 %3178
      %v3180 = vsel %vm2565, %v2904, -inf
      %3181 = vmax.xlane.f32.xlu0 %v3180
      %v3182 = vpop.xlane.xlu0 %3181
      %v3183 = vsel %vm2565, %v2905, -inf
      %3184 = vmax.xlane.f32.xlu0 %v3183
      %v3185 = vpop.xlane.xlu0 %3184
      %v3186 = vsel %vm2565, %v2906, -inf
      %3187 = vmax.xlane.f32.xlu0 %v3186
      %v3188 = vpop.xlane.xlu0 %3187
      %v3189 = vsel %vm2565, %v2907, -inf
      %3190 = vmax.xlane.f32.xlu0 %v3189
      %v3191 = vpop.xlane.xlu0 %3190
      %v3192 = vsel %vm2565, %v2908, -inf
      %3193 = vmax.xlane.f32.xlu0 %v3192
      %v3194 = vpop.xlane.xlu0 %3193
      %v3195 = vsel %vm2565, %v2909, -inf
      %3196 = vmax.xlane.f32.xlu0 %v3195
      %v3197 = vpop.xlane.xlu0 %3196
      %v3198 = vsel %vm2565, %v2910, -inf
      %3199 = vmax.xlane.f32.xlu0 %v3198
      %v3200 = vpop.xlane.xlu0 %3199
      %v3201 = vsel %vm2565, %v2911, -inf
      %3202 = vmax.xlane.f32.xlu0 %v3201
      %v3203 = vpop.xlane.xlu0 %3202
      %v3204 = vsel %vm2565, %v2912, -inf
      %3205 = vmax.xlane.f32.xlu0 %v3204
      %v3206 = vpop.xlane.xlu0 %3205
      %v3207 = vsel %vm2565, %v2913, -inf
      %3208 = vmax.xlane.f32.xlu0 %v3207
      %v3209 = vpop.xlane.xlu0 %3208
      %v3210 = vsel %vm2565, %v2914, -inf
      %3211 = vmax.xlane.f32.xlu0 %v3210
      %v3212 = vpop.xlane.xlu0 %3211
      %v3213 = vsel %vm2565, %v2915, -inf
      %3214 = vmax.xlane.f32.xlu0 %v3213
      %v3215 = vpop.xlane.xlu0 %3214
      %v3216 = vsel %vm2565, %v2916, -inf
      %3217 = vmax.xlane.f32.xlu0 %v3216
      %v3218 = vpop.xlane.xlu0 %3217
      %v3219 = vsel %vm2565, %v2917, -inf
      %3220 = vmax.xlane.f32.xlu0 %v3219
      %v3221 = vpop.xlane.xlu0 %3220
      %v3222 = vsel %vm2565, %v2918, -inf
      %3223 = vmax.xlane.f32.xlu0 %v3222
      %v3224 = vpop.xlane.xlu0 %3223
      %v3225 = vsel %vm2565, %v2919, -inf
      %3226 = vmax.xlane.f32.xlu0 %v3225
      %v3227 = vpop.xlane.xlu0 %3226
      %v3228 = vsel %vm2565, %v2920, -inf
      %3229 = vmax.xlane.f32.xlu0 %v3228
      %v3230 = vpop.xlane.xlu0 %3229
      %v3231 = vsel %vm2565, %v2921, -inf
      %3232 = vmax.xlane.f32.xlu0 %v3231
      %v3233 = vpop.xlane.xlu0 %3232
      %v3234 = vsel %vm2565, %v2922, -inf
      %3235 = vmax.xlane.f32.xlu0 %v3234
      %v3236 = vpop.xlane.xlu0 %3235
      %v3237 = vsel %vm2565, %v2923, -inf
      %3238 = vmax.xlane.f32.xlu0 %v3237
      %v3239 = vpop.xlane.xlu0 %3238
      %v3240 = vsel %vm2565, %v2924, -inf
      %3241 = vmax.xlane.f32.xlu0 %v3240
      %v3242 = vpop.xlane.xlu0 %3241
      %v3243 = vsel %vm2565, %v2925, -inf
      %3244 = vmax.xlane.f32.xlu0 %v3243
      %v3245 = vpop.xlane.xlu0 %3244
      %v3246 = vsel %vm2565, %v2926, -inf
      %3247 = vmax.xlane.f32.xlu0 %v3246
      %v3248 = vpop.xlane.xlu0 %3247
      %v3249 = vsel %vm2565, %v2927, -inf
      %3250 = vmax.xlane.f32.xlu0 %v3249
      %v3251 = vpop.xlane.xlu0 %3250
      %v3252 = vsel %vm2565, %v2928, -inf
      %3253 = vmax.xlane.f32.xlu0 %v3252
      %v3254 = vpop.xlane.xlu0 %3253
      %v3255 = vsel %vm2565, %v2929, -inf
      %3256 = vmax.xlane.f32.xlu0 %v3255
      %v3257 = vpop.xlane.xlu0 %3256
      %v3258 = vsel %vm2565, %v2930, -inf
      %3259 = vmax.xlane.f32.xlu0 %v3258
      %v3260 = vpop.xlane.xlu0 %3259
      %v3261 = vsel %vm2565, %v2931, -inf
      %3262 = vmax.xlane.f32.xlu0 %v3261
      %v3263 = vpop.xlane.xlu0 %3262
      %v3264 = vsel %vm2565, %v2932, -inf
      %3265 = vmax.xlane.f32.xlu0 %v3264
      %v3266 = vpop.xlane.xlu0 %3265
      %v3267 = vsel %vm2565, %v2933, -inf
      %3268 = vmax.xlane.f32.xlu0 %v3267
      %v3269 = vpop.xlane.xlu0 %3268
      %v3270 = vsel %vm2565, %v2934, -inf
      %3271 = vmax.xlane.f32.xlu0 %v3270
      %v3272 = vpop.xlane.xlu0 %3271
      %v3273 = vsel %vm2565, %v2935, -inf
      %3274 = vmax.xlane.f32.xlu0 %v3273
      %v3275 = vpop.xlane.xlu0 %3274
      %v3276 = vsel %vm2565, %v2936, -inf
      %3277 = vmax.xlane.f32.xlu0 %v3276
      %v3278 = vpop.xlane.xlu0 %3277
      %v3279 = vsel %vm2565, %v2937, -inf
      %3280 = vmax.xlane.f32.xlu0 %v3279
      %v3281 = vpop.xlane.xlu0 %3280
      %v3282 = vsel %vm2565, %v2938, -inf
      %3283 = vmax.xlane.f32.xlu0 %v3282
      %v3284 = vpop.xlane.xlu0 %3283
      %v3285 = vsel %vm2565, %v2939, -inf
      %3286 = vmax.xlane.f32.xlu0 %v3285
      %v3287 = vpop.xlane.xlu0 %3286
      %v3288 = vsel %vm2565, %v2940, -inf
      %3289 = vmax.xlane.f32.xlu0 %v3288
      %v3290 = vpop.xlane.xlu0 %3289
      %v3291 = vsel %vm2565, %v2941, -inf
      %3292 = vmax.xlane.f32.xlu0 %v3291
      %v3293 = vpop.xlane.xlu0 %3292
      %v3294 = vsel %vm2565, %v2942, -inf
      %3295 = vmax.xlane.f32.xlu0 %v3294
      %v3296 = vpop.xlane.xlu0 %3295
      %v3297 = vsel %vm2565, %v2943, -inf
      %3298 = vmax.xlane.f32.xlu0 %v3297
      %v3299 = vpop.xlane.xlu0 %3298
      %v3300 = vsel %vm2565, %v2944, -inf
      %3301 = vmax.xlane.f32.xlu0 %v3300
      %v3302 = vpop.xlane.xlu0 %3301
      %v3303 = vsel %vm2565, %v2945, -inf
      %3304 = vmax.xlane.f32.xlu0 %v3303
      %v3305 = vpop.xlane.xlu0 %3304
      %v3306 = vsel %vm2565, %v2946, -inf
      %3307 = vmax.xlane.f32.xlu0 %v3306
      %v3308 = vpop.xlane.xlu0 %3307
      %v3309 = vsel %vm2565, %v2947, -inf
      %3310 = vmax.xlane.f32.xlu0 %v3309
      %v3311 = vpop.xlane.xlu0 %3310
      %v3312 = vsel %vm2565, %v2948, -inf
      %3313 = vmax.xlane.f32.xlu0 %v3312
      %v3314 = vpop.xlane.xlu0 %3313
      %v3315 = vsel %vm2565, %v2949, -inf
      %3316 = vmax.xlane.f32.xlu0 %v3315
      %v3317 = vpop.xlane.xlu0 %3316
      %v3318 = vsel %vm2565, %v2950, -inf
      %3319 = vmax.xlane.f32.xlu0 %v3318
      %v3320 = vpop.xlane.xlu0 %3319
      %v3321 = vsel %vm2565, %v2951, -inf
      %3322 = vmax.xlane.f32.xlu0 %v3321
      %v3323 = vpop.xlane.xlu0 %3322
      %v3324 = vsel %vm2565, %v2952, -inf
      %3325 = vmax.xlane.f32.xlu0 %v3324
      %v3326 = vpop.xlane.xlu0 %3325
      %v3327 = vsel %vm2565, %v2953, -inf
      %3328 = vmax.xlane.f32.xlu0 %v3327
      %v3329 = vpop.xlane.xlu0 %3328
      %v3330 = vsel %vm2565, %v2954, -inf
      %3331 = vmax.xlane.f32.xlu0 %v3330
      %v3332 = vpop.xlane.xlu0 %3331
      %v3333 = vsel %vm2565, %v2955, -inf
      %3334 = vmax.xlane.f32.xlu0 %v3333
      %v3335 = vpop.xlane.xlu0 %3334
      %v3336 = vsel %vm2565, %v2956, -inf
      %3337 = vmax.xlane.f32.xlu0 %v3336
      %v3338 = vpop.xlane.xlu0 %3337
      %v3339 = vsel %vm2565, %v2957, -inf
      %3340 = vmax.xlane.f32.xlu0 %v3339
      %v3341 = vpop.xlane.xlu0 %3340
      %v3342 = vsub.f32 %v2830, %v2960
      %v3343 = vsub.f32 %v2831, %v2963
      %v3344 = vsub.f32 %v2832, %v2966
      %v3345 = vsub.f32 %v2833, %v2969
      %v3346 = vsub.f32 %v2834, %v2972
      %v3347 = vsub.f32 %v2835, %v2975
      %v3348 = vsub.f32 %v2836, %v2978
      %v3349 = vsub.f32 %v2837, %v2981
      %v3350 = vsub.f32 %v2838, %v2984
      %v3351 = vsub.f32 %v2839, %v2987
      %v3352 = vsub.f32 %v2840, %v2990
      %v3353 = vsub.f32 %v2841, %v2993
      %v3354 = vsub.f32 %v2842, %v2996
      %v3355 = vsub.f32 %v2843, %v2999
      %v3356 = vsub.f32 %v2844, %v3002
      %v3357 = vsub.f32 %v2845, %v3005
      %v3358 = vsub.f32 %v2846, %v3008
      %v3359 = vsub.f32 %v2847, %v3011
      %v3360 = vsub.f32 %v2848, %v3014
      %v3361 = vsub.f32 %v2849, %v3017
      %v3362 = vsub.f32 %v2850, %v3020
      %v3363 = vsub.f32 %v2851, %v3023
      %v3364 = vsub.f32 %v2852, %v3026
      %v3365 = vsub.f32 %v2853, %v3029
      %v3366 = vsub.f32 %v2854, %v3032
      %v3367 = vsub.f32 %v2855, %v3035
      %v3368 = vsub.f32 %v2856, %v3038
      %v3369 = vsub.f32 %v2857, %v3041
      %v3370 = vsub.f32 %v2858, %v3044
      %v3371 = vsub.f32 %v2859, %v3047
      %v3372 = vsub.f32 %v2860, %v3050
      %v3373 = vsub.f32 %v2861, %v3053
      %v3374 = vsub.f32 %v2862, %v3056
      %v3375 = vsub.f32 %v2863, %v3059
      %v3376 = vsub.f32 %v2864, %v3062
      %v3377 = vsub.f32 %v2865, %v3065
      %v3378 = vsub.f32 %v2866, %v3068
      %v3379 = vsub.f32 %v2867, %v3071
      %v3380 = vsub.f32 %v2868, %v3074
      %v3381 = vsub.f32 %v2869, %v3077
      %v3382 = vsub.f32 %v2870, %v3080
      %v3383 = vsub.f32 %v2871, %v3083
      %v3384 = vsub.f32 %v2872, %v3086
      %v3385 = vsub.f32 %v2873, %v3089
      %v3386 = vsub.f32 %v2874, %v3092
      %v3387 = vsub.f32 %v2875, %v3095
      %v3388 = vsub.f32 %v2876, %v3098
      %v3389 = vsub.f32 %v2877, %v3101
      %v3390 = vsub.f32 %v2878, %v3104
      %v3391 = vsub.f32 %v2879, %v3107
      %v3392 = vsub.f32 %v2880, %v3110
      %v3393 = vsub.f32 %v2881, %v3113
      %v3394 = vsub.f32 %v2882, %v3116
      %v3395 = vsub.f32 %v2883, %v3119
      %v3396 = vsub.f32 %v2884, %v3122
      %v3397 = vsub.f32 %v2885, %v3125
      %v3398 = vsub.f32 %v2886, %v3128
      %v3399 = vsub.f32 %v2887, %v3131
      %v3400 = vsub.f32 %v2888, %v3134
      %v3401 = vsub.f32 %v2889, %v3137
      %v3402 = vsub.f32 %v2890, %v3140
      %v3403 = vsub.f32 %v2891, %v3143
      %v3404 = vsub.f32 %v2892, %v3146
      %v3405 = vsub.f32 %v2893, %v3149
      %v3406 = vsub.f32 %v2894, %v3152
      %v3407 = vsub.f32 %v2895, %v3155
      %v3408 = vsub.f32 %v2896, %v3158
      %v3409 = vsub.f32 %v2897, %v3161
      %v3410 = vsub.f32 %v2898, %v3164
      %v3411 = vsub.f32 %v2899, %v3167
      %v3412 = vsub.f32 %v2900, %v3170
      %v3413 = vsub.f32 %v2901, %v3173
      %v3414 = vsub.f32 %v2902, %v3176
      %v3415 = vsub.f32 %v2903, %v3179
      %v3416 = vsub.f32 %v2904, %v3182
      %v3417 = vsub.f32 %v2905, %v3185
      %v3418 = vsub.f32 %v2906, %v3188
      %v3419 = vsub.f32 %v2907, %v3191
      %v3420 = vsub.f32 %v2908, %v3194
      %v3421 = vsub.f32 %v2909, %v3197
      %v3422 = vsub.f32 %v2910, %v3200
      %v3423 = vsub.f32 %v2911, %v3203
      %v3424 = vsub.f32 %v2912, %v3206
      %v3425 = vsub.f32 %v2913, %v3209
      %v3426 = vsub.f32 %v2914, %v3212
      %v3427 = vsub.f32 %v2915, %v3215
      %v3428 = vsub.f32 %v2916, %v3218
      %v3429 = vsub.f32 %v2917, %v3221
      %v3430 = vsub.f32 %v2918, %v3224
      %v3431 = vsub.f32 %v2919, %v3227
      %v3432 = vsub.f32 %v2920, %v3230
      %v3433 = vsub.f32 %v2921, %v3233
      %v3434 = vsub.f32 %v2922, %v3236
      %v3435 = vsub.f32 %v2923, %v3239
      %v3436 = vsub.f32 %v2924, %v3242
      %v3437 = vsub.f32 %v2925, %v3245
      %v3438 = vsub.f32 %v2926, %v3248
      %v3439 = vsub.f32 %v2927, %v3251
      %v3440 = vsub.f32 %v2928, %v3254
      %v3441 = vsub.f32 %v2929, %v3257
      %v3442 = vsub.f32 %v2930, %v3260
      %v3443 = vsub.f32 %v2931, %v3263
      %v3444 = vsub.f32 %v2932, %v3266
      %v3445 = vsub.f32 %v2933, %v3269
      %v3446 = vsub.f32 %v2934, %v3272
      %v3447 = vsub.f32 %v2935, %v3275
      %v3448 = vsub.f32 %v2936, %v3278
      %v3449 = vsub.f32 %v2937, %v3281
      %v3450 = vsub.f32 %v2938, %v3284
      %v3451 = vsub.f32 %v2939, %v3287
      %v3452 = vsub.f32 %v2940, %v3290
      %v3453 = vsub.f32 %v2941, %v3293
      %v3454 = vsub.f32 %v2942, %v3296
      %v3455 = vsub.f32 %v2943, %v3299
      %v3456 = vsub.f32 %v2944, %v3302
      %v3457 = vsub.f32 %v2945, %v3305
      %v3458 = vsub.f32 %v2946, %v3308
      %v3459 = vsub.f32 %v2947, %v3311
      %v3460 = vsub.f32 %v2948, %v3314
      %v3461 = vsub.f32 %v2949, %v3317
      %v3462 = vsub.f32 %v2950, %v3320
      %v3463 = vsub.f32 %v2951, %v3323
      %v3464 = vsub.f32 %v2952, %v3326
      %v3465 = vsub.f32 %v2953, %v3329
      %v3466 = vsub.f32 %v2954, %v3332
      %v3467 = vsub.f32 %v2955, %v3335
      %v3468 = vsub.f32 %v2956, %v3338
      %v3469 = vsub.f32 %v2957, %v3341
      %v3470 = vmul.f32 %v3342, 1.442695
      %v3471 = vpow.pop %v3470
      %v3472 = vmul.f32 %v3343, 1.442695
      %v3473 = vpow.pop %v3472
      %v3474 = vmul.f32 %v3344, 1.442695
      %v3475 = vpow.pop %v3474
      %v3476 = vmul.f32 %v3345, 1.442695
      %v3477 = vpow.pop %v3476
      %v3478 = vmul.f32 %v3346, 1.442695
      %v3479 = vpow.pop %v3478
      %v3480 = vmul.f32 %v3347, 1.442695
      %v3481 = vpow.pop %v3480
      %v3482 = vmul.f32 %v3348, 1.442695
      %v3483 = vpow.pop %v3482
      %v3484 = vmul.f32 %v3349, 1.442695
      %v3485 = vpow.pop %v3484
      %v3486 = vmul.f32 %v3350, 1.442695
      %v3487 = vpow.pop %v3486
      %v3488 = vmul.f32 %v3351, 1.442695
      %v3489 = vpow.pop %v3488
      %v3490 = vmul.f32 %v3352, 1.442695
      %v3491 = vpow.pop %v3490
      %v3492 = vmul.f32 %v3353, 1.442695
      %v3493 = vpow.pop %v3492
      %v3494 = vmul.f32 %v3354, 1.442695
      %v3495 = vpow.pop %v3494
      %v3496 = vmul.f32 %v3355, 1.442695
      %v3497 = vpow.pop %v3496
      %v3498 = vmul.f32 %v3356, 1.442695
      %v3499 = vpow.pop %v3498
      %v3500 = vmul.f32 %v3357, 1.442695
      %v3501 = vpow.pop %v3500
      %v3502 = vmul.f32 %v3358, 1.442695
      %v3503 = vpow.pop %v3502
      %v3504 = vmul.f32 %v3359, 1.442695
      %v3505 = vpow.pop %v3504
      %v3506 = vmul.f32 %v3360, 1.442695
      %v3507 = vpow.pop %v3506
      %v3508 = vmul.f32 %v3361, 1.442695
      %v3509 = vpow.pop %v3508
      %v3510 = vmul.f32 %v3362, 1.442695
      %v3511 = vpow.pop %v3510
      %v3512 = vmul.f32 %v3363, 1.442695
      %v3513 = vpow.pop %v3512
      %v3514 = vmul.f32 %v3364, 1.442695
      %v3515 = vpow.pop %v3514
      %v3516 = vmul.f32 %v3365, 1.442695
      %v3517 = vpow.pop %v3516
      %v3518 = vmul.f32 %v3366, 1.442695
      %v3519 = vpow.pop %v3518
      %v3520 = vmul.f32 %v3367, 1.442695
      %v3521 = vpow.pop %v3520
      %v3522 = vmul.f32 %v3368, 1.442695
      %v3523 = vpow.pop %v3522
      %v3524 = vmul.f32 %v3369, 1.442695
      %v3525 = vpow.pop %v3524
      %v3526 = vmul.f32 %v3370, 1.442695
      %v3527 = vpow.pop %v3526
      %v3528 = vmul.f32 %v3371, 1.442695
      %v3529 = vpow.pop %v3528
      %v3530 = vmul.f32 %v3372, 1.442695
      %v3531 = vpow.pop %v3530
      %v3532 = vmul.f32 %v3373, 1.442695
      %v3533 = vpow.pop %v3532
      %v3534 = vmul.f32 %v3374, 1.442695
      %v3535 = vpow.pop %v3534
      %v3536 = vmul.f32 %v3375, 1.442695
      %v3537 = vpow.pop %v3536
      %v3538 = vmul.f32 %v3376, 1.442695
      %v3539 = vpow.pop %v3538
      %v3540 = vmul.f32 %v3377, 1.442695
      %v3541 = vpow.pop %v3540
      %v3542 = vmul.f32 %v3378, 1.442695
      %v3543 = vpow.pop %v3542
      %v3544 = vmul.f32 %v3379, 1.442695
      %v3545 = vpow.pop %v3544
      %v3546 = vmul.f32 %v3380, 1.442695
      %v3547 = vpow.pop %v3546
      %v3548 = vmul.f32 %v3381, 1.442695
      %v3549 = vpow.pop %v3548
      %v3550 = vmul.f32 %v3382, 1.442695
      %v3551 = vpow.pop %v3550
      %v3552 = vmul.f32 %v3383, 1.442695
      %v3553 = vpow.pop %v3552
      %v3554 = vmul.f32 %v3384, 1.442695
      %v3555 = vpow.pop %v3554
      %v3556 = vmul.f32 %v3385, 1.442695
      %v3557 = vpow.pop %v3556
      %v3558 = vmul.f32 %v3386, 1.442695
      %v3559 = vpow.pop %v3558
      %v3560 = vmul.f32 %v3387, 1.442695
      %v3561 = vpow.pop %v3560
      %v3562 = vmul.f32 %v3388, 1.442695
      %v3563 = vpow.pop %v3562
      %v3564 = vmul.f32 %v3389, 1.442695
      %v3565 = vpow.pop %v3564
      %v3566 = vmul.f32 %v3390, 1.442695
      %v3567 = vpow.pop %v3566
      %v3568 = vmul.f32 %v3391, 1.442695
      %v3569 = vpow.pop %v3568
      %v3570 = vmul.f32 %v3392, 1.442695
      %v3571 = vpow.pop %v3570
      %v3572 = vmul.f32 %v3393, 1.442695
      %v3573 = vpow.pop %v3572
      %v3574 = vmul.f32 %v3394, 1.442695
      %v3575 = vpow.pop %v3574
      %v3576 = vmul.f32 %v3395, 1.442695
      %v3577 = vpow.pop %v3576
      %v3578 = vmul.f32 %v3396, 1.442695
      %v3579 = vpow.pop %v3578
      %v3580 = vmul.f32 %v3397, 1.442695
      %v3581 = vpow.pop %v3580
      %v3582 = vmul.f32 %v3398, 1.442695
      %v3583 = vpow.pop %v3582
      %v3584 = vmul.f32 %v3399, 1.442695
      %v3585 = vpow.pop %v3584
      %v3586 = vmul.f32 %v3400, 1.442695
      %v3587 = vpow.pop %v3586
      %v3588 = vmul.f32 %v3401, 1.442695
      %v3589 = vpow.pop %v3588
      %v3590 = vmul.f32 %v3402, 1.442695
      %v3591 = vpow.pop %v3590
      %v3592 = vmul.f32 %v3403, 1.442695
      %v3593 = vpow.pop %v3592
      %v3594 = vmul.f32 %v3404, 1.442695
      %v3595 = vpow.pop %v3594
      %v3596 = vmul.f32 %v3405, 1.442695
      %v3597 = vpow.pop %v3596
      %v3598 = vmul.f32 %v3406, 1.442695
      %v3599 = vpow.pop %v3598
      %v3600 = vmul.f32 %v3407, 1.442695
      %v3601 = vpow.pop %v3600
      %v3602 = vmul.f32 %v3408, 1.442695
      %v3603 = vpow.pop %v3602
      %v3604 = vmul.f32 %v3409, 1.442695
      %v3605 = vpow.pop %v3604
      %v3606 = vmul.f32 %v3410, 1.442695
      %v3607 = vpow.pop %v3606
      %v3608 = vmul.f32 %v3411, 1.442695
      %v3609 = vpow.pop %v3608
      %v3610 = vmul.f32 %v3412, 1.442695
      %v3611 = vpow.pop %v3610
      %v3612 = vmul.f32 %v3413, 1.442695
      %v3613 = vpow.pop %v3612
      %v3614 = vmul.f32 %v3414, 1.442695
      %v3615 = vpow.pop %v3614
      %v3616 = vmul.f32 %v3415, 1.442695
      %v3617 = vpow.pop %v3616
      %v3618 = vmul.f32 %v3416, 1.442695
      %v3619 = vpow.pop %v3618
      %v3620 = vmul.f32 %v3417, 1.442695
      %v3621 = vpow.pop %v3620
      %v3622 = vmul.f32 %v3418, 1.442695
      %v3623 = vpow.pop %v3622
      %v3624 = vmul.f32 %v3419, 1.442695
      %v3625 = vpow.pop %v3624
      %v3626 = vmul.f32 %v3420, 1.442695
      %v3627 = vpow.pop %v3626
      %v3628 = vmul.f32 %v3421, 1.442695
      %v3629 = vpow.pop %v3628
      %v3630 = vmul.f32 %v3422, 1.442695
      %v3631 = vpow.pop %v3630
      %v3632 = vmul.f32 %v3423, 1.442695
      %v3633 = vpow.pop %v3632
      %v3634 = vmul.f32 %v3424, 1.442695
      %v3635 = vpow.pop %v3634
      %v3636 = vmul.f32 %v3425, 1.442695
      %v3637 = vpow.pop %v3636
      %v3638 = vmul.f32 %v3426, 1.442695
      %v3639 = vpow.pop %v3638
      %v3640 = vmul.f32 %v3427, 1.442695
      %v3641 = vpow.pop %v3640
      %v3642 = vmul.f32 %v3428, 1.442695
      %v3643 = vpow.pop %v3642
      %v3644 = vmul.f32 %v3429, 1.442695
      %v3645 = vpow.pop %v3644
      %v3646 = vmul.f32 %v3430, 1.442695
      %v3647 = vpow.pop %v3646
      %v3648 = vmul.f32 %v3431, 1.442695
      %v3649 = vpow.pop %v3648
      %v3650 = vmul.f32 %v3432, 1.442695
      %v3651 = vpow.pop %v3650
      %v3652 = vmul.f32 %v3433, 1.442695
      %v3653 = vpow.pop %v3652
      %v3654 = vmul.f32 %v3434, 1.442695
      %v3655 = vpow.pop %v3654
      %v3656 = vmul.f32 %v3435, 1.442695
      %v3657 = vpow.pop %v3656
      %v3658 = vmul.f32 %v3436, 1.442695
      %v3659 = vpow.pop %v3658
      %v3660 = vmul.f32 %v3437, 1.442695
      %v3661 = vpow.pop %v3660
      %v3662 = vmul.f32 %v3438, 1.442695
      %v3663 = vpow.pop %v3662
      %v3664 = vmul.f32 %v3439, 1.442695
      %v3665 = vpow.pop %v3664
      %v3666 = vmul.f32 %v3440, 1.442695
      %v3667 = vpow.pop %v3666
      %v3668 = vmul.f32 %v3441, 1.442695
      %v3669 = vpow.pop %v3668
      %v3670 = vmul.f32 %v3442, 1.442695
      %v3671 = vpow.pop %v3670
      %v3672 = vmul.f32 %v3443, 1.442695
      %v3673 = vpow.pop %v3672
      %v3674 = vmul.f32 %v3444, 1.442695
      %v3675 = vpow.pop %v3674
      %v3676 = vmul.f32 %v3445, 1.442695
      %v3677 = vpow.pop %v3676
      %v3678 = vmul.f32 %v3446, 1.442695
      %v3679 = vpow.pop %v3678
      %v3680 = vmul.f32 %v3447, 1.442695
      %v3681 = vpow.pop %v3680
      %v3682 = vmul.f32 %v3448, 1.442695
      %v3683 = vpow.pop %v3682
      %v3684 = vmul.f32 %v3449, 1.442695
      %v3685 = vpow.pop %v3684
      %v3686 = vmul.f32 %v3450, 1.442695
      %v3687 = vpow.pop %v3686
      %v3688 = vmul.f32 %v3451, 1.442695
      %v3689 = vpow.pop %v3688
      %v3690 = vmul.f32 %v3452, 1.442695
      %v3691 = vpow.pop %v3690
      %v3692 = vmul.f32 %v3453, 1.442695
      %v3693 = vpow.pop %v3692
      %v3694 = vmul.f32 %v3454, 1.442695
      %v3695 = vpow.pop %v3694
      %v3696 = vmul.f32 %v3455, 1.442695
      %v3697 = vpow.pop %v3696
      %v3698 = vmul.f32 %v3456, 1.442695
      %v3699 = vpow.pop %v3698
      %v3700 = vmul.f32 %v3457, 1.442695
      %v3701 = vpow.pop %v3700
      %v3702 = vmul.f32 %v3458, 1.442695
      %v3703 = vpow.pop %v3702
      %v3704 = vmul.f32 %v3459, 1.442695
      %v3705 = vpow.pop %v3704
      %v3706 = vmul.f32 %v3460, 1.442695
      %v3707 = vpow.pop %v3706
      %v3708 = vmul.f32 %v3461, 1.442695
      %v3709 = vpow.pop %v3708
      %v3710 = vmul.f32 %v3462, 1.442695
      %v3711 = vpow.pop %v3710
      %v3712 = vmul.f32 %v3463, 1.442695
      %v3713 = vpow.pop %v3712
      %v3714 = vmul.f32 %v3464, 1.442695
      %v3715 = vpow.pop %v3714
      %v3716 = vmul.f32 %v3465, 1.442695
      %v3717 = vpow.pop %v3716
      %v3718 = vmul.f32 %v3466, 1.442695
      %v3719 = vpow.pop %v3718
      %v3720 = vmul.f32 %v3467, 1.442695
      %v3721 = vpow.pop %v3720
      %v3722 = vmul.f32 %v3468, 1.442695
      %v3723 = vpow.pop %v3722
      %v3724 = vmul.f32 %v3469, 1.442695
      %v3725 = vpow.pop %v3724
      %v3726 = vsel %vm2565, %v3471, 0.0
      %3727 = vadd.xlane.f32.xlu0 %v3726
      %v3728 = vpop.xlane.xlu0 %3727
      %v3729 = vsel %vm2565, %v3473, 0.0
      %3730 = vadd.xlane.f32.xlu0 %v3729
      %v3731 = vpop.xlane.xlu0 %3730
      %v3732 = vsel %vm2565, %v3475, 0.0
      %3733 = vadd.xlane.f32.xlu0 %v3732
      %v3734 = vpop.xlane.xlu0 %3733
      %v3735 = vsel %vm2565, %v3477, 0.0
      %3736 = vadd.xlane.f32.xlu0 %v3735
      %v3737 = vpop.xlane.xlu0 %3736
      %v3738 = vsel %vm2565, %v3479, 0.0
      %3739 = vadd.xlane.f32.xlu0 %v3738
      %v3740 = vpop.xlane.xlu0 %3739
      %v3741 = vsel %vm2565, %v3481, 0.0
      %3742 = vadd.xlane.f32.xlu0 %v3741
      %v3743 = vpop.xlane.xlu0 %3742
      %v3744 = vsel %vm2565, %v3483, 0.0
      %3745 = vadd.xlane.f32.xlu0 %v3744
      %v3746 = vpop.xlane.xlu0 %3745
      %v3747 = vsel %vm2565, %v3485, 0.0
      %3748 = vadd.xlane.f32.xlu0 %v3747
      %v3749 = vpop.xlane.xlu0 %3748
      %v3750 = vsel %vm2565, %v3487, 0.0
      %3751 = vadd.xlane.f32.xlu0 %v3750
      %v3752 = vpop.xlane.xlu0 %3751
      %v3753 = vsel %vm2565, %v3489, 0.0
      %3754 = vadd.xlane.f32.xlu0 %v3753
      %v3755 = vpop.xlane.xlu0 %3754
      %v3756 = vsel %vm2565, %v3491, 0.0
      %3757 = vadd.xlane.f32.xlu0 %v3756
      %v3758 = vpop.xlane.xlu0 %3757
      %v3759 = vsel %vm2565, %v3493, 0.0
      %3760 = vadd.xlane.f32.xlu0 %v3759
      %v3761 = vpop.xlane.xlu0 %3760
      %v3762 = vsel %vm2565, %v3495, 0.0
      %3763 = vadd.xlane.f32.xlu0 %v3762
      %v3764 = vpop.xlane.xlu0 %3763
      %v3765 = vsel %vm2565, %v3497, 0.0
      %3766 = vadd.xlane.f32.xlu0 %v3765
      %v3767 = vpop.xlane.xlu0 %3766
      %v3768 = vsel %vm2565, %v3499, 0.0
      %3769 = vadd.xlane.f32.xlu0 %v3768
      %v3770 = vpop.xlane.xlu0 %3769
      %v3771 = vsel %vm2565, %v3501, 0.0
      %3772 = vadd.xlane.f32.xlu0 %v3771
      %v3773 = vpop.xlane.xlu0 %3772
      %v3774 = vsel %vm2565, %v3503, 0.0
      %3775 = vadd.xlane.f32.xlu0 %v3774
      %v3776 = vpop.xlane.xlu0 %3775
      %v3777 = vsel %vm2565, %v3505, 0.0
      %3778 = vadd.xlane.f32.xlu0 %v3777
      %v3779 = vpop.xlane.xlu0 %3778
      %v3780 = vsel %vm2565, %v3507, 0.0
      %3781 = vadd.xlane.f32.xlu0 %v3780
      %v3782 = vpop.xlane.xlu0 %3781
      %v3783 = vsel %vm2565, %v3509, 0.0
      %3784 = vadd.xlane.f32.xlu0 %v3783
      %v3785 = vpop.xlane.xlu0 %3784
      %v3786 = vsel %vm2565, %v3511, 0.0
      %3787 = vadd.xlane.f32.xlu0 %v3786
      %v3788 = vpop.xlane.xlu0 %3787
      %v3789 = vsel %vm2565, %v3513, 0.0
      %3790 = vadd.xlane.f32.xlu0 %v3789
      %v3791 = vpop.xlane.xlu0 %3790
      %v3792 = vsel %vm2565, %v3515, 0.0
      %3793 = vadd.xlane.f32.xlu0 %v3792
      %v3794 = vpop.xlane.xlu0 %3793
      %v3795 = vsel %vm2565, %v3517, 0.0
      %3796 = vadd.xlane.f32.xlu0 %v3795
      %v3797 = vpop.xlane.xlu0 %3796
      %v3798 = vsel %vm2565, %v3519, 0.0
      %3799 = vadd.xlane.f32.xlu0 %v3798
      %v3800 = vpop.xlane.xlu0 %3799
      %v3801 = vsel %vm2565, %v3521, 0.0
      %3802 = vadd.xlane.f32.xlu0 %v3801
      %v3803 = vpop.xlane.xlu0 %3802
      %v3804 = vsel %vm2565, %v3523, 0.0
      %3805 = vadd.xlane.f32.xlu0 %v3804
      %v3806 = vpop.xlane.xlu0 %3805
      %v3807 = vsel %vm2565, %v3525, 0.0
      %3808 = vadd.xlane.f32.xlu0 %v3807
      %v3809 = vpop.xlane.xlu0 %3808
      %v3810 = vsel %vm2565, %v3527, 0.0
      %3811 = vadd.xlane.f32.xlu0 %v3810
      %v3812 = vpop.xlane.xlu0 %3811
      %v3813 = vsel %vm2565, %v3529, 0.0
      %3814 = vadd.xlane.f32.xlu0 %v3813
      %v3815 = vpop.xlane.xlu0 %3814
      %v3816 = vsel %vm2565, %v3531, 0.0
      %3817 = vadd.xlane.f32.xlu0 %v3816
      %v3818 = vpop.xlane.xlu0 %3817
      %v3819 = vsel %vm2565, %v3533, 0.0
      %3820 = vadd.xlane.f32.xlu0 %v3819
      %v3821 = vpop.xlane.xlu0 %3820
      %v3822 = vsel %vm2565, %v3535, 0.0
      %3823 = vadd.xlane.f32.xlu0 %v3822
      %v3824 = vpop.xlane.xlu0 %3823
      %v3825 = vsel %vm2565, %v3537, 0.0
      %3826 = vadd.xlane.f32.xlu0 %v3825
      %v3827 = vpop.xlane.xlu0 %3826
      %v3828 = vsel %vm2565, %v3539, 0.0
      %3829 = vadd.xlane.f32.xlu0 %v3828
      %v3830 = vpop.xlane.xlu0 %3829
      %v3831 = vsel %vm2565, %v3541, 0.0
      %3832 = vadd.xlane.f32.xlu0 %v3831
      %v3833 = vpop.xlane.xlu0 %3832
      %v3834 = vsel %vm2565, %v3543, 0.0
      %3835 = vadd.xlane.f32.xlu0 %v3834
      %v3836 = vpop.xlane.xlu0 %3835
      %v3837 = vsel %vm2565, %v3545, 0.0
      %3838 = vadd.xlane.f32.xlu0 %v3837
      %v3839 = vpop.xlane.xlu0 %3838
      %v3840 = vsel %vm2565, %v3547, 0.0
      %3841 = vadd.xlane.f32.xlu0 %v3840
      %v3842 = vpop.xlane.xlu0 %3841
      %v3843 = vsel %vm2565, %v3549, 0.0
      %3844 = vadd.xlane.f32.xlu0 %v3843
      %v3845 = vpop.xlane.xlu0 %3844
      %v3846 = vsel %vm2565, %v3551, 0.0
      %3847 = vadd.xlane.f32.xlu0 %v3846
      %v3848 = vpop.xlane.xlu0 %3847
      %v3849 = vsel %vm2565, %v3553, 0.0
      %3850 = vadd.xlane.f32.xlu0 %v3849
      %v3851 = vpop.xlane.xlu0 %3850
      %v3852 = vsel %vm2565, %v3555, 0.0
      %3853 = vadd.xlane.f32.xlu0 %v3852
      %v3854 = vpop.xlane.xlu0 %3853
      %v3855 = vsel %vm2565, %v3557, 0.0
      %3856 = vadd.xlane.f32.xlu0 %v3855
      %v3857 = vpop.xlane.xlu0 %3856
      %v3858 = vsel %vm2565, %v3559, 0.0
      %3859 = vadd.xlane.f32.xlu0 %v3858
      %v3860 = vpop.xlane.xlu0 %3859
      %v3861 = vsel %vm2565, %v3561, 0.0
      %3862 = vadd.xlane.f32.xlu0 %v3861
      %v3863 = vpop.xlane.xlu0 %3862
      %v3864 = vsel %vm2565, %v3563, 0.0
      %3865 = vadd.xlane.f32.xlu0 %v3864
      %v3866 = vpop.xlane.xlu0 %3865
      %v3867 = vsel %vm2565, %v3565, 0.0
      %3868 = vadd.xlane.f32.xlu0 %v3867
      %v3869 = vpop.xlane.xlu0 %3868
      %v3870 = vsel %vm2565, %v3567, 0.0
      %3871 = vadd.xlane.f32.xlu0 %v3870
      %v3872 = vpop.xlane.xlu0 %3871
      %v3873 = vsel %vm2565, %v3569, 0.0
      %3874 = vadd.xlane.f32.xlu0 %v3873
      %v3875 = vpop.xlane.xlu0 %3874
      %v3876 = vsel %vm2565, %v3571, 0.0
      %3877 = vadd.xlane.f32.xlu0 %v3876
      %v3878 = vpop.xlane.xlu0 %3877
      %v3879 = vsel %vm2565, %v3573, 0.0
      %3880 = vadd.xlane.f32.xlu0 %v3879
      %v3881 = vpop.xlane.xlu0 %3880
      %v3882 = vsel %vm2565, %v3575, 0.0
      %3883 = vadd.xlane.f32.xlu0 %v3882
      %v3884 = vpop.xlane.xlu0 %3883
      %v3885 = vsel %vm2565, %v3577, 0.0
      %3886 = vadd.xlane.f32.xlu0 %v3885
      %v3887 = vpop.xlane.xlu0 %3886
      %v3888 = vsel %vm2565, %v3579, 0.0
      %3889 = vadd.xlane.f32.xlu0 %v3888
      %v3890 = vpop.xlane.xlu0 %3889
      %v3891 = vsel %vm2565, %v3581, 0.0
      %3892 = vadd.xlane.f32.xlu0 %v3891
      %v3893 = vpop.xlane.xlu0 %3892
      %v3894 = vsel %vm2565, %v3583, 0.0
      %3895 = vadd.xlane.f32.xlu0 %v3894
      %v3896 = vpop.xlane.xlu0 %3895
      %v3897 = vsel %vm2565, %v3585, 0.0
      %3898 = vadd.xlane.f32.xlu0 %v3897
      %v3899 = vpop.xlane.xlu0 %3898
      %v3900 = vsel %vm2565, %v3587, 0.0
      %3901 = vadd.xlane.f32.xlu0 %v3900
      %v3902 = vpop.xlane.xlu0 %3901
      %v3903 = vsel %vm2565, %v3589, 0.0
      %3904 = vadd.xlane.f32.xlu0 %v3903
      %v3905 = vpop.xlane.xlu0 %3904
      %v3906 = vsel %vm2565, %v3591, 0.0
      %3907 = vadd.xlane.f32.xlu0 %v3906
      %v3908 = vpop.xlane.xlu0 %3907
      %v3909 = vsel %vm2565, %v3593, 0.0
      %3910 = vadd.xlane.f32.xlu0 %v3909
      %v3911 = vpop.xlane.xlu0 %3910
      %v3912 = vsel %vm2565, %v3595, 0.0
      %3913 = vadd.xlane.f32.xlu0 %v3912
      %v3914 = vpop.xlane.xlu0 %3913
      %v3915 = vsel %vm2565, %v3597, 0.0
      %3916 = vadd.xlane.f32.xlu0 %v3915
      %v3917 = vpop.xlane.xlu0 %3916
      %v3918 = vsel %vm2565, %v3599, 0.0
      %3919 = vadd.xlane.f32.xlu0 %v3918
      %v3920 = vpop.xlane.xlu0 %3919
      %v3921 = vsel %vm2565, %v3601, 0.0
      %3922 = vadd.xlane.f32.xlu0 %v3921
      %v3923 = vpop.xlane.xlu0 %3922
      %v3924 = vsel %vm2565, %v3603, 0.0
      %3925 = vadd.xlane.f32.xlu0 %v3924
      %v3926 = vpop.xlane.xlu0 %3925
      %v3927 = vsel %vm2565, %v3605, 0.0
      %3928 = vadd.xlane.f32.xlu0 %v3927
      %v3929 = vpop.xlane.xlu0 %3928
      %v3930 = vsel %vm2565, %v3607, 0.0
      %3931 = vadd.xlane.f32.xlu0 %v3930
      %v3932 = vpop.xlane.xlu0 %3931
      %v3933 = vsel %vm2565, %v3609, 0.0
      %3934 = vadd.xlane.f32.xlu0 %v3933
      %v3935 = vpop.xlane.xlu0 %3934
      %v3936 = vsel %vm2565, %v3611, 0.0
      %3937 = vadd.xlane.f32.xlu0 %v3936
      %v3938 = vpop.xlane.xlu0 %3937
      %v3939 = vsel %vm2565, %v3613, 0.0
      %3940 = vadd.xlane.f32.xlu0 %v3939
      %v3941 = vpop.xlane.xlu0 %3940
      %v3942 = vsel %vm2565, %v3615, 0.0
      %3943 = vadd.xlane.f32.xlu0 %v3942
      %v3944 = vpop.xlane.xlu0 %3943
      %v3945 = vsel %vm2565, %v3617, 0.0
      %3946 = vadd.xlane.f32.xlu0 %v3945
      %v3947 = vpop.xlane.xlu0 %3946
      %v3948 = vsel %vm2565, %v3619, 0.0
      %3949 = vadd.xlane.f32.xlu0 %v3948
      %v3950 = vpop.xlane.xlu0 %3949
      %v3951 = vsel %vm2565, %v3621, 0.0
      %3952 = vadd.xlane.f32.xlu0 %v3951
      %v3953 = vpop.xlane.xlu0 %3952
      %v3954 = vsel %vm2565, %v3623, 0.0
      %3955 = vadd.xlane.f32.xlu0 %v3954
      %v3956 = vpop.xlane.xlu0 %3955
      %v3957 = vsel %vm2565, %v3625, 0.0
      %3958 = vadd.xlane.f32.xlu0 %v3957
      %v3959 = vpop.xlane.xlu0 %3958
      %v3960 = vsel %vm2565, %v3627, 0.0
      %3961 = vadd.xlane.f32.xlu0 %v3960
      %v3962 = vpop.xlane.xlu0 %3961
      %v3963 = vsel %vm2565, %v3629, 0.0
      %3964 = vadd.xlane.f32.xlu0 %v3963
      %v3965 = vpop.xlane.xlu0 %3964
      %v3966 = vsel %vm2565, %v3631, 0.0
      %3967 = vadd.xlane.f32.xlu0 %v3966
      %v3968 = vpop.xlane.xlu0 %3967
      %v3969 = vsel %vm2565, %v3633, 0.0
      %3970 = vadd.xlane.f32.xlu0 %v3969
      %v3971 = vpop.xlane.xlu0 %3970
      %v3972 = vsel %vm2565, %v3635, 0.0
      %3973 = vadd.xlane.f32.xlu0 %v3972
      %v3974 = vpop.xlane.xlu0 %3973
      %v3975 = vsel %vm2565, %v3637, 0.0
      %3976 = vadd.xlane.f32.xlu0 %v3975
      %v3977 = vpop.xlane.xlu0 %3976
      %v3978 = vsel %vm2565, %v3639, 0.0
      %3979 = vadd.xlane.f32.xlu0 %v3978
      %v3980 = vpop.xlane.xlu0 %3979
      %v3981 = vsel %vm2565, %v3641, 0.0
      %3982 = vadd.xlane.f32.xlu0 %v3981
      %v3983 = vpop.xlane.xlu0 %3982
      %v3984 = vsel %vm2565, %v3643, 0.0
      %3985 = vadd.xlane.f32.xlu0 %v3984
      %v3986 = vpop.xlane.xlu0 %3985
      %v3987 = vsel %vm2565, %v3645, 0.0
      %3988 = vadd.xlane.f32.xlu0 %v3987
      %v3989 = vpop.xlane.xlu0 %3988
      %v3990 = vsel %vm2565, %v3647, 0.0
      %3991 = vadd.xlane.f32.xlu0 %v3990
      %v3992 = vpop.xlane.xlu0 %3991
      %v3993 = vsel %vm2565, %v3649, 0.0
      %3994 = vadd.xlane.f32.xlu0 %v3993
      %v3995 = vpop.xlane.xlu0 %3994
      %v3996 = vsel %vm2565, %v3651, 0.0
      %3997 = vadd.xlane.f32.xlu0 %v3996
      %v3998 = vpop.xlane.xlu0 %3997
      %v3999 = vsel %vm2565, %v3653, 0.0
      %4000 = vadd.xlane.f32.xlu0 %v3999
      %v4001 = vpop.xlane.xlu0 %4000
      %v4002 = vsel %vm2565, %v3655, 0.0
      %4003 = vadd.xlane.f32.xlu0 %v4002
      %v4004 = vpop.xlane.xlu0 %4003
      %v4005 = vsel %vm2565, %v3657, 0.0
      %4006 = vadd.xlane.f32.xlu0 %v4005
      %v4007 = vpop.xlane.xlu0 %4006
      %v4008 = vsel %vm2565, %v3659, 0.0
      %4009 = vadd.xlane.f32.xlu0 %v4008
      %v4010 = vpop.xlane.xlu0 %4009
      %v4011 = vsel %vm2565, %v3661, 0.0
      %4012 = vadd.xlane.f32.xlu0 %v4011
      %v4013 = vpop.xlane.xlu0 %4012
      %v4014 = vsel %vm2565, %v3663, 0.0
      %4015 = vadd.xlane.f32.xlu0 %v4014
      %v4016 = vpop.xlane.xlu0 %4015
      %v4017 = vsel %vm2565, %v3665, 0.0
      %4018 = vadd.xlane.f32.xlu0 %v4017
      %v4019 = vpop.xlane.xlu0 %4018
      %v4020 = vsel %vm2565, %v3667, 0.0
      %4021 = vadd.xlane.f32.xlu0 %v4020
      %v4022 = vpop.xlane.xlu0 %4021
      %v4023 = vsel %vm2565, %v3669, 0.0
      %4024 = vadd.xlane.f32.xlu0 %v4023
      %v4025 = vpop.xlane.xlu0 %4024
      %v4026 = vsel %vm2565, %v3671, 0.0
      %4027 = vadd.xlane.f32.xlu0 %v4026
      %v4028 = vpop.xlane.xlu0 %4027
      %v4029 = vsel %vm2565, %v3673, 0.0
      %4030 = vadd.xlane.f32.xlu0 %v4029
      %v4031 = vpop.xlane.xlu0 %4030
      %v4032 = vsel %vm2565, %v3675, 0.0
      %4033 = vadd.xlane.f32.xlu0 %v4032
      %v4034 = vpop.xlane.xlu0 %4033
      %v4035 = vsel %vm2565, %v3677, 0.0
      %4036 = vadd.xlane.f32.xlu0 %v4035
      %v4037 = vpop.xlane.xlu0 %4036
      %v4038 = vsel %vm2565, %v3679, 0.0
      %4039 = vadd.xlane.f32.xlu0 %v4038
      %v4040 = vpop.xlane.xlu0 %4039
      %v4041 = vsel %vm2565, %v3681, 0.0
      %4042 = vadd.xlane.f32.xlu0 %v4041
      %v4043 = vpop.xlane.xlu0 %4042
      %v4044 = vsel %vm2565, %v3683, 0.0
      %4045 = vadd.xlane.f32.xlu0 %v4044
      %v4046 = vpop.xlane.xlu0 %4045
      %v4047 = vsel %vm2565, %v3685, 0.0
      %4048 = vadd.xlane.f32.xlu0 %v4047
      %v4049 = vpop.xlane.xlu0 %4048
      %v4050 = vsel %vm2565, %v3687, 0.0
      %4051 = vadd.xlane.f32.xlu0 %v4050
      %v4052 = vpop.xlane.xlu0 %4051
      %v4053 = vsel %vm2565, %v3689, 0.0
      %4054 = vadd.xlane.f32.xlu0 %v4053
      %v4055 = vpop.xlane.xlu0 %4054
      %v4056 = vsel %vm2565, %v3691, 0.0
      %4057 = vadd.xlane.f32.xlu0 %v4056
      %v4058 = vpop.xlane.xlu0 %4057
      %v4059 = vsel %vm2565, %v3693, 0.0
      %4060 = vadd.xlane.f32.xlu0 %v4059
      %v4061 = vpop.xlane.xlu0 %4060
      %v4062 = vsel %vm2565, %v3695, 0.0
      %4063 = vadd.xlane.f32.xlu0 %v4062
      %v4064 = vpop.xlane.xlu0 %4063
      %v4065 = vsel %vm2565, %v3697, 0.0
      %4066 = vadd.xlane.f32.xlu0 %v4065
      %v4067 = vpop.xlane.xlu0 %4066
      %v4068 = vsel %vm2565, %v3699, 0.0
      %4069 = vadd.xlane.f32.xlu0 %v4068
      %v4070 = vpop.xlane.xlu0 %4069
      %v4071 = vsel %vm2565, %v3701, 0.0
      %4072 = vadd.xlane.f32.xlu0 %v4071
      %v4073 = vpop.xlane.xlu0 %4072
      %v4074 = vsel %vm2565, %v3703, 0.0
      %4075 = vadd.xlane.f32.xlu0 %v4074
      %v4076 = vpop.xlane.xlu0 %4075
      %v4077 = vsel %vm2565, %v3705, 0.0
      %4078 = vadd.xlane.f32.xlu0 %v4077
      %v4079 = vpop.xlane.xlu0 %4078
      %v4080 = vsel %vm2565, %v3707, 0.0
      %4081 = vadd.xlane.f32.xlu0 %v4080
      %v4082 = vpop.xlane.xlu0 %4081
      %v4083 = vsel %vm2565, %v3709, 0.0
      %4084 = vadd.xlane.f32.xlu0 %v4083
      %v4085 = vpop.xlane.xlu0 %4084
      %v4086 = vsel %vm2565, %v3711, 0.0
      %4087 = vadd.xlane.f32.xlu0 %v4086
      %v4088 = vpop.xlane.xlu0 %4087
      %v4089 = vsel %vm2565, %v3713, 0.0
      %4090 = vadd.xlane.f32.xlu0 %v4089
      %v4091 = vpop.xlane.xlu0 %4090
      %v4092 = vsel %vm2565, %v3715, 0.0
      %4093 = vadd.xlane.f32.xlu0 %v4092
      %v4094 = vpop.xlane.xlu0 %4093
      %v4095 = vsel %vm2565, %v3717, 0.0
      %4096 = vadd.xlane.f32.xlu0 %v4095
      %v4097 = vpop.xlane.xlu0 %4096
      %v4098 = vsel %vm2565, %v3719, 0.0
      %4099 = vadd.xlane.f32.xlu0 %v4098
      %v4100 = vpop.xlane.xlu0 %4099
      %v4101 = vsel %vm2565, %v3721, 0.0
      %4102 = vadd.xlane.f32.xlu0 %v4101
      %v4103 = vpop.xlane.xlu0 %4102
      %v4104 = vsel %vm2565, %v3723, 0.0
      %4105 = vadd.xlane.f32.xlu0 %v4104
      %v4106 = vpop.xlane.xlu0 %4105
      %v4107 = vsel %vm2565, %v3725, 0.0
      %4108 = vadd.xlane.f32.xlu0 %v4107
      %v4109 = vpop.xlane.xlu0 %4108
      %v4110 = vlog2.pop %v3728
      %v4111 = vmul.f32 %v4110, 0.6931472
      %v4112 = vlog2.pop %v3731
      %v4113 = vmul.f32 %v4112, 0.6931472
      %v4114 = vlog2.pop %v3734
      %v4115 = vmul.f32 %v4114, 0.6931472
      %v4116 = vlog2.pop %v3737
      %v4117 = vmul.f32 %v4116, 0.6931472
      %v4118 = vlog2.pop %v3740
      %v4119 = vmul.f32 %v4118, 0.6931472
      %v4120 = vlog2.pop %v3743
      %v4121 = vmul.f32 %v4120, 0.6931472
      %v4122 = vlog2.pop %v3746
      %v4123 = vmul.f32 %v4122, 0.6931472
      %v4124 = vlog2.pop %v3749
      %v4125 = vmul.f32 %v4124, 0.6931472
      %v4126 = vlog2.pop %v3752
      %v4127 = vmul.f32 %v4126, 0.6931472
      %v4128 = vlog2.pop %v3755
      %v4129 = vmul.f32 %v4128, 0.6931472
      %v4130 = vlog2.pop %v3758
      %v4131 = vmul.f32 %v4130, 0.6931472
      %v4132 = vlog2.pop %v3761
      %v4133 = vmul.f32 %v4132, 0.6931472
      %v4134 = vlog2.pop %v3764
      %v4135 = vmul.f32 %v4134, 0.6931472
      %v4136 = vlog2.pop %v3767
      %v4137 = vmul.f32 %v4136, 0.6931472
      %v4138 = vlog2.pop %v3770
      %v4139 = vmul.f32 %v4138, 0.6931472
      %v4140 = vlog2.pop %v3773
      %v4141 = vmul.f32 %v4140, 0.6931472
      %v4142 = vlog2.pop %v3776
      %v4143 = vmul.f32 %v4142, 0.6931472
      %v4144 = vlog2.pop %v3779
      %v4145 = vmul.f32 %v4144, 0.6931472
      %v4146 = vlog2.pop %v3782
      %v4147 = vmul.f32 %v4146, 0.6931472
      %v4148 = vlog2.pop %v3785
      %v4149 = vmul.f32 %v4148, 0.6931472
      %v4150 = vlog2.pop %v3788
      %v4151 = vmul.f32 %v4150, 0.6931472
      %v4152 = vlog2.pop %v3791
      %v4153 = vmul.f32 %v4152, 0.6931472
      %v4154 = vlog2.pop %v3794
      %v4155 = vmul.f32 %v4154, 0.6931472
      %v4156 = vlog2.pop %v3797
      %v4157 = vmul.f32 %v4156, 0.6931472
      %v4158 = vlog2.pop %v3800
      %v4159 = vmul.f32 %v4158, 0.6931472
      %v4160 = vlog2.pop %v3803
      %v4161 = vmul.f32 %v4160, 0.6931472
      %v4162 = vlog2.pop %v3806
      %v4163 = vmul.f32 %v4162, 0.6931472
      %v4164 = vlog2.pop %v3809
      %v4165 = vmul.f32 %v4164, 0.6931472
      %v4166 = vlog2.pop %v3812
      %v4167 = vmul.f32 %v4166, 0.6931472
      %v4168 = vlog2.pop %v3815
      %v4169 = vmul.f32 %v4168, 0.6931472
      %v4170 = vlog2.pop %v3818
      %v4171 = vmul.f32 %v4170, 0.6931472
      %v4172 = vlog2.pop %v3821
      %v4173 = vmul.f32 %v4172, 0.6931472
      %v4174 = vlog2.pop %v3824
      %v4175 = vmul.f32 %v4174, 0.6931472
      %v4176 = vlog2.pop %v3827
      %v4177 = vmul.f32 %v4176, 0.6931472
      %v4178 = vlog2.pop %v3830
      %v4179 = vmul.f32 %v4178, 0.6931472
      %v4180 = vlog2.pop %v3833
      %v4181 = vmul.f32 %v4180, 0.6931472
      %v4182 = vlog2.pop %v3836
      %v4183 = vmul.f32 %v4182, 0.6931472
      %v4184 = vlog2.pop %v3839
      %v4185 = vmul.f32 %v4184, 0.6931472
      %v4186 = vlog2.pop %v3842
      %v4187 = vmul.f32 %v4186, 0.6931472
      %v4188 = vlog2.pop %v3845
      %v4189 = vmul.f32 %v4188, 0.6931472
      %v4190 = vlog2.pop %v3848
      %v4191 = vmul.f32 %v4190, 0.6931472
      %v4192 = vlog2.pop %v3851
      %v4193 = vmul.f32 %v4192, 0.6931472
      %v4194 = vlog2.pop %v3854
      %v4195 = vmul.f32 %v4194, 0.6931472
      %v4196 = vlog2.pop %v3857
      %v4197 = vmul.f32 %v4196, 0.6931472
      %v4198 = vlog2.pop %v3860
      %v4199 = vmul.f32 %v4198, 0.6931472
      %v4200 = vlog2.pop %v3863
      %v4201 = vmul.f32 %v4200, 0.6931472
      %v4202 = vlog2.pop %v3866
      %v4203 = vmul.f32 %v4202, 0.6931472
      %v4204 = vlog2.pop %v3869
      %v4205 = vmul.f32 %v4204, 0.6931472
      %v4206 = vlog2.pop %v3872
      %v4207 = vmul.f32 %v4206, 0.6931472
      %v4208 = vlog2.pop %v3875
      %v4209 = vmul.f32 %v4208, 0.6931472
      %v4210 = vlog2.pop %v3878
      %v4211 = vmul.f32 %v4210, 0.6931472
      %v4212 = vlog2.pop %v3881
      %v4213 = vmul.f32 %v4212, 0.6931472
      %v4214 = vlog2.pop %v3884
      %v4215 = vmul.f32 %v4214, 0.6931472
      %v4216 = vlog2.pop %v3887
      %v4217 = vmul.f32 %v4216, 0.6931472
      %v4218 = vlog2.pop %v3890
      %v4219 = vmul.f32 %v4218, 0.6931472
      %v4220 = vlog2.pop %v3893
      %v4221 = vmul.f32 %v4220, 0.6931472
      %v4222 = vlog2.pop %v3896
      %v4223 = vmul.f32 %v4222, 0.6931472
      %v4224 = vlog2.pop %v3899
      %v4225 = vmul.f32 %v4224, 0.6931472
      %v4226 = vlog2.pop %v3902
      %v4227 = vmul.f32 %v4226, 0.6931472
      %v4228 = vlog2.pop %v3905
      %v4229 = vmul.f32 %v4228, 0.6931472
      %v4230 = vlog2.pop %v3908
      %v4231 = vmul.f32 %v4230, 0.6931472
      %v4232 = vlog2.pop %v3911
      %v4233 = vmul.f32 %v4232, 0.6931472
      %v4234 = vlog2.pop %v3914
      %v4235 = vmul.f32 %v4234, 0.6931472
      %v4236 = vlog2.pop %v3917
      %v4237 = vmul.f32 %v4236, 0.6931472
      %v4238 = vlog2.pop %v3920
      %v4239 = vmul.f32 %v4238, 0.6931472
      %v4240 = vlog2.pop %v3923
      %v4241 = vmul.f32 %v4240, 0.6931472
      %v4242 = vlog2.pop %v3926
      %v4243 = vmul.f32 %v4242, 0.6931472
      %v4244 = vlog2.pop %v3929
      %v4245 = vmul.f32 %v4244, 0.6931472
      %v4246 = vlog2.pop %v3932
      %v4247 = vmul.f32 %v4246, 0.6931472
      %v4248 = vlog2.pop %v3935
      %v4249 = vmul.f32 %v4248, 0.6931472
      %v4250 = vlog2.pop %v3938
      %v4251 = vmul.f32 %v4250, 0.6931472
      %v4252 = vlog2.pop %v3941
      %v4253 = vmul.f32 %v4252, 0.6931472
      %v4254 = vlog2.pop %v3944
      %v4255 = vmul.f32 %v4254, 0.6931472
      %v4256 = vlog2.pop %v3947
      %v4257 = vmul.f32 %v4256, 0.6931472
      %v4258 = vlog2.pop %v3950
      %v4259 = vmul.f32 %v4258, 0.6931472
      %v4260 = vlog2.pop %v3953
      %v4261 = vmul.f32 %v4260, 0.6931472
      %v4262 = vlog2.pop %v3956
      %v4263 = vmul.f32 %v4262, 0.6931472
      %v4264 = vlog2.pop %v3959
      %v4265 = vmul.f32 %v4264, 0.6931472
      %v4266 = vlog2.pop %v3962
      %v4267 = vmul.f32 %v4266, 0.6931472
      %v4268 = vlog2.pop %v3965
      %v4269 = vmul.f32 %v4268, 0.6931472
      %v4270 = vlog2.pop %v3968
      %v4271 = vmul.f32 %v4270, 0.6931472
      %v4272 = vlog2.pop %v3971
      %v4273 = vmul.f32 %v4272, 0.6931472
      %v4274 = vlog2.pop %v3974
      %v4275 = vmul.f32 %v4274, 0.6931472
      %v4276 = vlog2.pop %v3977
      %v4277 = vmul.f32 %v4276, 0.6931472
      %v4278 = vlog2.pop %v3980
      %v4279 = vmul.f32 %v4278, 0.6931472
      %v4280 = vlog2.pop %v3983
      %v4281 = vmul.f32 %v4280, 0.6931472
      %v4282 = vlog2.pop %v3986
      %v4283 = vmul.f32 %v4282, 0.6931472
      %v4284 = vlog2.pop %v3989
      %v4285 = vmul.f32 %v4284, 0.6931472
      %v4286 = vlog2.pop %v3992
      %v4287 = vmul.f32 %v4286, 0.6931472
      %v4288 = vlog2.pop %v3995
      %v4289 = vmul.f32 %v4288, 0.6931472
      %v4290 = vlog2.pop %v3998
      %v4291 = vmul.f32 %v4290, 0.6931472
      %v4292 = vlog2.pop %v4001
      %v4293 = vmul.f32 %v4292, 0.6931472
      %v4294 = vlog2.pop %v4004
      %v4295 = vmul.f32 %v4294, 0.6931472
      %v4296 = vlog2.pop %v4007
      %v4297 = vmul.f32 %v4296, 0.6931472
      %v4298 = vlog2.pop %v4010
      %v4299 = vmul.f32 %v4298, 0.6931472
      %v4300 = vlog2.pop %v4013
      %v4301 = vmul.f32 %v4300, 0.6931472
      %v4302 = vlog2.pop %v4016
      %v4303 = vmul.f32 %v4302, 0.6931472
      %v4304 = vlog2.pop %v4019
      %v4305 = vmul.f32 %v4304, 0.6931472
      %v4306 = vlog2.pop %v4022
      %v4307 = vmul.f32 %v4306, 0.6931472
      %v4308 = vlog2.pop %v4025
      %v4309 = vmul.f32 %v4308, 0.6931472
      %v4310 = vlog2.pop %v4028
      %v4311 = vmul.f32 %v4310, 0.6931472
      %v4312 = vlog2.pop %v4031
      %v4313 = vmul.f32 %v4312, 0.6931472
      %v4314 = vlog2.pop %v4034
      %v4315 = vmul.f32 %v4314, 0.6931472
      %v4316 = vlog2.pop %v4037
      %v4317 = vmul.f32 %v4316, 0.6931472
      %v4318 = vlog2.pop %v4040
      %v4319 = vmul.f32 %v4318, 0.6931472
      %v4320 = vlog2.pop %v4043
      %v4321 = vmul.f32 %v4320, 0.6931472
      %v4322 = vlog2.pop %v4046
      %v4323 = vmul.f32 %v4322, 0.6931472
      %v4324 = vlog2.pop %v4049
      %v4325 = vmul.f32 %v4324, 0.6931472
      %v4326 = vlog2.pop %v4052
      %v4327 = vmul.f32 %v4326, 0.6931472
      %v4328 = vlog2.pop %v4055
      %v4329 = vmul.f32 %v4328, 0.6931472
      %v4330 = vlog2.pop %v4058
      %v4331 = vmul.f32 %v4330, 0.6931472
      %v4332 = vlog2.pop %v4061
      %v4333 = vmul.f32 %v4332, 0.6931472
      %v4334 = vlog2.pop %v4064
      %v4335 = vmul.f32 %v4334, 0.6931472
      %v4336 = vlog2.pop %v4067
      %v4337 = vmul.f32 %v4336, 0.6931472
      %v4338 = vlog2.pop %v4070
      %v4339 = vmul.f32 %v4338, 0.6931472
      %v4340 = vlog2.pop %v4073
      %v4341 = vmul.f32 %v4340, 0.6931472
      %v4342 = vlog2.pop %v4076
      %v4343 = vmul.f32 %v4342, 0.6931472
      %v4344 = vlog2.pop %v4079
      %v4345 = vmul.f32 %v4344, 0.6931472
      %v4346 = vlog2.pop %v4082
      %v4347 = vmul.f32 %v4346, 0.6931472
      %v4348 = vlog2.pop %v4085
      %v4349 = vmul.f32 %v4348, 0.6931472
      %v4350 = vlog2.pop %v4088
      %v4351 = vmul.f32 %v4350, 0.6931472
      %v4352 = vlog2.pop %v4091
      %v4353 = vmul.f32 %v4352, 0.6931472
      %v4354 = vlog2.pop %v4094
      %v4355 = vmul.f32 %v4354, 0.6931472
      %v4356 = vlog2.pop %v4097
      %v4357 = vmul.f32 %v4356, 0.6931472
      %v4358 = vlog2.pop %v4100
      %v4359 = vmul.f32 %v4358, 0.6931472
      %v4360 = vlog2.pop %v4103
      %v4361 = vmul.f32 %v4360, 0.6931472
      %v4362 = vlog2.pop %v4106
      %v4363 = vmul.f32 %v4362, 0.6931472
      %v4364 = vlog2.pop %v4109
      %v4365 = vmul.f32 %v4364, 0.6931472
      %v4366 = vadd.f32 %v4111, %v2960
      %v4367 = vadd.f32 %v4113, %v2963
      %v4368 = vadd.f32 %v4115, %v2966
      %v4369 = vadd.f32 %v4117, %v2969
      %v4370 = vadd.f32 %v4119, %v2972
      %v4371 = vadd.f32 %v4121, %v2975
      %v4372 = vadd.f32 %v4123, %v2978
      %v4373 = vadd.f32 %v4125, %v2981
      %v4374 = vadd.f32 %v4127, %v2984
      %v4375 = vadd.f32 %v4129, %v2987
      %v4376 = vadd.f32 %v4131, %v2990
      %v4377 = vadd.f32 %v4133, %v2993
      %v4378 = vadd.f32 %v4135, %v2996
      %v4379 = vadd.f32 %v4137, %v2999
      %v4380 = vadd.f32 %v4139, %v3002
      %v4381 = vadd.f32 %v4141, %v3005
      %v4382 = vadd.f32 %v4143, %v3008
      %v4383 = vadd.f32 %v4145, %v3011
      %v4384 = vadd.f32 %v4147, %v3014
      %v4385 = vadd.f32 %v4149, %v3017
      %v4386 = vadd.f32 %v4151, %v3020
      %v4387 = vadd.f32 %v4153, %v3023
      %v4388 = vadd.f32 %v4155, %v3026
      %v4389 = vadd.f32 %v4157, %v3029
      %v4390 = vadd.f32 %v4159, %v3032
      %v4391 = vadd.f32 %v4161, %v3035
      %v4392 = vadd.f32 %v4163, %v3038
      %v4393 = vadd.f32 %v4165, %v3041
      %v4394 = vadd.f32 %v4167, %v3044
      %v4395 = vadd.f32 %v4169, %v3047
      %v4396 = vadd.f32 %v4171, %v3050
      %v4397 = vadd.f32 %v4173, %v3053
      %v4398 = vadd.f32 %v4175, %v3056
      %v4399 = vadd.f32 %v4177, %v3059
      %v4400 = vadd.f32 %v4179, %v3062
      %v4401 = vadd.f32 %v4181, %v3065
      %v4402 = vadd.f32 %v4183, %v3068
      %v4403 = vadd.f32 %v4185, %v3071
      %v4404 = vadd.f32 %v4187, %v3074
      %v4405 = vadd.f32 %v4189, %v3077
      %v4406 = vadd.f32 %v4191, %v3080
      %v4407 = vadd.f32 %v4193, %v3083
      %v4408 = vadd.f32 %v4195, %v3086
      %v4409 = vadd.f32 %v4197, %v3089
      %v4410 = vadd.f32 %v4199, %v3092
      %v4411 = vadd.f32 %v4201, %v3095
      %v4412 = vadd.f32 %v4203, %v3098
      %v4413 = vadd.f32 %v4205, %v3101
      %v4414 = vadd.f32 %v4207, %v3104
      %v4415 = vadd.f32 %v4209, %v3107
      %v4416 = vadd.f32 %v4211, %v3110
      %v4417 = vadd.f32 %v4213, %v3113
      %v4418 = vadd.f32 %v4215, %v3116
      %v4419 = vadd.f32 %v4217, %v3119
      %v4420 = vadd.f32 %v4219, %v3122
      %v4421 = vadd.f32 %v4221, %v3125
      %v4422 = vadd.f32 %v4223, %v3128
      %v4423 = vadd.f32 %v4225, %v3131
      %v4424 = vadd.f32 %v4227, %v3134
      %v4425 = vadd.f32 %v4229, %v3137
      %v4426 = vadd.f32 %v4231, %v3140
      %v4427 = vadd.f32 %v4233, %v3143
      %v4428 = vadd.f32 %v4235, %v3146
      %v4429 = vadd.f32 %v4237, %v3149
      %v4430 = vadd.f32 %v4239, %v3152
      %v4431 = vadd.f32 %v4241, %v3155
      %v4432 = vadd.f32 %v4243, %v3158
      %v4433 = vadd.f32 %v4245, %v3161
      %v4434 = vadd.f32 %v4247, %v3164
      %v4435 = vadd.f32 %v4249, %v3167
      %v4436 = vadd.f32 %v4251, %v3170
      %v4437 = vadd.f32 %v4253, %v3173
      %v4438 = vadd.f32 %v4255, %v3176
      %v4439 = vadd.f32 %v4257, %v3179
      %v4440 = vadd.f32 %v4259, %v3182
      %v4441 = vadd.f32 %v4261, %v3185
      %v4442 = vadd.f32 %v4263, %v3188
      %v4443 = vadd.f32 %v4265, %v3191
      %v4444 = vadd.f32 %v4267, %v3194
      %v4445 = vadd.f32 %v4269, %v3197
      %v4446 = vadd.f32 %v4271, %v3200
      %v4447 = vadd.f32 %v4273, %v3203
      %v4448 = vadd.f32 %v4275, %v3206
      %v4449 = vadd.f32 %v4277, %v3209
      %v4450 = vadd.f32 %v4279, %v3212
      %v4451 = vadd.f32 %v4281, %v3215
      %v4452 = vadd.f32 %v4283, %v3218
      %v4453 = vadd.f32 %v4285, %v3221
      %v4454 = vadd.f32 %v4287, %v3224
      %v4455 = vadd.f32 %v4289, %v3227
      %v4456 = vadd.f32 %v4291, %v3230
      %v4457 = vadd.f32 %v4293, %v3233
      %v4458 = vadd.f32 %v4295, %v3236
      %v4459 = vadd.f32 %v4297, %v3239
      %v4460 = vadd.f32 %v4299, %v3242
      %v4461 = vadd.f32 %v4301, %v3245
      %v4462 = vadd.f32 %v4303, %v3248
      %v4463 = vadd.f32 %v4305, %v3251
      %v4464 = vadd.f32 %v4307, %v3254
      %v4465 = vadd.f32 %v4309, %v3257
      %v4466 = vadd.f32 %v4311, %v3260
      %v4467 = vadd.f32 %v4313, %v3263
      %v4468 = vadd.f32 %v4315, %v3266
      %v4469 = vadd.f32 %v4317, %v3269
      %v4470 = vadd.f32 %v4319, %v3272
      %v4471 = vadd.f32 %v4321, %v3275
      %v4472 = vadd.f32 %v4323, %v3278
      %v4473 = vadd.f32 %v4325, %v3281
      %v4474 = vadd.f32 %v4327, %v3284
      %v4475 = vadd.f32 %v4329, %v3287
      %v4476 = vadd.f32 %v4331, %v3290
      %v4477 = vadd.f32 %v4333, %v3293
      %v4478 = vadd.f32 %v4335, %v3296
      %v4479 = vadd.f32 %v4337, %v3299
      %v4480 = vadd.f32 %v4339, %v3302
      %v4481 = vadd.f32 %v4341, %v3305
      %v4482 = vadd.f32 %v4343, %v3308
      %v4483 = vadd.f32 %v4345, %v3311
      %v4484 = vadd.f32 %v4347, %v3314
      %v4485 = vadd.f32 %v4349, %v3317
      %v4486 = vadd.f32 %v4351, %v3320
      %v4487 = vadd.f32 %v4353, %v3323
      %v4488 = vadd.f32 %v4355, %v3326
      %v4489 = vadd.f32 %v4357, %v3329
      %v4490 = vadd.f32 %v4359, %v3332
      %v4491 = vadd.f32 %v4361, %v3335
      %v4492 = vadd.f32 %v4363, %v3338
      %v4493 = vadd.f32 %v4365, %v3341
      %v4494 = vlaneseq
      %v4495 = vand.u32 %v4494, 127
      %4496 = vset.pattern.permute.xlu0 0
      %4497 = vperm.xlu0 %4496, %v389
      %v4498 = vpop.permute.xlu0 %4497
      %4499 = vset.pattern.permute.xlu0 0
      %4500 = vperm.xlu0 %4499, %v390
      %v4501 = vpop.permute.xlu0 %4500
      %4502 = vset.pattern.permute.xlu0 0
      %4503 = vperm.xlu0 %4502, %v391
      %v4504 = vpop.permute.xlu0 %4503
      %4505 = vset.pattern.permute.xlu0 0
      %4506 = vperm.xlu0 %4505, %v392
      %v4507 = vpop.permute.xlu0 %4506
      %4508 = vset.pattern.permute.xlu0 0
      %4509 = vperm.xlu0 %4508, %v393
      %v4510 = vpop.permute.xlu0 %4509
      %4511 = vset.pattern.permute.xlu0 0
      %4512 = vperm.xlu0 %4511, %v394
      %v4513 = vpop.permute.xlu0 %4512
      %4514 = vset.pattern.permute.xlu0 0
      %4515 = vperm.xlu0 %4514, %v395
      %v4516 = vpop.permute.xlu0 %4515
      %4517 = vset.pattern.permute.xlu0 0
      %4518 = vperm.xlu0 %4517, %v396
      %v4519 = vpop.permute.xlu0 %4518
      %4520 = vset.pattern.permute.xlu0 0
      %4521 = vperm.xlu0 %4520, %v397
      %v4522 = vpop.permute.xlu0 %4521
      %4523 = vset.pattern.permute.xlu0 0
      %4524 = vperm.xlu0 %4523, %v398
      %v4525 = vpop.permute.xlu0 %4524
      %4526 = vset.pattern.permute.xlu0 0
      %4527 = vperm.xlu0 %4526, %v399
      %v4528 = vpop.permute.xlu0 %4527
      %4529 = vset.pattern.permute.xlu0 0
      %4530 = vperm.xlu0 %4529, %v400
      %v4531 = vpop.permute.xlu0 %4530
      %4532 = vset.pattern.permute.xlu0 0
      %4533 = vperm.xlu0 %4532, %v401
      %v4534 = vpop.permute.xlu0 %4533
      %4535 = vset.pattern.permute.xlu0 0
      %4536 = vperm.xlu0 %4535, %v402
      %v4537 = vpop.permute.xlu0 %4536
      %4538 = vset.pattern.permute.xlu0 0
      %4539 = vperm.xlu0 %4538, %v403
      %v4540 = vpop.permute.xlu0 %4539
      %4541 = vset.pattern.permute.xlu0 0
      %4542 = vperm.xlu0 %4541, %v404
      %v4543 = vpop.permute.xlu0 %4542
      %4544 = vset.pattern.permute.xlu0 0
      %4545 = vperm.xlu0 %4544, %v405
      %v4546 = vpop.permute.xlu0 %4545
      %4547 = vset.pattern.permute.xlu0 0
      %4548 = vperm.xlu0 %4547, %v406
      %v4549 = vpop.permute.xlu0 %4548
      %4550 = vset.pattern.permute.xlu0 0
      %4551 = vperm.xlu0 %4550, %v407
      %v4552 = vpop.permute.xlu0 %4551
      %4553 = vset.pattern.permute.xlu0 0
      %4554 = vperm.xlu0 %4553, %v408
      %v4555 = vpop.permute.xlu0 %4554
      %4556 = vset.pattern.permute.xlu0 0
      %4557 = vperm.xlu0 %4556, %v409
      %v4558 = vpop.permute.xlu0 %4557
      %4559 = vset.pattern.permute.xlu0 0
      %4560 = vperm.xlu0 %4559, %v410
      %v4561 = vpop.permute.xlu0 %4560
      %4562 = vset.pattern.permute.xlu0 0
      %4563 = vperm.xlu0 %4562, %v411
      %v4564 = vpop.permute.xlu0 %4563
      %4565 = vset.pattern.permute.xlu0 0
      %4566 = vperm.xlu0 %4565, %v412
      %v4567 = vpop.permute.xlu0 %4566
      %4568 = vset.pattern.permute.xlu0 0
      %4569 = vperm.xlu0 %4568, %v413
      %v4570 = vpop.permute.xlu0 %4569
      %4571 = vset.pattern.permute.xlu0 0
      %4572 = vperm.xlu0 %4571, %v414
      %v4573 = vpop.permute.xlu0 %4572
      %4574 = vset.pattern.permute.xlu0 0
      %4575 = vperm.xlu0 %4574, %v415
      %v4576 = vpop.permute.xlu0 %4575
      %4577 = vset.pattern.permute.xlu0 0
      %4578 = vperm.xlu0 %4577, %v416
      %v4579 = vpop.permute.xlu0 %4578
      %4580 = vset.pattern.permute.xlu0 0
      %4581 = vperm.xlu0 %4580, %v417
      %v4582 = vpop.permute.xlu0 %4581
      %4583 = vset.pattern.permute.xlu0 0
      %4584 = vperm.xlu0 %4583, %v418
      %v4585 = vpop.permute.xlu0 %4584
      %4586 = vset.pattern.permute.xlu0 0
      %4587 = vperm.xlu0 %4586, %v419
      %v4588 = vpop.permute.xlu0 %4587
      %4589 = vset.pattern.permute.xlu0 0
      %4590 = vperm.xlu0 %4589, %v420
      %v4591 = vpop.permute.xlu0 %4590
      %4592 = vset.pattern.permute.xlu0 0
      %4593 = vperm.xlu0 %4592, %v421
      %v4594 = vpop.permute.xlu0 %4593
      %4595 = vset.pattern.permute.xlu0 0
      %4596 = vperm.xlu0 %4595, %v422
      %v4597 = vpop.permute.xlu0 %4596
      %4598 = vset.pattern.permute.xlu0 0
      %4599 = vperm.xlu0 %4598, %v423
      %v4600 = vpop.permute.xlu0 %4599
      %4601 = vset.pattern.permute.xlu0 0
      %4602 = vperm.xlu0 %4601, %v424
      %v4603 = vpop.permute.xlu0 %4602
      %4604 = vset.pattern.permute.xlu0 0
      %4605 = vperm.xlu0 %4604, %v425
      %v4606 = vpop.permute.xlu0 %4605
      %4607 = vset.pattern.permute.xlu0 0
      %4608 = vperm.xlu0 %4607, %v426
      %v4609 = vpop.permute.xlu0 %4608
      %4610 = vset.pattern.permute.xlu0 0
      %4611 = vperm.xlu0 %4610, %v427
      %v4612 = vpop.permute.xlu0 %4611
      %4613 = vset.pattern.permute.xlu0 0
      %4614 = vperm.xlu0 %4613, %v428
      %v4615 = vpop.permute.xlu0 %4614
      %4616 = vset.pattern.permute.xlu0 0
      %4617 = vperm.xlu0 %4616, %v429
      %v4618 = vpop.permute.xlu0 %4617
      %4619 = vset.pattern.permute.xlu0 0
      %4620 = vperm.xlu0 %4619, %v430
      %v4621 = vpop.permute.xlu0 %4620
      %4622 = vset.pattern.permute.xlu0 0
      %4623 = vperm.xlu0 %4622, %v431
      %v4624 = vpop.permute.xlu0 %4623
      %4625 = vset.pattern.permute.xlu0 0
      %4626 = vperm.xlu0 %4625, %v432
      %v4627 = vpop.permute.xlu0 %4626
      %4628 = vset.pattern.permute.xlu0 0
      %4629 = vperm.xlu0 %4628, %v433
      %v4630 = vpop.permute.xlu0 %4629
      %4631 = vset.pattern.permute.xlu0 0
      %4632 = vperm.xlu0 %4631, %v434
      %v4633 = vpop.permute.xlu0 %4632
      %4634 = vset.pattern.permute.xlu0 0
      %4635 = vperm.xlu0 %4634, %v435
      %v4636 = vpop.permute.xlu0 %4635
      %4637 = vset.pattern.permute.xlu0 0
      %4638 = vperm.xlu0 %4637, %v436
      %v4639 = vpop.permute.xlu0 %4638
      %4640 = vset.pattern.permute.xlu0 0
      %4641 = vperm.xlu0 %4640, %v437
      %v4642 = vpop.permute.xlu0 %4641
      %4643 = vset.pattern.permute.xlu0 0
      %4644 = vperm.xlu0 %4643, %v438
      %v4645 = vpop.permute.xlu0 %4644
      %4646 = vset.pattern.permute.xlu0 0
      %4647 = vperm.xlu0 %4646, %v439
      %v4648 = vpop.permute.xlu0 %4647
      %4649 = vset.pattern.permute.xlu0 0
      %4650 = vperm.xlu0 %4649, %v440
      %v4651 = vpop.permute.xlu0 %4650
      %4652 = vset.pattern.permute.xlu0 0
      %4653 = vperm.xlu0 %4652, %v441
      %v4654 = vpop.permute.xlu0 %4653
      %4655 = vset.pattern.permute.xlu0 0
      %4656 = vperm.xlu0 %4655, %v442
      %v4657 = vpop.permute.xlu0 %4656
      %4658 = vset.pattern.permute.xlu0 0
      %4659 = vperm.xlu0 %4658, %v443
      %v4660 = vpop.permute.xlu0 %4659
      %4661 = vset.pattern.permute.xlu0 0
      %4662 = vperm.xlu0 %4661, %v444
      %v4663 = vpop.permute.xlu0 %4662
      %4664 = vset.pattern.permute.xlu0 0
      %4665 = vperm.xlu0 %4664, %v445
      %v4666 = vpop.permute.xlu0 %4665
      %4667 = vset.pattern.permute.xlu0 0
      %4668 = vperm.xlu0 %4667, %v446
      %v4669 = vpop.permute.xlu0 %4668
      %4670 = vset.pattern.permute.xlu0 0
      %4671 = vperm.xlu0 %4670, %v447
      %v4672 = vpop.permute.xlu0 %4671
      %4673 = vset.pattern.permute.xlu0 0
      %4674 = vperm.xlu0 %4673, %v448
      %v4675 = vpop.permute.xlu0 %4674
      %4676 = vset.pattern.permute.xlu0 0
      %4677 = vperm.xlu0 %4676, %v449
      %v4678 = vpop.permute.xlu0 %4677
      %4679 = vset.pattern.permute.xlu0 0
      %4680 = vperm.xlu0 %4679, %v450
      %v4681 = vpop.permute.xlu0 %4680
      %4682 = vset.pattern.permute.xlu0 0
      %4683 = vperm.xlu0 %4682, %v451
      %v4684 = vpop.permute.xlu0 %4683
      %4685 = vset.pattern.permute.xlu0 0
      %4686 = vperm.xlu0 %4685, %v452
      %v4687 = vpop.permute.xlu0 %4686
      %4688 = vset.pattern.permute.xlu0 0
      %4689 = vperm.xlu0 %4688, %v453
      %v4690 = vpop.permute.xlu0 %4689
      %4691 = vset.pattern.permute.xlu0 0
      %4692 = vperm.xlu0 %4691, %v454
      %v4693 = vpop.permute.xlu0 %4692
      %4694 = vset.pattern.permute.xlu0 0
      %4695 = vperm.xlu0 %4694, %v455
      %v4696 = vpop.permute.xlu0 %4695
      %4697 = vset.pattern.permute.xlu0 0
      %4698 = vperm.xlu0 %4697, %v456
      %v4699 = vpop.permute.xlu0 %4698
      %4700 = vset.pattern.permute.xlu0 0
      %4701 = vperm.xlu0 %4700, %v457
      %v4702 = vpop.permute.xlu0 %4701
      %4703 = vset.pattern.permute.xlu0 0
      %4704 = vperm.xlu0 %4703, %v458
      %v4705 = vpop.permute.xlu0 %4704
      %4706 = vset.pattern.permute.xlu0 0
      %4707 = vperm.xlu0 %4706, %v459
      %v4708 = vpop.permute.xlu0 %4707
      %4709 = vset.pattern.permute.xlu0 0
      %4710 = vperm.xlu0 %4709, %v460
      %v4711 = vpop.permute.xlu0 %4710
      %4712 = vset.pattern.permute.xlu0 0
      %4713 = vperm.xlu0 %4712, %v461
      %v4714 = vpop.permute.xlu0 %4713
      %4715 = vset.pattern.permute.xlu0 0
      %4716 = vperm.xlu0 %4715, %v462
      %v4717 = vpop.permute.xlu0 %4716
      %4718 = vset.pattern.permute.xlu0 0
      %4719 = vperm.xlu0 %4718, %v463
      %v4720 = vpop.permute.xlu0 %4719
      %4721 = vset.pattern.permute.xlu0 0
      %4722 = vperm.xlu0 %4721, %v464
      %v4723 = vpop.permute.xlu0 %4722
      %4724 = vset.pattern.permute.xlu0 0
      %4725 = vperm.xlu0 %4724, %v465
      %v4726 = vpop.permute.xlu0 %4725
      %4727 = vset.pattern.permute.xlu0 0
      %4728 = vperm.xlu0 %4727, %v466
      %v4729 = vpop.permute.xlu0 %4728
      %4730 = vset.pattern.permute.xlu0 0
      %4731 = vperm.xlu0 %4730, %v467
      %v4732 = vpop.permute.xlu0 %4731
      %4733 = vset.pattern.permute.xlu0 0
      %4734 = vperm.xlu0 %4733, %v468
      %v4735 = vpop.permute.xlu0 %4734
      %4736 = vset.pattern.permute.xlu0 0
      %4737 = vperm.xlu0 %4736, %v469
      %v4738 = vpop.permute.xlu0 %4737
      %4739 = vset.pattern.permute.xlu0 0
      %4740 = vperm.xlu0 %4739, %v470
      %v4741 = vpop.permute.xlu0 %4740
      %4742 = vset.pattern.permute.xlu0 0
      %4743 = vperm.xlu0 %4742, %v471
      %v4744 = vpop.permute.xlu0 %4743
      %4745 = vset.pattern.permute.xlu0 0
      %4746 = vperm.xlu0 %4745, %v472
      %v4747 = vpop.permute.xlu0 %4746
      %4748 = vset.pattern.permute.xlu0 0
      %4749 = vperm.xlu0 %4748, %v473
      %v4750 = vpop.permute.xlu0 %4749
      %4751 = vset.pattern.permute.xlu0 0
      %4752 = vperm.xlu0 %4751, %v474
      %v4753 = vpop.permute.xlu0 %4752
      %4754 = vset.pattern.permute.xlu0 0
      %4755 = vperm.xlu0 %4754, %v475
      %v4756 = vpop.permute.xlu0 %4755
      %4757 = vset.pattern.permute.xlu0 0
      %4758 = vperm.xlu0 %4757, %v476
      %v4759 = vpop.permute.xlu0 %4758
      %4760 = vset.pattern.permute.xlu0 0
      %4761 = vperm.xlu0 %4760, %v477
      %v4762 = vpop.permute.xlu0 %4761
      %4763 = vset.pattern.permute.xlu0 0
      %4764 = vperm.xlu0 %4763, %v478
      %v4765 = vpop.permute.xlu0 %4764
      %4766 = vset.pattern.permute.xlu0 0
      %4767 = vperm.xlu0 %4766, %v479
      %v4768 = vpop.permute.xlu0 %4767
      %4769 = vset.pattern.permute.xlu0 0
      %4770 = vperm.xlu0 %4769, %v480
      %v4771 = vpop.permute.xlu0 %4770
      %4772 = vset.pattern.permute.xlu0 0
      %4773 = vperm.xlu0 %4772, %v481
      %v4774 = vpop.permute.xlu0 %4773
      %4775 = vset.pattern.permute.xlu0 0
      %4776 = vperm.xlu0 %4775, %v482
      %v4777 = vpop.permute.xlu0 %4776
      %4778 = vset.pattern.permute.xlu0 0
      %4779 = vperm.xlu0 %4778, %v483
      %v4780 = vpop.permute.xlu0 %4779
      %4781 = vset.pattern.permute.xlu0 0
      %4782 = vperm.xlu0 %4781, %v484
      %v4783 = vpop.permute.xlu0 %4782
      %4784 = vset.pattern.permute.xlu0 0
      %4785 = vperm.xlu0 %4784, %v485
      %v4786 = vpop.permute.xlu0 %4785
      %4787 = vset.pattern.permute.xlu0 0
      %4788 = vperm.xlu0 %4787, %v486
      %v4789 = vpop.permute.xlu0 %4788
      %4790 = vset.pattern.permute.xlu0 0
      %4791 = vperm.xlu0 %4790, %v487
      %v4792 = vpop.permute.xlu0 %4791
      %4793 = vset.pattern.permute.xlu0 0
      %4794 = vperm.xlu0 %4793, %v488
      %v4795 = vpop.permute.xlu0 %4794
      %4796 = vset.pattern.permute.xlu0 0
      %4797 = vperm.xlu0 %4796, %v489
      %v4798 = vpop.permute.xlu0 %4797
      %4799 = vset.pattern.permute.xlu0 0
      %4800 = vperm.xlu0 %4799, %v490
      %v4801 = vpop.permute.xlu0 %4800
      %4802 = vset.pattern.permute.xlu0 0
      %4803 = vperm.xlu0 %4802, %v491
      %v4804 = vpop.permute.xlu0 %4803
      %4805 = vset.pattern.permute.xlu0 0
      %4806 = vperm.xlu0 %4805, %v492
      %v4807 = vpop.permute.xlu0 %4806
      %4808 = vset.pattern.permute.xlu0 0
      %4809 = vperm.xlu0 %4808, %v493
      %v4810 = vpop.permute.xlu0 %4809
      %4811 = vset.pattern.permute.xlu0 0
      %4812 = vperm.xlu0 %4811, %v494
      %v4813 = vpop.permute.xlu0 %4812
      %4814 = vset.pattern.permute.xlu0 0
      %4815 = vperm.xlu0 %4814, %v495
      %v4816 = vpop.permute.xlu0 %4815
      %4817 = vset.pattern.permute.xlu0 0
      %4818 = vperm.xlu0 %4817, %v496
      %v4819 = vpop.permute.xlu0 %4818
      %4820 = vset.pattern.permute.xlu0 0
      %4821 = vperm.xlu0 %4820, %v497
      %v4822 = vpop.permute.xlu0 %4821
      %4823 = vset.pattern.permute.xlu0 0
      %4824 = vperm.xlu0 %4823, %v498
      %v4825 = vpop.permute.xlu0 %4824
      %4826 = vset.pattern.permute.xlu0 0
      %4827 = vperm.xlu0 %4826, %v499
      %v4828 = vpop.permute.xlu0 %4827
      %4829 = vset.pattern.permute.xlu0 0
      %4830 = vperm.xlu0 %4829, %v500
      %v4831 = vpop.permute.xlu0 %4830
      %4832 = vset.pattern.permute.xlu0 0
      %4833 = vperm.xlu0 %4832, %v501
      %v4834 = vpop.permute.xlu0 %4833
      %4835 = vset.pattern.permute.xlu0 0
      %4836 = vperm.xlu0 %4835, %v502
      %v4837 = vpop.permute.xlu0 %4836
      %4838 = vset.pattern.permute.xlu0 0
      %4839 = vperm.xlu0 %4838, %v503
      %v4840 = vpop.permute.xlu0 %4839
      %4841 = vset.pattern.permute.xlu0 0
      %4842 = vperm.xlu0 %4841, %v504
      %v4843 = vpop.permute.xlu0 %4842
      %4844 = vset.pattern.permute.xlu0 0
      %4845 = vperm.xlu0 %4844, %v505
      %v4846 = vpop.permute.xlu0 %4845
      %4847 = vset.pattern.permute.xlu0 0
      %4848 = vperm.xlu0 %4847, %v506
      %v4849 = vpop.permute.xlu0 %4848
      %4850 = vset.pattern.permute.xlu0 0
      %4851 = vperm.xlu0 %4850, %v507
      %v4852 = vpop.permute.xlu0 %4851
      %4853 = vset.pattern.permute.xlu0 0
      %4854 = vperm.xlu0 %4853, %v508
      %v4855 = vpop.permute.xlu0 %4854
      %4856 = vset.pattern.permute.xlu0 0
      %4857 = vperm.xlu0 %4856, %v509
      %v4858 = vpop.permute.xlu0 %4857
      %4859 = vset.pattern.permute.xlu0 0
      %4860 = vperm.xlu0 %4859, %v510
      %v4861 = vpop.permute.xlu0 %4860
      %4862 = vset.pattern.permute.xlu0 0
      %4863 = vperm.xlu0 %4862, %v511
      %v4864 = vpop.permute.xlu0 %4863
      %4865 = vset.pattern.permute.xlu0 0
      %4866 = vperm.xlu0 %4865, %v512
      %v4867 = vpop.permute.xlu0 %4866
      %4868 = vset.pattern.permute.xlu0 0
      %4869 = vperm.xlu0 %4868, %v513
      %v4870 = vpop.permute.xlu0 %4869
      %4871 = vset.pattern.permute.xlu0 0
      %4872 = vperm.xlu0 %4871, %v514
      %v4873 = vpop.permute.xlu0 %4872
      %4874 = vset.pattern.permute.xlu0 0
      %4875 = vperm.xlu0 %4874, %v515
      %v4876 = vpop.permute.xlu0 %4875
      %4877 = vset.pattern.permute.xlu0 0
      %4878 = vperm.xlu0 %4877, %v516
      %v4879 = vpop.permute.xlu0 %4878
      %vm4880 = vcmp.eq.s32.totalorder %v4495, %v4498
      %vm4881 = vcmp.eq.s32.totalorder %v4495, %v4501
      %vm4882 = vcmp.eq.s32.totalorder %v4495, %v4504
      %vm4883 = vcmp.eq.s32.totalorder %v4495, %v4507
      %vm4884 = vcmp.eq.s32.totalorder %v4495, %v4510
      %vm4885 = vcmp.eq.s32.totalorder %v4495, %v4513
      %vm4886 = vcmp.eq.s32.totalorder %v4495, %v4516
      %vm4887 = vcmp.eq.s32.totalorder %v4495, %v4519
      %vm4888 = vcmp.eq.s32.totalorder %v4495, %v4522
      %vm4889 = vcmp.eq.s32.totalorder %v4495, %v4525
      %vm4890 = vcmp.eq.s32.totalorder %v4495, %v4528
      %vm4891 = vcmp.eq.s32.totalorder %v4495, %v4531
      %vm4892 = vcmp.eq.s32.totalorder %v4495, %v4534
      %vm4893 = vcmp.eq.s32.totalorder %v4495, %v4537
      %vm4894 = vcmp.eq.s32.totalorder %v4495, %v4540
      %vm4895 = vcmp.eq.s32.totalorder %v4495, %v4543
      %vm4896 = vcmp.eq.s32.totalorder %v4495, %v4546
      %vm4897 = vcmp.eq.s32.totalorder %v4495, %v4549
      %vm4898 = vcmp.eq.s32.totalorder %v4495, %v4552
      %vm4899 = vcmp.eq.s32.totalorder %v4495, %v4555
      %vm4900 = vcmp.eq.s32.totalorder %v4495, %v4558
      %vm4901 = vcmp.eq.s32.totalorder %v4495, %v4561
      %vm4902 = vcmp.eq.s32.totalorder %v4495, %v4564
      %vm4903 = vcmp.eq.s32.totalorder %v4495, %v4567
      %vm4904 = vcmp.eq.s32.totalorder %v4495, %v4570
      %vm4905 = vcmp.eq.s32.totalorder %v4495, %v4573
      %vm4906 = vcmp.eq.s32.totalorder %v4495, %v4576
      %vm4907 = vcmp.eq.s32.totalorder %v4495, %v4579
      %vm4908 = vcmp.eq.s32.totalorder %v4495, %v4582
      %vm4909 = vcmp.eq.s32.totalorder %v4495, %v4585
      %vm4910 = vcmp.eq.s32.totalorder %v4495, %v4588
      %vm4911 = vcmp.eq.s32.totalorder %v4495, %v4591
      %vm4912 = vcmp.eq.s32.totalorder %v4495, %v4594
      %vm4913 = vcmp.eq.s32.totalorder %v4495, %v4597
      %vm4914 = vcmp.eq.s32.totalorder %v4495, %v4600
      %vm4915 = vcmp.eq.s32.totalorder %v4495, %v4603
      %vm4916 = vcmp.eq.s32.totalorder %v4495, %v4606
      %vm4917 = vcmp.eq.s32.totalorder %v4495, %v4609
      %vm4918 = vcmp.eq.s32.totalorder %v4495, %v4612
      %vm4919 = vcmp.eq.s32.totalorder %v4495, %v4615
      %vm4920 = vcmp.eq.s32.totalorder %v4495, %v4618
      %vm4921 = vcmp.eq.s32.totalorder %v4495, %v4621
      %vm4922 = vcmp.eq.s32.totalorder %v4495, %v4624
      %vm4923 = vcmp.eq.s32.totalorder %v4495, %v4627
      %vm4924 = vcmp.eq.s32.totalorder %v4495, %v4630
      %vm4925 = vcmp.eq.s32.totalorder %v4495, %v4633
      %vm4926 = vcmp.eq.s32.totalorder %v4495, %v4636
      %vm4927 = vcmp.eq.s32.totalorder %v4495, %v4639
      %vm4928 = vcmp.eq.s32.totalorder %v4495, %v4642
      %vm4929 = vcmp.eq.s32.totalorder %v4495, %v4645
      %vm4930 = vcmp.eq.s32.totalorder %v4495, %v4648
      %vm4931 = vcmp.eq.s32.totalorder %v4495, %v4651
      %vm4932 = vcmp.eq.s32.totalorder %v4495, %v4654
      %vm4933 = vcmp.eq.s32.totalorder %v4495, %v4657
      %vm4934 = vcmp.eq.s32.totalorder %v4495, %v4660
      %vm4935 = vcmp.eq.s32.totalorder %v4495, %v4663
      %vm4936 = vcmp.eq.s32.totalorder %v4495, %v4666
      %vm4937 = vcmp.eq.s32.totalorder %v4495, %v4669
      %vm4938 = vcmp.eq.s32.totalorder %v4495, %v4672
      %vm4939 = vcmp.eq.s32.totalorder %v4495, %v4675
      %vm4940 = vcmp.eq.s32.totalorder %v4495, %v4678
      %vm4941 = vcmp.eq.s32.totalorder %v4495, %v4681
      %vm4942 = vcmp.eq.s32.totalorder %v4495, %v4684
      %vm4943 = vcmp.eq.s32.totalorder %v4495, %v4687
      %vm4944 = vcmp.eq.s32.totalorder %v4495, %v4690
      %vm4945 = vcmp.eq.s32.totalorder %v4495, %v4693
      %vm4946 = vcmp.eq.s32.totalorder %v4495, %v4696
      %vm4947 = vcmp.eq.s32.totalorder %v4495, %v4699
      %vm4948 = vcmp.eq.s32.totalorder %v4495, %v4702
      %vm4949 = vcmp.eq.s32.totalorder %v4495, %v4705
      %vm4950 = vcmp.eq.s32.totalorder %v4495, %v4708
      %vm4951 = vcmp.eq.s32.totalorder %v4495, %v4711
      %vm4952 = vcmp.eq.s32.totalorder %v4495, %v4714
      %vm4953 = vcmp.eq.s32.totalorder %v4495, %v4717
      %vm4954 = vcmp.eq.s32.totalorder %v4495, %v4720
      %vm4955 = vcmp.eq.s32.totalorder %v4495, %v4723
      %vm4956 = vcmp.eq.s32.totalorder %v4495, %v4726
      %vm4957 = vcmp.eq.s32.totalorder %v4495, %v4729
      %vm4958 = vcmp.eq.s32.totalorder %v4495, %v4732
      %vm4959 = vcmp.eq.s32.totalorder %v4495, %v4735
      %vm4960 = vcmp.eq.s32.totalorder %v4495, %v4738
      %vm4961 = vcmp.eq.s32.totalorder %v4495, %v4741
      %vm4962 = vcmp.eq.s32.totalorder %v4495, %v4744
      %vm4963 = vcmp.eq.s32.totalorder %v4495, %v4747
      %vm4964 = vcmp.eq.s32.totalorder %v4495, %v4750
      %vm4965 = vcmp.eq.s32.totalorder %v4495, %v4753
      %vm4966 = vcmp.eq.s32.totalorder %v4495, %v4756
      %vm4967 = vcmp.eq.s32.totalorder %v4495, %v4759
      %vm4968 = vcmp.eq.s32.totalorder %v4495, %v4762
      %vm4969 = vcmp.eq.s32.totalorder %v4495, %v4765
      %vm4970 = vcmp.eq.s32.totalorder %v4495, %v4768
      %vm4971 = vcmp.eq.s32.totalorder %v4495, %v4771
      %vm4972 = vcmp.eq.s32.totalorder %v4495, %v4774
      %vm4973 = vcmp.eq.s32.totalorder %v4495, %v4777
      %vm4974 = vcmp.eq.s32.totalorder %v4495, %v4780
      %vm4975 = vcmp.eq.s32.totalorder %v4495, %v4783
      %vm4976 = vcmp.eq.s32.totalorder %v4495, %v4786
      %vm4977 = vcmp.eq.s32.totalorder %v4495, %v4789
      %vm4978 = vcmp.eq.s32.totalorder %v4495, %v4792
      %vm4979 = vcmp.eq.s32.totalorder %v4495, %v4795
      %vm4980 = vcmp.eq.s32.totalorder %v4495, %v4798
      %vm4981 = vcmp.eq.s32.totalorder %v4495, %v4801
      %vm4982 = vcmp.eq.s32.totalorder %v4495, %v4804
      %vm4983 = vcmp.eq.s32.totalorder %v4495, %v4807
      %vm4984 = vcmp.eq.s32.totalorder %v4495, %v4810
      %vm4985 = vcmp.eq.s32.totalorder %v4495, %v4813
      %vm4986 = vcmp.eq.s32.totalorder %v4495, %v4816
      %vm4987 = vcmp.eq.s32.totalorder %v4495, %v4819
      %vm4988 = vcmp.eq.s32.totalorder %v4495, %v4822
      %vm4989 = vcmp.eq.s32.totalorder %v4495, %v4825
      %vm4990 = vcmp.eq.s32.totalorder %v4495, %v4828
      %vm4991 = vcmp.eq.s32.totalorder %v4495, %v4831
      %vm4992 = vcmp.eq.s32.totalorder %v4495, %v4834
      %vm4993 = vcmp.eq.s32.totalorder %v4495, %v4837
      %vm4994 = vcmp.eq.s32.totalorder %v4495, %v4840
      %vm4995 = vcmp.eq.s32.totalorder %v4495, %v4843
      %vm4996 = vcmp.eq.s32.totalorder %v4495, %v4846
      %vm4997 = vcmp.eq.s32.totalorder %v4495, %v4849
      %vm4998 = vcmp.eq.s32.totalorder %v4495, %v4852
      %vm4999 = vcmp.eq.s32.totalorder %v4495, %v4855
      %vm5000 = vcmp.eq.s32.totalorder %v4495, %v4858
      %vm5001 = vcmp.eq.s32.totalorder %v4495, %v4861
      %vm5002 = vcmp.eq.s32.totalorder %v4495, %v4864
      %vm5003 = vcmp.eq.s32.totalorder %v4495, %v4867
      %vm5004 = vcmp.eq.s32.totalorder %v4495, %v4870
      %vm5005 = vcmp.eq.s32.totalorder %v4495, %v4873
      %vm5006 = vcmp.eq.s32.totalorder %v4495, %v4876
      %vm5007 = vcmp.eq.s32.totalorder %v4495, %v4879
      %v5008 = vsel %vm4880, %v2830, 0.0
      %v5009 = vsel %vm4881, %v2831, 0.0
      %v5010 = vsel %vm4882, %v2832, 0.0
      %v5011 = vsel %vm4883, %v2833, 0.0
      %v5012 = vsel %vm4884, %v2834, 0.0
      %v5013 = vsel %vm4885, %v2835, 0.0
      %v5014 = vsel %vm4886, %v2836, 0.0
      %v5015 = vsel %vm4887, %v2837, 0.0
      %v5016 = vsel %vm4888, %v2838, 0.0
      %v5017 = vsel %vm4889, %v2839, 0.0
      %v5018 = vsel %vm4890, %v2840, 0.0
      %v5019 = vsel %vm4891, %v2841, 0.0
      %v5020 = vsel %vm4892, %v2842, 0.0
      %v5021 = vsel %vm4893, %v2843, 0.0
      %v5022 = vsel %vm4894, %v2844, 0.0
      %v5023 = vsel %vm4895, %v2845, 0.0
      %v5024 = vsel %vm4896, %v2846, 0.0
      %v5025 = vsel %vm4897, %v2847, 0.0
      %v5026 = vsel %vm4898, %v2848, 0.0
      %v5027 = vsel %vm4899, %v2849, 0.0
      %v5028 = vsel %vm4900, %v2850, 0.0
      %v5029 = vsel %vm4901, %v2851, 0.0
      %v5030 = vsel %vm4902, %v2852, 0.0
      %v5031 = vsel %vm4903, %v2853, 0.0
      %v5032 = vsel %vm4904, %v2854, 0.0
      %v5033 = vsel %vm4905, %v2855, 0.0
      %v5034 = vsel %vm4906, %v2856, 0.0
      %v5035 = vsel %vm4907, %v2857, 0.0
      %v5036 = vsel %vm4908, %v2858, 0.0
      %v5037 = vsel %vm4909, %v2859, 0.0
      %v5038 = vsel %vm4910, %v2860, 0.0
      %v5039 = vsel %vm4911, %v2861, 0.0
      %v5040 = vsel %vm4912, %v2862, 0.0
      %v5041 = vsel %vm4913, %v2863, 0.0
      %v5042 = vsel %vm4914, %v2864, 0.0
      %v5043 = vsel %vm4915, %v2865, 0.0
      %v5044 = vsel %vm4916, %v2866, 0.0
      %v5045 = vsel %vm4917, %v2867, 0.0
      %v5046 = vsel %vm4918, %v2868, 0.0
      %v5047 = vsel %vm4919, %v2869, 0.0
      %v5048 = vsel %vm4920, %v2870, 0.0
      %v5049 = vsel %vm4921, %v2871, 0.0
      %v5050 = vsel %vm4922, %v2872, 0.0
      %v5051 = vsel %vm4923, %v2873, 0.0
      %v5052 = vsel %vm4924, %v2874, 0.0
      %v5053 = vsel %vm4925, %v2875, 0.0
      %v5054 = vsel %vm4926, %v2876, 0.0
      %v5055 = vsel %vm4927, %v2877, 0.0
      %v5056 = vsel %vm4928, %v2878, 0.0
      %v5057 = vsel %vm4929, %v2879, 0.0
      %v5058 = vsel %vm4930, %v2880, 0.0
      %v5059 = vsel %vm4931, %v2881, 0.0
      %v5060 = vsel %vm4932, %v2882, 0.0
      %v5061 = vsel %vm4933, %v2883, 0.0
      %v5062 = vsel %vm4934, %v2884, 0.0
      %v5063 = vsel %vm4935, %v2885, 0.0
      %v5064 = vsel %vm4936, %v2886, 0.0
      %v5065 = vsel %vm4937, %v2887, 0.0
      %v5066 = vsel %vm4938, %v2888, 0.0
      %v5067 = vsel %vm4939, %v2889, 0.0
      %v5068 = vsel %vm4940, %v2890, 0.0
      %v5069 = vsel %vm4941, %v2891, 0.0
      %v5070 = vsel %vm4942, %v2892, 0.0
      %v5071 = vsel %vm4943, %v2893, 0.0
      %v5072 = vsel %vm4944, %v2894, 0.0
      %v5073 = vsel %vm4945, %v2895, 0.0
      %v5074 = vsel %vm4946, %v2896, 0.0
      %v5075 = vsel %vm4947, %v2897, 0.0
      %v5076 = vsel %vm4948, %v2898, 0.0
      %v5077 = vsel %vm4949, %v2899, 0.0
      %v5078 = vsel %vm4950, %v2900, 0.0
      %v5079 = vsel %vm4951, %v2901, 0.0
      %v5080 = vsel %vm4952, %v2902, 0.0
      %v5081 = vsel %vm4953, %v2903, 0.0
      %v5082 = vsel %vm4954, %v2904, 0.0
      %v5083 = vsel %vm4955, %v2905, 0.0
      %v5084 = vsel %vm4956, %v2906, 0.0
      %v5085 = vsel %vm4957, %v2907, 0.0
      %v5086 = vsel %vm4958, %v2908, 0.0
      %v5087 = vsel %vm4959, %v2909, 0.0
      %v5088 = vsel %vm4960, %v2910, 0.0
      %v5089 = vsel %vm4961, %v2911, 0.0
      %v5090 = vsel %vm4962, %v2912, 0.0
      %v5091 = vsel %vm4963, %v2913, 0.0
      %v5092 = vsel %vm4964, %v2914, 0.0
      %v5093 = vsel %vm4965, %v2915, 0.0
      %v5094 = vsel %vm4966, %v2916, 0.0
      %v5095 = vsel %vm4967, %v2917, 0.0
      %v5096 = vsel %vm4968, %v2918, 0.0
      %v5097 = vsel %vm4969, %v2919, 0.0
      %v5098 = vsel %vm4970, %v2920, 0.0
      %v5099 = vsel %vm4971, %v2921, 0.0
      %v5100 = vsel %vm4972, %v2922, 0.0
      %v5101 = vsel %vm4973, %v2923, 0.0
      %v5102 = vsel %vm4974, %v2924, 0.0
      %v5103 = vsel %vm4975, %v2925, 0.0
      %v5104 = vsel %vm4976, %v2926, 0.0
      %v5105 = vsel %vm4977, %v2927, 0.0
      %v5106 = vsel %vm4978, %v2928, 0.0
      %v5107 = vsel %vm4979, %v2929, 0.0
      %v5108 = vsel %vm4980, %v2930, 0.0
      %v5109 = vsel %vm4981, %v2931, 0.0
      %v5110 = vsel %vm4982, %v2932, 0.0
      %v5111 = vsel %vm4983, %v2933, 0.0
      %v5112 = vsel %vm4984, %v2934, 0.0
      %v5113 = vsel %vm4985, %v2935, 0.0
      %v5114 = vsel %vm4986, %v2936, 0.0
      %v5115 = vsel %vm4987, %v2937, 0.0
      %v5116 = vsel %vm4988, %v2938, 0.0
      %v5117 = vsel %vm4989, %v2939, 0.0
      %v5118 = vsel %vm4990, %v2940, 0.0
      %v5119 = vsel %vm4991, %v2941, 0.0
      %v5120 = vsel %vm4992, %v2942, 0.0
      %v5121 = vsel %vm4993, %v2943, 0.0
      %v5122 = vsel %vm4994, %v2944, 0.0
      %v5123 = vsel %vm4995, %v2945, 0.0
      %v5124 = vsel %vm4996, %v2946, 0.0
      %v5125 = vsel %vm4997, %v2947, 0.0
      %v5126 = vsel %vm4998, %v2948, 0.0
      %v5127 = vsel %vm4999, %v2949, 0.0
      %v5128 = vsel %vm5000, %v2950, 0.0
      %v5129 = vsel %vm5001, %v2951, 0.0
      %v5130 = vsel %vm5002, %v2952, 0.0
      %v5131 = vsel %vm5003, %v2953, 0.0
      %v5132 = vsel %vm5004, %v2954, 0.0
      %v5133 = vsel %vm5005, %v2955, 0.0
      %v5134 = vsel %vm5006, %v2956, 0.0
      %v5135 = vsel %vm5007, %v2957, 0.0
      %v5136 = vsel %vm2565, %v5008, 0.0
      %5137 = vadd.xlane.f32.xlu0 %v5136
      %v5138 = vpop.xlane.xlu0 %5137
      %v5139 = vsel %vm2565, %v5009, 0.0
      %5140 = vadd.xlane.f32.xlu0 %v5139
      %v5141 = vpop.xlane.xlu0 %5140
      %v5142 = vsel %vm2565, %v5010, 0.0
      %5143 = vadd.xlane.f32.xlu0 %v5142
      %v5144 = vpop.xlane.xlu0 %5143
      %v5145 = vsel %vm2565, %v5011, 0.0
      %5146 = vadd.xlane.f32.xlu0 %v5145
      %v5147 = vpop.xlane.xlu0 %5146
      %v5148 = vsel %vm2565, %v5012, 0.0
      %5149 = vadd.xlane.f32.xlu0 %v5148
      %v5150 = vpop.xlane.xlu0 %5149
      %v5151 = vsel %vm2565, %v5013, 0.0
      %5152 = vadd.xlane.f32.xlu0 %v5151
      %v5153 = vpop.xlane.xlu0 %5152
      %v5154 = vsel %vm2565, %v5014, 0.0
      %5155 = vadd.xlane.f32.xlu0 %v5154
      %v5156 = vpop.xlane.xlu0 %5155
      %v5157 = vsel %vm2565, %v5015, 0.0
      %5158 = vadd.xlane.f32.xlu0 %v5157
      %v5159 = vpop.xlane.xlu0 %5158
      %v5160 = vsel %vm2565, %v5016, 0.0
      %5161 = vadd.xlane.f32.xlu0 %v5160
      %v5162 = vpop.xlane.xlu0 %5161
      %v5163 = vsel %vm2565, %v5017, 0.0
      %5164 = vadd.xlane.f32.xlu0 %v5163
      %v5165 = vpop.xlane.xlu0 %5164
      %v5166 = vsel %vm2565, %v5018, 0.0
      %5167 = vadd.xlane.f32.xlu0 %v5166
      %v5168 = vpop.xlane.xlu0 %5167
      %v5169 = vsel %vm2565, %v5019, 0.0
      %5170 = vadd.xlane.f32.xlu0 %v5169
      %v5171 = vpop.xlane.xlu0 %5170
      %v5172 = vsel %vm2565, %v5020, 0.0
      %5173 = vadd.xlane.f32.xlu0 %v5172
      %v5174 = vpop.xlane.xlu0 %5173
      %v5175 = vsel %vm2565, %v5021, 0.0
      %5176 = vadd.xlane.f32.xlu0 %v5175
      %v5177 = vpop.xlane.xlu0 %5176
      %v5178 = vsel %vm2565, %v5022, 0.0
      %5179 = vadd.xlane.f32.xlu0 %v5178
      %v5180 = vpop.xlane.xlu0 %5179
      %v5181 = vsel %vm2565, %v5023, 0.0
      %5182 = vadd.xlane.f32.xlu0 %v5181
      %v5183 = vpop.xlane.xlu0 %5182
      %v5184 = vsel %vm2565, %v5024, 0.0
      %5185 = vadd.xlane.f32.xlu0 %v5184
      %v5186 = vpop.xlane.xlu0 %5185
      %v5187 = vsel %vm2565, %v5025, 0.0
      %5188 = vadd.xlane.f32.xlu0 %v5187
      %v5189 = vpop.xlane.xlu0 %5188
      %v5190 = vsel %vm2565, %v5026, 0.0
      %5191 = vadd.xlane.f32.xlu0 %v5190
      %v5192 = vpop.xlane.xlu0 %5191
      %v5193 = vsel %vm2565, %v5027, 0.0
      %5194 = vadd.xlane.f32.xlu0 %v5193
      %v5195 = vpop.xlane.xlu0 %5194
      %v5196 = vsel %vm2565, %v5028, 0.0
      %5197 = vadd.xlane.f32.xlu0 %v5196
      %v5198 = vpop.xlane.xlu0 %5197
      %v5199 = vsel %vm2565, %v5029, 0.0
      %5200 = vadd.xlane.f32.xlu0 %v5199
      %v5201 = vpop.xlane.xlu0 %5200
      %v5202 = vsel %vm2565, %v5030, 0.0
      %5203 = vadd.xlane.f32.xlu0 %v5202
      %v5204 = vpop.xlane.xlu0 %5203
      %v5205 = vsel %vm2565, %v5031, 0.0
      %5206 = vadd.xlane.f32.xlu0 %v5205
      %v5207 = vpop.xlane.xlu0 %5206
      %v5208 = vsel %vm2565, %v5032, 0.0
      %5209 = vadd.xlane.f32.xlu0 %v5208
      %v5210 = vpop.xlane.xlu0 %5209
      %v5211 = vsel %vm2565, %v5033, 0.0
      %5212 = vadd.xlane.f32.xlu0 %v5211
      %v5213 = vpop.xlane.xlu0 %5212
      %v5214 = vsel %vm2565, %v5034, 0.0
      %5215 = vadd.xlane.f32.xlu0 %v5214
      %v5216 = vpop.xlane.xlu0 %5215
      %v5217 = vsel %vm2565, %v5035, 0.0
      %5218 = vadd.xlane.f32.xlu0 %v5217
      %v5219 = vpop.xlane.xlu0 %5218
      %v5220 = vsel %vm2565, %v5036, 0.0
      %5221 = vadd.xlane.f32.xlu0 %v5220
      %v5222 = vpop.xlane.xlu0 %5221
      %v5223 = vsel %vm2565, %v5037, 0.0
      %5224 = vadd.xlane.f32.xlu0 %v5223
      %v5225 = vpop.xlane.xlu0 %5224
      %v5226 = vsel %vm2565, %v5038, 0.0
      %5227 = vadd.xlane.f32.xlu0 %v5226
      %v5228 = vpop.xlane.xlu0 %5227
      %v5229 = vsel %vm2565, %v5039, 0.0
      %5230 = vadd.xlane.f32.xlu0 %v5229
      %v5231 = vpop.xlane.xlu0 %5230
      %v5232 = vsel %vm2565, %v5040, 0.0
      %5233 = vadd.xlane.f32.xlu0 %v5232
      %v5234 = vpop.xlane.xlu0 %5233
      %v5235 = vsel %vm2565, %v5041, 0.0
      %5236 = vadd.xlane.f32.xlu0 %v5235
      %v5237 = vpop.xlane.xlu0 %5236
      %v5238 = vsel %vm2565, %v5042, 0.0
      %5239 = vadd.xlane.f32.xlu0 %v5238
      %v5240 = vpop.xlane.xlu0 %5239
      %v5241 = vsel %vm2565, %v5043, 0.0
      %5242 = vadd.xlane.f32.xlu0 %v5241
      %v5243 = vpop.xlane.xlu0 %5242
      %v5244 = vsel %vm2565, %v5044, 0.0
      %5245 = vadd.xlane.f32.xlu0 %v5244
      %v5246 = vpop.xlane.xlu0 %5245
      %v5247 = vsel %vm2565, %v5045, 0.0
      %5248 = vadd.xlane.f32.xlu0 %v5247
      %v5249 = vpop.xlane.xlu0 %5248
      %v5250 = vsel %vm2565, %v5046, 0.0
      %5251 = vadd.xlane.f32.xlu0 %v5250
      %v5252 = vpop.xlane.xlu0 %5251
      %v5253 = vsel %vm2565, %v5047, 0.0
      %5254 = vadd.xlane.f32.xlu0 %v5253
      %v5255 = vpop.xlane.xlu0 %5254
      %v5256 = vsel %vm2565, %v5048, 0.0
      %5257 = vadd.xlane.f32.xlu0 %v5256
      %v5258 = vpop.xlane.xlu0 %5257
      %v5259 = vsel %vm2565, %v5049, 0.0
      %5260 = vadd.xlane.f32.xlu0 %v5259
      %v5261 = vpop.xlane.xlu0 %5260
      %v5262 = vsel %vm2565, %v5050, 0.0
      %5263 = vadd.xlane.f32.xlu0 %v5262
      %v5264 = vpop.xlane.xlu0 %5263
      %v5265 = vsel %vm2565, %v5051, 0.0
      %5266 = vadd.xlane.f32.xlu0 %v5265
      %v5267 = vpop.xlane.xlu0 %5266
      %v5268 = vsel %vm2565, %v5052, 0.0
      %5269 = vadd.xlane.f32.xlu0 %v5268
      %v5270 = vpop.xlane.xlu0 %5269
      %v5271 = vsel %vm2565, %v5053, 0.0
      %5272 = vadd.xlane.f32.xlu0 %v5271
      %v5273 = vpop.xlane.xlu0 %5272
      %v5274 = vsel %vm2565, %v5054, 0.0
      %5275 = vadd.xlane.f32.xlu0 %v5274
      %v5276 = vpop.xlane.xlu0 %5275
      %v5277 = vsel %vm2565, %v5055, 0.0
      %5278 = vadd.xlane.f32.xlu0 %v5277
      %v5279 = vpop.xlane.xlu0 %5278
      %v5280 = vsel %vm2565, %v5056, 0.0
      %5281 = vadd.xlane.f32.xlu0 %v5280
      %v5282 = vpop.xlane.xlu0 %5281
      %v5283 = vsel %vm2565, %v5057, 0.0
      %5284 = vadd.xlane.f32.xlu0 %v5283
      %v5285 = vpop.xlane.xlu0 %5284
      %v5286 = vsel %vm2565, %v5058, 0.0
      %5287 = vadd.xlane.f32.xlu0 %v5286
      %v5288 = vpop.xlane.xlu0 %5287
      %v5289 = vsel %vm2565, %v5059, 0.0
      %5290 = vadd.xlane.f32.xlu0 %v5289
      %v5291 = vpop.xlane.xlu0 %5290
      %v5292 = vsel %vm2565, %v5060, 0.0
      %5293 = vadd.xlane.f32.xlu0 %v5292
      %v5294 = vpop.xlane.xlu0 %5293
      %v5295 = vsel %vm2565, %v5061, 0.0
      %5296 = vadd.xlane.f32.xlu0 %v5295
      %v5297 = vpop.xlane.xlu0 %5296
      %v5298 = vsel %vm2565, %v5062, 0.0
      %5299 = vadd.xlane.f32.xlu0 %v5298
      %v5300 = vpop.xlane.xlu0 %5299
      %v5301 = vsel %vm2565, %v5063, 0.0
      %5302 = vadd.xlane.f32.xlu0 %v5301
      %v5303 = vpop.xlane.xlu0 %5302
      %v5304 = vsel %vm2565, %v5064, 0.0
      %5305 = vadd.xlane.f32.xlu0 %v5304
      %v5306 = vpop.xlane.xlu0 %5305
      %v5307 = vsel %vm2565, %v5065, 0.0
      %5308 = vadd.xlane.f32.xlu0 %v5307
      %v5309 = vpop.xlane.xlu0 %5308
      %v5310 = vsel %vm2565, %v5066, 0.0
      %5311 = vadd.xlane.f32.xlu0 %v5310
      %v5312 = vpop.xlane.xlu0 %5311
      %v5313 = vsel %vm2565, %v5067, 0.0
      %5314 = vadd.xlane.f32.xlu0 %v5313
      %v5315 = vpop.xlane.xlu0 %5314
      %v5316 = vsel %vm2565, %v5068, 0.0
      %5317 = vadd.xlane.f32.xlu0 %v5316
      %v5318 = vpop.xlane.xlu0 %5317
      %v5319 = vsel %vm2565, %v5069, 0.0
      %5320 = vadd.xlane.f32.xlu0 %v5319
      %v5321 = vpop.xlane.xlu0 %5320
      %v5322 = vsel %vm2565, %v5070, 0.0
      %5323 = vadd.xlane.f32.xlu0 %v5322
      %v5324 = vpop.xlane.xlu0 %5323
      %v5325 = vsel %vm2565, %v5071, 0.0
      %5326 = vadd.xlane.f32.xlu0 %v5325
      %v5327 = vpop.xlane.xlu0 %5326
      %v5328 = vsel %vm2565, %v5072, 0.0
      %5329 = vadd.xlane.f32.xlu0 %v5328
      %v5330 = vpop.xlane.xlu0 %5329
      %v5331 = vsel %vm2565, %v5073, 0.0
      %5332 = vadd.xlane.f32.xlu0 %v5331
      %v5333 = vpop.xlane.xlu0 %5332
      %v5334 = vsel %vm2565, %v5074, 0.0
      %5335 = vadd.xlane.f32.xlu0 %v5334
      %v5336 = vpop.xlane.xlu0 %5335
      %v5337 = vsel %vm2565, %v5075, 0.0
      %5338 = vadd.xlane.f32.xlu0 %v5337
      %v5339 = vpop.xlane.xlu0 %5338
      %v5340 = vsel %vm2565, %v5076, 0.0
      %5341 = vadd.xlane.f32.xlu0 %v5340
      %v5342 = vpop.xlane.xlu0 %5341
      %v5343 = vsel %vm2565, %v5077, 0.0
      %5344 = vadd.xlane.f32.xlu0 %v5343
      %v5345 = vpop.xlane.xlu0 %5344
      %v5346 = vsel %vm2565, %v5078, 0.0
      %5347 = vadd.xlane.f32.xlu0 %v5346
      %v5348 = vpop.xlane.xlu0 %5347
      %v5349 = vsel %vm2565, %v5079, 0.0
      %5350 = vadd.xlane.f32.xlu0 %v5349
      %v5351 = vpop.xlane.xlu0 %5350
      %v5352 = vsel %vm2565, %v5080, 0.0
      %5353 = vadd.xlane.f32.xlu0 %v5352
      %v5354 = vpop.xlane.xlu0 %5353
      %v5355 = vsel %vm2565, %v5081, 0.0
      %5356 = vadd.xlane.f32.xlu0 %v5355
      %v5357 = vpop.xlane.xlu0 %5356
      %v5358 = vsel %vm2565, %v5082, 0.0
      %5359 = vadd.xlane.f32.xlu0 %v5358
      %v5360 = vpop.xlane.xlu0 %5359
      %v5361 = vsel %vm2565, %v5083, 0.0
      %5362 = vadd.xlane.f32.xlu0 %v5361
      %v5363 = vpop.xlane.xlu0 %5362
      %v5364 = vsel %vm2565, %v5084, 0.0
      %5365 = vadd.xlane.f32.xlu0 %v5364
      %v5366 = vpop.xlane.xlu0 %5365
      %v5367 = vsel %vm2565, %v5085, 0.0
      %5368 = vadd.xlane.f32.xlu0 %v5367
      %v5369 = vpop.xlane.xlu0 %5368
      %v5370 = vsel %vm2565, %v5086, 0.0
      %5371 = vadd.xlane.f32.xlu0 %v5370
      %v5372 = vpop.xlane.xlu0 %5371
      %v5373 = vsel %vm2565, %v5087, 0.0
      %5374 = vadd.xlane.f32.xlu0 %v5373
      %v5375 = vpop.xlane.xlu0 %5374
      %v5376 = vsel %vm2565, %v5088, 0.0
      %5377 = vadd.xlane.f32.xlu0 %v5376
      %v5378 = vpop.xlane.xlu0 %5377
      %v5379 = vsel %vm2565, %v5089, 0.0
      %5380 = vadd.xlane.f32.xlu0 %v5379
      %v5381 = vpop.xlane.xlu0 %5380
      %v5382 = vsel %vm2565, %v5090, 0.0
      %5383 = vadd.xlane.f32.xlu0 %v5382
      %v5384 = vpop.xlane.xlu0 %5383
      %v5385 = vsel %vm2565, %v5091, 0.0
      %5386 = vadd.xlane.f32.xlu0 %v5385
      %v5387 = vpop.xlane.xlu0 %5386
      %v5388 = vsel %vm2565, %v5092, 0.0
      %5389 = vadd.xlane.f32.xlu0 %v5388
      %v5390 = vpop.xlane.xlu0 %5389
      %v5391 = vsel %vm2565, %v5093, 0.0
      %5392 = vadd.xlane.f32.xlu0 %v5391
      %v5393 = vpop.xlane.xlu0 %5392
      %v5394 = vsel %vm2565, %v5094, 0.0
      %5395 = vadd.xlane.f32.xlu0 %v5394
      %v5396 = vpop.xlane.xlu0 %5395
      %v5397 = vsel %vm2565, %v5095, 0.0
      %5398 = vadd.xlane.f32.xlu0 %v5397
      %v5399 = vpop.xlane.xlu0 %5398
      %v5400 = vsel %vm2565, %v5096, 0.0
      %5401 = vadd.xlane.f32.xlu0 %v5400
      %v5402 = vpop.xlane.xlu0 %5401
      %v5403 = vsel %vm2565, %v5097, 0.0
      %5404 = vadd.xlane.f32.xlu0 %v5403
      %v5405 = vpop.xlane.xlu0 %5404
      %v5406 = vsel %vm2565, %v5098, 0.0
      %5407 = vadd.xlane.f32.xlu0 %v5406
      %v5408 = vpop.xlane.xlu0 %5407
      %v5409 = vsel %vm2565, %v5099, 0.0
      %5410 = vadd.xlane.f32.xlu0 %v5409
      %v5411 = vpop.xlane.xlu0 %5410
      %v5412 = vsel %vm2565, %v5100, 0.0
      %5413 = vadd.xlane.f32.xlu0 %v5412
      %v5414 = vpop.xlane.xlu0 %5413
      %v5415 = vsel %vm2565, %v5101, 0.0
      %5416 = vadd.xlane.f32.xlu0 %v5415
      %v5417 = vpop.xlane.xlu0 %5416
      %v5418 = vsel %vm2565, %v5102, 0.0
      %5419 = vadd.xlane.f32.xlu0 %v5418
      %v5420 = vpop.xlane.xlu0 %5419
      %v5421 = vsel %vm2565, %v5103, 0.0
      %5422 = vadd.xlane.f32.xlu0 %v5421
      %v5423 = vpop.xlane.xlu0 %5422
      %v5424 = vsel %vm2565, %v5104, 0.0
      %5425 = vadd.xlane.f32.xlu0 %v5424
      %v5426 = vpop.xlane.xlu0 %5425
      %v5427 = vsel %vm2565, %v5105, 0.0
      %5428 = vadd.xlane.f32.xlu0 %v5427
      %v5429 = vpop.xlane.xlu0 %5428
      %v5430 = vsel %vm2565, %v5106, 0.0
      %5431 = vadd.xlane.f32.xlu0 %v5430
      %v5432 = vpop.xlane.xlu0 %5431
      %v5433 = vsel %vm2565, %v5107, 0.0
      %5434 = vadd.xlane.f32.xlu0 %v5433
      %v5435 = vpop.xlane.xlu0 %5434
      %v5436 = vsel %vm2565, %v5108, 0.0
      %5437 = vadd.xlane.f32.xlu0 %v5436
      %v5438 = vpop.xlane.xlu0 %5437
      %v5439 = vsel %vm2565, %v5109, 0.0
      %5440 = vadd.xlane.f32.xlu0 %v5439
      %v5441 = vpop.xlane.xlu0 %5440
      %v5442 = vsel %vm2565, %v5110, 0.0
      %5443 = vadd.xlane.f32.xlu0 %v5442
      %v5444 = vpop.xlane.xlu0 %5443
      %v5445 = vsel %vm2565, %v5111, 0.0
      %5446 = vadd.xlane.f32.xlu0 %v5445
      %v5447 = vpop.xlane.xlu0 %5446
      %v5448 = vsel %vm2565, %v5112, 0.0
      %5449 = vadd.xlane.f32.xlu0 %v5448
      %v5450 = vpop.xlane.xlu0 %5449
      %v5451 = vsel %vm2565, %v5113, 0.0
      %5452 = vadd.xlane.f32.xlu0 %v5451
      %v5453 = vpop.xlane.xlu0 %5452
      %v5454 = vsel %vm2565, %v5114, 0.0
      %5455 = vadd.xlane.f32.xlu0 %v5454
      %v5456 = vpop.xlane.xlu0 %5455
      %v5457 = vsel %vm2565, %v5115, 0.0
      %5458 = vadd.xlane.f32.xlu0 %v5457
      %v5459 = vpop.xlane.xlu0 %5458
      %v5460 = vsel %vm2565, %v5116, 0.0
      %5461 = vadd.xlane.f32.xlu0 %v5460
      %v5462 = vpop.xlane.xlu0 %5461
      %v5463 = vsel %vm2565, %v5117, 0.0
      %5464 = vadd.xlane.f32.xlu0 %v5463
      %v5465 = vpop.xlane.xlu0 %5464
      %v5466 = vsel %vm2565, %v5118, 0.0
      %5467 = vadd.xlane.f32.xlu0 %v5466
      %v5468 = vpop.xlane.xlu0 %5467
      %v5469 = vsel %vm2565, %v5119, 0.0
      %5470 = vadd.xlane.f32.xlu0 %v5469
      %v5471 = vpop.xlane.xlu0 %5470
      %v5472 = vsel %vm2565, %v5120, 0.0
      %5473 = vadd.xlane.f32.xlu0 %v5472
      %v5474 = vpop.xlane.xlu0 %5473
      %v5475 = vsel %vm2565, %v5121, 0.0
      %5476 = vadd.xlane.f32.xlu0 %v5475
      %v5477 = vpop.xlane.xlu0 %5476
      %v5478 = vsel %vm2565, %v5122, 0.0
      %5479 = vadd.xlane.f32.xlu0 %v5478
      %v5480 = vpop.xlane.xlu0 %5479
      %v5481 = vsel %vm2565, %v5123, 0.0
      %5482 = vadd.xlane.f32.xlu0 %v5481
      %v5483 = vpop.xlane.xlu0 %5482
      %v5484 = vsel %vm2565, %v5124, 0.0
      %5485 = vadd.xlane.f32.xlu0 %v5484
      %v5486 = vpop.xlane.xlu0 %5485
      %v5487 = vsel %vm2565, %v5125, 0.0
      %5488 = vadd.xlane.f32.xlu0 %v5487
      %v5489 = vpop.xlane.xlu0 %5488
      %v5490 = vsel %vm2565, %v5126, 0.0
      %5491 = vadd.xlane.f32.xlu0 %v5490
      %v5492 = vpop.xlane.xlu0 %5491
      %v5493 = vsel %vm2565, %v5127, 0.0
      %5494 = vadd.xlane.f32.xlu0 %v5493
      %v5495 = vpop.xlane.xlu0 %5494
      %v5496 = vsel %vm2565, %v5128, 0.0
      %5497 = vadd.xlane.f32.xlu0 %v5496
      %v5498 = vpop.xlane.xlu0 %5497
      %v5499 = vsel %vm2565, %v5129, 0.0
      %5500 = vadd.xlane.f32.xlu0 %v5499
      %v5501 = vpop.xlane.xlu0 %5500
      %v5502 = vsel %vm2565, %v5130, 0.0
      %5503 = vadd.xlane.f32.xlu0 %v5502
      %v5504 = vpop.xlane.xlu0 %5503
      %v5505 = vsel %vm2565, %v5131, 0.0
      %5506 = vadd.xlane.f32.xlu0 %v5505
      %v5507 = vpop.xlane.xlu0 %5506
      %v5508 = vsel %vm2565, %v5132, 0.0
      %5509 = vadd.xlane.f32.xlu0 %v5508
      %v5510 = vpop.xlane.xlu0 %5509
      %v5511 = vsel %vm2565, %v5133, 0.0
      %5512 = vadd.xlane.f32.xlu0 %v5511
      %v5513 = vpop.xlane.xlu0 %5512
      %v5514 = vsel %vm2565, %v5134, 0.0
      %5515 = vadd.xlane.f32.xlu0 %v5514
      %v5516 = vpop.xlane.xlu0 %5515
      %v5517 = vsel %vm2565, %v5135, 0.0
      %5518 = vadd.xlane.f32.xlu0 %v5517
      %v5519 = vpop.xlane.xlu0 %5518
      %v5520 = vsub.f32 %v4366, %v5138
      %v5521 = vsub.f32 %v4367, %v5141
      %v5522 = vsub.f32 %v4368, %v5144
      %v5523 = vsub.f32 %v4369, %v5147
      %v5524 = vsub.f32 %v4370, %v5150
      %v5525 = vsub.f32 %v4371, %v5153
      %v5526 = vsub.f32 %v4372, %v5156
      %v5527 = vsub.f32 %v4373, %v5159
      %v5528 = vsub.f32 %v4374, %v5162
      %v5529 = vsub.f32 %v4375, %v5165
      %v5530 = vsub.f32 %v4376, %v5168
      %v5531 = vsub.f32 %v4377, %v5171
      %v5532 = vsub.f32 %v4378, %v5174
      %v5533 = vsub.f32 %v4379, %v5177
      %v5534 = vsub.f32 %v4380, %v5180
      %v5535 = vsub.f32 %v4381, %v5183
      %v5536 = vsub.f32 %v4382, %v5186
      %v5537 = vsub.f32 %v4383, %v5189
      %v5538 = vsub.f32 %v4384, %v5192
      %v5539 = vsub.f32 %v4385, %v5195
      %v5540 = vsub.f32 %v4386, %v5198
      %v5541 = vsub.f32 %v4387, %v5201
      %v5542 = vsub.f32 %v4388, %v5204
      %v5543 = vsub.f32 %v4389, %v5207
      %v5544 = vsub.f32 %v4390, %v5210
      %v5545 = vsub.f32 %v4391, %v5213
      %v5546 = vsub.f32 %v4392, %v5216
      %v5547 = vsub.f32 %v4393, %v5219
      %v5548 = vsub.f32 %v4394, %v5222
      %v5549 = vsub.f32 %v4395, %v5225
      %v5550 = vsub.f32 %v4396, %v5228
      %v5551 = vsub.f32 %v4397, %v5231
      %v5552 = vsub.f32 %v4398, %v5234
      %v5553 = vsub.f32 %v4399, %v5237
      %v5554 = vsub.f32 %v4400, %v5240
      %v5555 = vsub.f32 %v4401, %v5243
      %v5556 = vsub.f32 %v4402, %v5246
      %v5557 = vsub.f32 %v4403, %v5249
      %v5558 = vsub.f32 %v4404, %v5252
      %v5559 = vsub.f32 %v4405, %v5255
      %v5560 = vsub.f32 %v4406, %v5258
      %v5561 = vsub.f32 %v4407, %v5261
      %v5562 = vsub.f32 %v4408, %v5264
      %v5563 = vsub.f32 %v4409, %v5267
      %v5564 = vsub.f32 %v4410, %v5270
      %v5565 = vsub.f32 %v4411, %v5273
      %v5566 = vsub.f32 %v4412, %v5276
      %v5567 = vsub.f32 %v4413, %v5279
      %v5568 = vsub.f32 %v4414, %v5282
      %v5569 = vsub.f32 %v4415, %v5285
      %v5570 = vsub.f32 %v4416, %v5288
      %v5571 = vsub.f32 %v4417, %v5291
      %v5572 = vsub.f32 %v4418, %v5294
      %v5573 = vsub.f32 %v4419, %v5297
      %v5574 = vsub.f32 %v4420, %v5300
      %v5575 = vsub.f32 %v4421, %v5303
      %v5576 = vsub.f32 %v4422, %v5306
      %v5577 = vsub.f32 %v4423, %v5309
      %v5578 = vsub.f32 %v4424, %v5312
      %v5579 = vsub.f32 %v4425, %v5315
      %v5580 = vsub.f32 %v4426, %v5318
      %v5581 = vsub.f32 %v4427, %v5321
      %v5582 = vsub.f32 %v4428, %v5324
      %v5583 = vsub.f32 %v4429, %v5327
      %v5584 = vsub.f32 %v4430, %v5330
      %v5585 = vsub.f32 %v4431, %v5333
      %v5586 = vsub.f32 %v4432, %v5336
      %v5587 = vsub.f32 %v4433, %v5339
      %v5588 = vsub.f32 %v4434, %v5342
      %v5589 = vsub.f32 %v4435, %v5345
      %v5590 = vsub.f32 %v4436, %v5348
      %v5591 = vsub.f32 %v4437, %v5351
      %v5592 = vsub.f32 %v4438, %v5354
      %v5593 = vsub.f32 %v4439, %v5357
      %v5594 = vsub.f32 %v4440, %v5360
      %v5595 = vsub.f32 %v4441, %v5363
      %v5596 = vsub.f32 %v4442, %v5366
      %v5597 = vsub.f32 %v4443, %v5369
      %v5598 = vsub.f32 %v4444, %v5372
      %v5599 = vsub.f32 %v4445, %v5375
      %v5600 = vsub.f32 %v4446, %v5378
      %v5601 = vsub.f32 %v4447, %v5381
      %v5602 = vsub.f32 %v4448, %v5384
      %v5603 = vsub.f32 %v4449, %v5387
      %v5604 = vsub.f32 %v4450, %v5390
      %v5605 = vsub.f32 %v4451, %v5393
      %v5606 = vsub.f32 %v4452, %v5396
      %v5607 = vsub.f32 %v4453, %v5399
      %v5608 = vsub.f32 %v4454, %v5402
      %v5609 = vsub.f32 %v4455, %v5405
      %v5610 = vsub.f32 %v4456, %v5408
      %v5611 = vsub.f32 %v4457, %v5411
      %v5612 = vsub.f32 %v4458, %v5414
      %v5613 = vsub.f32 %v4459, %v5417
      %v5614 = vsub.f32 %v4460, %v5420
      %v5615 = vsub.f32 %v4461, %v5423
      %v5616 = vsub.f32 %v4462, %v5426
      %v5617 = vsub.f32 %v4463, %v5429
      %v5618 = vsub.f32 %v4464, %v5432
      %v5619 = vsub.f32 %v4465, %v5435
      %v5620 = vsub.f32 %v4466, %v5438
      %v5621 = vsub.f32 %v4467, %v5441
      %v5622 = vsub.f32 %v4468, %v5444
      %v5623 = vsub.f32 %v4469, %v5447
      %v5624 = vsub.f32 %v4470, %v5450
      %v5625 = vsub.f32 %v4471, %v5453
      %v5626 = vsub.f32 %v4472, %v5456
      %v5627 = vsub.f32 %v4473, %v5459
      %v5628 = vsub.f32 %v4474, %v5462
      %v5629 = vsub.f32 %v4475, %v5465
      %v5630 = vsub.f32 %v4476, %v5468
      %v5631 = vsub.f32 %v4477, %v5471
      %v5632 = vsub.f32 %v4478, %v5474
      %v5633 = vsub.f32 %v4479, %v5477
      %v5634 = vsub.f32 %v4480, %v5480
      %v5635 = vsub.f32 %v4481, %v5483
      %v5636 = vsub.f32 %v4482, %v5486
      %v5637 = vsub.f32 %v4483, %v5489
      %v5638 = vsub.f32 %v4484, %v5492
      %v5639 = vsub.f32 %v4485, %v5495
      %v5640 = vsub.f32 %v4486, %v5498
      %v5641 = vsub.f32 %v4487, %v5501
      %v5642 = vsub.f32 %v4488, %v5504
      %v5643 = vsub.f32 %v4489, %v5507
      %v5644 = vsub.f32 %v4490, %v5510
      %v5645 = vsub.f32 %v4491, %v5513
      %v5646 = vsub.f32 %v4492, %v5516
      %v5647 = vsub.f32 %v4493, %v5519
      %vm5648 = vcmask 7168
      %5649 = vst.msk [vmem:[%s381] sm:$0xff] %vm5648, %v5520
      %5650 = vst.msk [vmem:[%s381 + $0x8] sm:$0xff] %vm5648, %v5521
      %5651 = vst.msk [vmem:[%s381 + $0x10] sm:$0xff] %vm5648, %v5522
      %5652 = vst.msk [vmem:[%s381 + $0x18] sm:$0xff] %vm5648, %v5523
      %5653 = vst.msk [vmem:[%s381 + $0x20] sm:$0xff] %vm5648, %v5524
      %5654 = vst.msk [vmem:[%s381 + $0x28] sm:$0xff] %vm5648, %v5525
      %5655 = vst.msk [vmem:[%s381 + $0x30] sm:$0xff] %vm5648, %v5526
      %5656 = vst.msk [vmem:[%s381 + $0x38] sm:$0xff] %vm5648, %v5527
      %5657 = vst.msk [vmem:[%s381 + $0x40] sm:$0xff] %vm5648, %v5528
      %5658 = vst.msk [vmem:[%s381 + $0x48] sm:$0xff] %vm5648, %v5529
      %5659 = vst.msk [vmem:[%s381 + $0x50] sm:$0xff] %vm5648, %v5530
      %5660 = vst.msk [vmem:[%s381 + $0x58] sm:$0xff] %vm5648, %v5531
      %5661 = vst.msk [vmem:[%s381 + $0x60] sm:$0xff] %vm5648, %v5532
      %5662 = vst.msk [vmem:[%s381 + $0x68] sm:$0xff] %vm5648, %v5533
      %5663 = vst.msk [vmem:[%s381 + $0x70] sm:$0xff] %vm5648, %v5534
      %5664 = vst.msk [vmem:[%s381 + $0x78] sm:$0xff] %vm5648, %v5535
      %5665 = vst.msk [vmem:[%s381 + $0x80] sm:$0xff] %vm5648, %v5536
      %5666 = vst.msk [vmem:[%s381 + $0x88] sm:$0xff] %vm5648, %v5537
      %5667 = vst.msk [vmem:[%s381 + $0x90] sm:$0xff] %vm5648, %v5538
      %5668 = vst.msk [vmem:[%s381 + $0x98] sm:$0xff] %vm5648, %v5539
      %5669 = vst.msk [vmem:[%s381 + $0xa0] sm:$0xff] %vm5648, %v5540
      %5670 = vst.msk [vmem:[%s381 + $0xa8] sm:$0xff] %vm5648, %v5541
      %5671 = vst.msk [vmem:[%s381 + $0xb0] sm:$0xff] %vm5648, %v5542
      %5672 = vst.msk [vmem:[%s381 + $0xb8] sm:$0xff] %vm5648, %v5543
      %5673 = vst.msk [vmem:[%s381 + $0xc0] sm:$0xff] %vm5648, %v5544
      %5674 = vst.msk [vmem:[%s381 + $0xc8] sm:$0xff] %vm5648, %v5545
      %5675 = vst.msk [vmem:[%s381 + $0xd0] sm:$0xff] %vm5648, %v5546
      %5676 = vst.msk [vmem:[%s381 + $0xd8] sm:$0xff] %vm5648, %v5547
      %5677 = vst.msk [vmem:[%s381 + $0xe0] sm:$0xff] %vm5648, %v5548
      %5678 = vst.msk [vmem:[%s381 + $0xe8] sm:$0xff] %vm5648, %v5549
      %5679 = vst.msk [vmem:[%s381 + $0xf0] sm:$0xff] %vm5648, %v5550
      %5680 = vst.msk [vmem:[%s381 + $0xf8] sm:$0xff] %vm5648, %v5551
      %5681 = vst.msk [vmem:[%s381 + $0x100] sm:$0xff] %vm5648, %v5552
      %5682 = vst.msk [vmem:[%s381 + $0x108] sm:$0xff] %vm5648, %v5553
      %5683 = vst.msk [vmem:[%s381 + $0x110] sm:$0xff] %vm5648, %v5554
      %5684 = vst.msk [vmem:[%s381 + $0x118] sm:$0xff] %vm5648, %v5555
      %5685 = vst.msk [vmem:[%s381 + $0x120] sm:$0xff] %vm5648, %v5556
      %5686 = vst.msk [vmem:[%s381 + $0x128] sm:$0xff] %vm5648, %v5557
      %5687 = vst.msk [vmem:[%s381 + $0x130] sm:$0xff] %vm5648, %v5558
      %5688 = vst.msk [vmem:[%s381 + $0x138] sm:$0xff] %vm5648, %v5559
      %5689 = vst.msk [vmem:[%s381 + $0x140] sm:$0xff] %vm5648, %v5560
      %5690 = vst.msk [vmem:[%s381 + $0x148] sm:$0xff] %vm5648, %v5561
      %5691 = vst.msk [vmem:[%s381 + $0x150] sm:$0xff] %vm5648, %v5562
      %5692 = vst.msk [vmem:[%s381 + $0x158] sm:$0xff] %vm5648, %v5563
      %5693 = vst.msk [vmem:[%s381 + $0x160] sm:$0xff] %vm5648, %v5564
      %5694 = vst.msk [vmem:[%s381 + $0x168] sm:$0xff] %vm5648, %v5565
      %5695 = vst.msk [vmem:[%s381 + $0x170] sm:$0xff] %vm5648, %v5566
      %5696 = vst.msk [vmem:[%s381 + $0x178] sm:$0xff] %vm5648, %v5567
      %5697 = vst.msk [vmem:[%s381 + $0x180] sm:$0xff] %vm5648, %v5568
      %5698 = vst.msk [vmem:[%s381 + $0x188] sm:$0xff] %vm5648, %v5569
      %5699 = vst.msk [vmem:[%s381 + $0x190] sm:$0xff] %vm5648, %v5570
      %5700 = vst.msk [vmem:[%s381 + $0x198] sm:$0xff] %vm5648, %v5571
      %5701 = vst.msk [vmem:[%s381 + $0x1a0] sm:$0xff] %vm5648, %v5572
      %5702 = vst.msk [vmem:[%s381 + $0x1a8] sm:$0xff] %vm5648, %v5573
      %5703 = vst.msk [vmem:[%s381 + $0x1b0] sm:$0xff] %vm5648, %v5574
      %5704 = vst.msk [vmem:[%s381 + $0x1b8] sm:$0xff] %vm5648, %v5575
      %5705 = vst.msk [vmem:[%s381 + $0x1c0] sm:$0xff] %vm5648, %v5576
      %5706 = vst.msk [vmem:[%s381 + $0x1c8] sm:$0xff] %vm5648, %v5577
      %5707 = vst.msk [vmem:[%s381 + $0x1d0] sm:$0xff] %vm5648, %v5578
      %5708 = vst.msk [vmem:[%s381 + $0x1d8] sm:$0xff] %vm5648, %v5579
      %5709 = vst.msk [vmem:[%s381 + $0x1e0] sm:$0xff] %vm5648, %v5580
      %5710 = vst.msk [vmem:[%s381 + $0x1e8] sm:$0xff] %vm5648, %v5581
      %5711 = vst.msk [vmem:[%s381 + $0x1f0] sm:$0xff] %vm5648, %v5582
      %5712 = vst.msk [vmem:[%s381 + $0x1f8] sm:$0xff] %vm5648, %v5583
      %5713 = vst.msk [vmem:[%s381 + $0x200] sm:$0xff] %vm5648, %v5584
      %5714 = vst.msk [vmem:[%s381 + $0x208] sm:$0xff] %vm5648, %v5585
      %5715 = vst.msk [vmem:[%s381 + $0x210] sm:$0xff] %vm5648, %v5586
      %5716 = vst.msk [vmem:[%s381 + $0x218] sm:$0xff] %vm5648, %v5587
      %5717 = vst.msk [vmem:[%s381 + $0x220] sm:$0xff] %vm5648, %v5588
      %5718 = vst.msk [vmem:[%s381 + $0x228] sm:$0xff] %vm5648, %v5589
      %5719 = vst.msk [vmem:[%s381 + $0x230] sm:$0xff] %vm5648, %v5590
      %5720 = vst.msk [vmem:[%s381 + $0x238] sm:$0xff] %vm5648, %v5591
      %5721 = vst.msk [vmem:[%s381 + $0x240] sm:$0xff] %vm5648, %v5592
      %5722 = vst.msk [vmem:[%s381 + $0x248] sm:$0xff] %vm5648, %v5593
      %5723 = vst.msk [vmem:[%s381 + $0x250] sm:$0xff] %vm5648, %v5594
      %5724 = vst.msk [vmem:[%s381 + $0x258] sm:$0xff] %vm5648, %v5595
      %5725 = vst.msk [vmem:[%s381 + $0x260] sm:$0xff] %vm5648, %v5596
      %5726 = vst.msk [vmem:[%s381 + $0x268] sm:$0xff] %vm5648, %v5597
      %5727 = vst.msk [vmem:[%s381 + $0x270] sm:$0xff] %vm5648, %v5598
      %5728 = vst.msk [vmem:[%s381 + $0x278] sm:$0xff] %vm5648, %v5599
      %5729 = vst.msk [vmem:[%s381 + $0x280] sm:$0xff] %vm5648, %v5600
      %5730 = vst.msk [vmem:[%s381 + $0x288] sm:$0xff] %vm5648, %v5601
      %5731 = vst.msk [vmem:[%s381 + $0x290] sm:$0xff] %vm5648, %v5602
      %5732 = vst.msk [vmem:[%s381 + $0x298] sm:$0xff] %vm5648, %v5603
      %5733 = vst.msk [vmem:[%s381 + $0x2a0] sm:$0xff] %vm5648, %v5604
      %5734 = vst.msk [vmem:[%s381 + $0x2a8] sm:$0xff] %vm5648, %v5605
      %5735 = vst.msk [vmem:[%s381 + $0x2b0] sm:$0xff] %vm5648, %v5606
      %5736 = vst.msk [vmem:[%s381 + $0x2b8] sm:$0xff] %vm5648, %v5607
      %5737 = vst.msk [vmem:[%s381 + $0x2c0] sm:$0xff] %vm5648, %v5608
      %5738 = vst.msk [vmem:[%s381 + $0x2c8] sm:$0xff] %vm5648, %v5609
      %5739 = vst.msk [vmem:[%s381 + $0x2d0] sm:$0xff] %vm5648, %v5610
      %5740 = vst.msk [vmem:[%s381 + $0x2d8] sm:$0xff] %vm5648, %v5611
      %5741 = vst.msk [vmem:[%s381 + $0x2e0] sm:$0xff] %vm5648, %v5612
      %5742 = vst.msk [vmem:[%s381 + $0x2e8] sm:$0xff] %vm5648, %v5613
      %5743 = vst.msk [vmem:[%s381 + $0x2f0] sm:$0xff] %vm5648, %v5614
      %5744 = vst.msk [vmem:[%s381 + $0x2f8] sm:$0xff] %vm5648, %v5615
      %5745 = vst.msk [vmem:[%s381 + $0x300] sm:$0xff] %vm5648, %v5616
      %5746 = vst.msk [vmem:[%s381 + $0x308] sm:$0xff] %vm5648, %v5617
      %5747 = vst.msk [vmem:[%s381 + $0x310] sm:$0xff] %vm5648, %v5618
      %5748 = vst.msk [vmem:[%s381 + $0x318] sm:$0xff] %vm5648, %v5619
      %5749 = vst.msk [vmem:[%s381 + $0x320] sm:$0xff] %vm5648, %v5620
      %5750 = vst.msk [vmem:[%s381 + $0x328] sm:$0xff] %vm5648, %v5621
      %5751 = vst.msk [vmem:[%s381 + $0x330] sm:$0xff] %vm5648, %v5622
      %5752 = vst.msk [vmem:[%s381 + $0x338] sm:$0xff] %vm5648, %v5623
      %5753 = vst.msk [vmem:[%s381 + $0x340] sm:$0xff] %vm5648, %v5624
      %5754 = vst.msk [vmem:[%s381 + $0x348] sm:$0xff] %vm5648, %v5625
      %5755 = vst.msk [vmem:[%s381 + $0x350] sm:$0xff] %vm5648, %v5626
      %5756 = vst.msk [vmem:[%s381 + $0x358] sm:$0xff] %vm5648, %v5627
      %5757 = vst.msk [vmem:[%s381 + $0x360] sm:$0xff] %vm5648, %v5628
      %5758 = vst.msk [vmem:[%s381 + $0x368] sm:$0xff] %vm5648, %v5629
      %5759 = vst.msk [vmem:[%s381 + $0x370] sm:$0xff] %vm5648, %v5630
      %5760 = vst.msk [vmem:[%s381 + $0x378] sm:$0xff] %vm5648, %v5631
      %5761 = vst.msk [vmem:[%s381 + $0x380] sm:$0xff] %vm5648, %v5632
      %5762 = vst.msk [vmem:[%s381 + $0x388] sm:$0xff] %vm5648, %v5633
      %5763 = vst.msk [vmem:[%s381 + $0x390] sm:$0xff] %vm5648, %v5634
      %5764 = vst.msk [vmem:[%s381 + $0x398] sm:$0xff] %vm5648, %v5635
      %5765 = vst.msk [vmem:[%s381 + $0x3a0] sm:$0xff] %vm5648, %v5636
      %5766 = vst.msk [vmem:[%s381 + $0x3a8] sm:$0xff] %vm5648, %v5637
      %5767 = vst.msk [vmem:[%s381 + $0x3b0] sm:$0xff] %vm5648, %v5638
      %5768 = vst.msk [vmem:[%s381 + $0x3b8] sm:$0xff] %vm5648, %v5639
      %5769 = vst.msk [vmem:[%s381 + $0x3c0] sm:$0xff] %vm5648, %v5640
      %5770 = vst.msk [vmem:[%s381 + $0x3c8] sm:$0xff] %vm5648, %v5641
      %5771 = vst.msk [vmem:[%s381 + $0x3d0] sm:$0xff] %vm5648, %v5642
      %5772 = vst.msk [vmem:[%s381 + $0x3d8] sm:$0xff] %vm5648, %v5643
      %5773 = vst.msk [vmem:[%s381 + $0x3e0] sm:$0xff] %vm5648, %v5644
      %5774 = vst.msk [vmem:[%s381 + $0x3e8] sm:$0xff] %vm5648, %v5645
      %5775 = vst.msk [vmem:[%s381 + $0x3f0] sm:$0xff] %vm5648, %v5646
      %5776 = vst.msk [vmem:[%s381 + $0x3f8] sm:$0xff] %vm5648, %v5647
      %v5777 = vstv %s2829
      %5778 = vst [vmem:[%s388] sm:$0x1] %v5777
      %s5779 = smul.u32 128, %s22
      %p5780 = scmp.lt.s32.totalorder %s21, 1
      %s5781 = scalar_select %p5780, %s21, 1
      %p5782 = scmp.lt.s32.totalorder %s5779, 127
      %s5783 = scalar_select %p5782, %s5779, 127
      %s5784 = smul.addr %s5781, 128
      %s5785 = sadd.s32 %s5783, %s5784
      %s5786 = smul.addr %s5785, 8
      %s5787 = scalar_lea.vmem %s4, %s5786
      %p5788 = scmp.lt.s32.totalorder %s21, 1
      %s5789 = scalar_select %p5788, %s21, 1
      %p5790 = scmp.lt.s32.totalorder %s22, 0
      %s5791 = scalar_select %p5790, %s22, 0
      %s5792 = sadd.s32 %s5791, %s5789
      %s5793 = scalar_lea.vmem %s5, %s5792
      // Predicated region
      $region37: #{dagnet_multibox_loss.1} parent=35 // pred_check
        %p5794 = pneg %p161
      $region38: #{dagnet_multibox_loss.1} parent=35 // pred_check_branch
        %5796 = sbr.rel (%p5794) target = $region40
      $region39: #{dagnet_multibox_loss.1} parent=35 // pred_region
        %s5797 = smul.u32 128, %s22
      $region40: #{dagnet_multibox_loss.1} parent=35 // pred_fallthru
        _
      // Predicated region
      $region41: #{dagnet_multibox_loss.1} parent=35 // pred_check
        %p5798 = pneg %p189
      $region42: #{dagnet_multibox_loss.1} parent=35 // pred_check_branch
        %5800 = sbr.rel (%p5798) target = $region44
      $region43: #{dagnet_multibox_loss.1} parent=35 // pred_region
        _
      $region44: #{dagnet_multibox_loss.1} parent=35 // pred_fallthru
        _
    $region36: #{dagnet_multibox_loss.1} parent=5 // pred_fallthru
      _
    %p5801 = scmp.le.s32.totalorder 2, %s12
    // Predicated region
    $region45: #{dagnet_multibox_loss.1} parent=5 // pred_check
      %p5802 = pneg %p5801
    $region46: #{dagnet_multibox_loss.1} parent=5 // pred_check_branch
      %5804 = sbr.rel (%p5802) target = $region48
    $region47: #{dagnet_multibox_loss.1} parent=5 // pred_region
      %s5805 = ssub.s32 %s12, 2
      // Predicated region
      $region49: #{dagnet_multibox_loss.1} parent=47 // pred_check
        %p5806 = pneg %p167
      $region50: #{dagnet_multibox_loss.1} parent=47 // pred_check_branch
        %5808 = sbr.rel (%p5806) target = $region52
      $region51: #{dagnet_multibox_loss.1} parent=47 // pred_region
        %s5809 = smul.u32 128, %s24
        %p5810 = scmp.lt.s32.totalorder %s23, 1
        %s5811 = scalar_select %p5810, %s23, 1
        %p5812 = scmp.lt.s32.totalorder %s5809, 127
        %s5813 = scalar_select %p5812, %s5809, 127
        %s5814 = smul.addr %s5811, 128
        %s5815 = sadd.s32 %s5813, %s5814
        %s5816 = smul.addr %s5815, 8
        %s5817 = scalar_lea.vmem %s4, %s5816
      $region52: #{dagnet_multibox_loss.1} parent=47 // pred_fallthru
        _
      // Predicated region
      $region53: #{dagnet_multibox_loss.1} parent=47 // pred_check
        %p5818 = pneg %p195
      $region54: #{dagnet_multibox_loss.1} parent=47 // pred_check_branch
        %5820 = sbr.rel (%p5818) target = $region56
      $region55: #{dagnet_multibox_loss.1} parent=47 // pred_region
        %p5821 = scmp.lt.s32.totalorder %s23, 1
        %s5822 = scalar_select %p5821, %s23, 1
        %p5823 = scmp.lt.s32.totalorder %s24, 0
        %s5824 = scalar_select %p5823, %s24, 0
        %s5825 = sadd.s32 %s5824, %s5822
        %s5826 = scalar_lea.vmem %s5, %s5825
      $region56: #{dagnet_multibox_loss.1} parent=47 // pred_fallthru
        _
    $region48: #{dagnet_multibox_loss.1} parent=5 // pred_fallthru
      _
  $region6: #{dagnet_multibox_loss.1} parent=0 // loop_footer
    %s16 = sadd.s32 1, %s12
  $region7: #{dagnet_multibox_loss.1} parent=0 // loop_footer_branch
    %11 = sbr.rel target = $region3
  $region8: #{dagnet_multibox_loss.1} parent=0 // loop_exit
    _

</llo_original>
